<compile_context>
chip_gen: v7x
topology: tpu7x:2x2x1
jax: 0.10.0
libtpu: 0.0.40
codegen_flags: <defaults>
</compile_context>

<pallas_src>
import functools

import jax
import jax.numpy as jnp
from jax.experimental import pallas as pl
from jax.experimental.pallas import tpu as pltpu

# ------------------------- model hyper-parameters (small) -------------------------
DIM = 32        # token embedding dim
DEPTH = 2       # number of cross-transformer layers
HEADS = 2       # attention heads
DIM_HEAD = 8    # per-head dim  -> inner_dim = 16
MLP_DIM = 64    # feed-forward hidden dim
LN_EPS = 1e-5   # nn.LayerNorm default

# Flat, ordered list of per-layer weight arrays fed to the fused kernel.
WEIGHT_NAMES = []
for _br in ("a1", "a2"):
    WEIGHT_NAMES += [f"{_br}_lnq_g", f"{_br}_lnq_b", f"{_br}_lnkv_g", f"{_br}_lnkv_b",
                     f"{_br}_wq", f"{_br}_wk", f"{_br}_wv", f"{_br}_wo", f"{_br}_bo"]
for _br in ("f1", "f2"):
    WEIGHT_NAMES += [f"{_br}_ln_g", f"{_br}_ln_b",
                     f"{_br}_w1", f"{_br}_b1", f"{_br}_w2", f"{_br}_b2"]


# --------------------------------- kernel helpers ---------------------------------
def _layernorm(x, g, b):
    # x: (R, D); g, b: (1, D)
    mu = jnp.mean(x, axis=-1, keepdims=True)
    var = jnp.mean((x - mu) ** 2, axis=-1, keepdims=True)
    return (x - mu) * jax.lax.rsqrt(var + LN_EPS) * g + b


def _attn_block(xq, xkv, w, pfx, B, Nq, Nk):
    """PreNorm2in + vitAttention with softmax_one. xq:(B*Nq,D), xkv:(B*Nk,D)."""
    q_in = _layernorm(xq, w[pfx + "_lnq_g"][...], w[pfx + "_lnq_b"][...])
    kv_in = _layernorm(xkv, w[pfx + "_lnkv_g"][...], w[pfx + "_lnkv_b"][...])
    wq, wk, wv, wo = (w[pfx + "_wq"], w[pfx + "_wk"], w[pfx + "_wv"], w[pfx + "_wo"])

    acc = jnp.zeros((B * Nq, DIM), jnp.float32)
    for h in range(HEADS):                      # static loop; head split lives on the
        qh = jnp.dot(q_in, wq[h],               # leading weight axis, not the lane axis
                     preferred_element_type=jnp.float32)        # (B*Nq, Dh), scale folded
        kh = jnp.dot(kv_in, wk[h], preferred_element_type=jnp.float32)   # (B*Nk, Dh)
        vh = jnp.dot(kv_in, wv[h], preferred_element_type=jnp.float32)   # (B*Nk, Dh)

        q3 = qh.reshape(B, Nq, DIM_HEAD)
        k3 = kh.reshape(B, Nk, DIM_HEAD)
        v3 = vh.reshape(B, Nk, DIM_HEAD)

        dots = jnp.einsum('bnd,bmd->bnm', q3, k3,
                          preferred_element_type=jnp.float32)   # (B, Nq, Nk)
        # softmax_one: exp(x) / (1 + sum(exp(x))), numerically stable form.
        m = jnp.maximum(jnp.max(dots, axis=-1, keepdims=True), 0.0)
        e = jnp.exp(dots - m)
        attn = e / (jnp.exp(-m) + jnp.sum(e, axis=-1, keepdims=True))
        oh = jnp.einsum('bnm,bmd->bnd', attn, v3,
                        preferred_element_type=jnp.float32)     # (B, Nq, Dh)
        # out @ Wo == sum_h out_h @ Wo_h  -> no lane-axis concat needed.
        acc = acc + jnp.dot(oh.reshape(B * Nq, DIM_HEAD), wo[h],
                            preferred_element_type=jnp.float32)
    return acc + w[pfx + "_bo"][...]


def _ff_block(x, w, pfx):
    """PreNorm + FeedForward: LN -> Linear -> ReLU -> Linear."""
    xn = _layernorm(x, w[pfx + "_ln_g"][...], w[pfx + "_ln_b"][...])
    h = jnp.dot(xn, w[pfx + "_w1"][...],
                preferred_element_type=jnp.float32) + w[pfx + "_b1"][...]
    h = jnp.maximum(h, 0.0)
    return jnp.dot(h, w[pfx + "_w2"][...],
                   preferred_element_type=jnp.float32) + w[pfx + "_b2"][...]


# ----------------------------- fused whole-network kernel --------------------------
def fused_kernel(*refs, B, N1, N2):
    nw = len(WEIGHT_NAMES)
    x1_ref, x2_ref = refs[0], refs[1]
    w = dict(zip(WEIGHT_NAMES, refs[2:2 + nw]))
    y1_ref, y2_ref, s1_ref, s2_ref = refs[2 + nw:6 + nw]

    layer = pl.program_id(0)

    @pl.when(layer == 0)
    def _init():
        s1_ref[...] = x1_ref[...]
        s2_ref[...] = x2_ref[...]

    x1 = s1_ref[...]        # (B*N1, D) VMEM-resident carry
    x2 = s2_ref[...]        # (B*N2, D)

    a1 = _attn_block(x1, x2, w, "a1", B, N1, N2)   # attn1(x1, x2)
    a2 = _attn_block(x2, x1, w, "a2", B, N2, N1)   # attn2(x2, x1)
    x1 = x1 + a1
    x2 = x2 + a2
    x1 = x1 + _ff_block(x1, w, "f1")
    x2 = x2 + _ff_block(x2, w, "f2")

    s1_ref[...] = x1
    s2_ref[...] = x2

    @pl.when(layer == pl.num_programs(0) - 1)
    def _finalize():
        y1_ref[...] = x1
        y2_ref[...] = x2


def _weight_spec(arr):
    """Per-layer slice of a depth-stacked weight; leading depth dim is squeezed."""
    zeros = (0,) * (arr.ndim - 1)
    return pl.BlockSpec((None,) + tuple(arr.shape[1:]),
                        lambda l, _z=zeros: (l,) + _z)


def pack_params_for_kernel(params):
    """Stack per-layer PyTorch-layout params into kernel-friendly arrays.

    Splits Wq/Wkv/Wo per head on a leading axis (avoids lane slices / concat in the
    kernel) and folds the attention scale into Wq.
    """
    inner = HEADS * DIM_HEAD
    scale = DIM_HEAD ** -0.5
    packed = {name: [] for name in WEIGHT_NAMES}
    for layer in params:
        for br, key in (("a1", "attn1"), ("a2", "attn2")):
            p = layer[key]
            packed[br + "_lnq_g"].append(p["ln1_g"])
            packed[br + "_lnq_b"].append(p["ln1_b"])
            packed[br + "_lnkv_g"].append(p["ln2_g"])
            packed[br + "_lnkv_b"].append(p["ln2_b"])
            wq = (p["wq"] * scale).reshape(DIM, HEADS, DIM_HEAD).transpose(1, 0, 2)
            wk = p["wkv"][:, :inner].reshape(DIM, HEADS, DIM_HEAD).transpose(1, 0, 2)
            wv = p["wkv"][:, inner:].reshape(DIM, HEADS, DIM_HEAD).transpose(1, 0, 2)
            wo = p["wo"].reshape(HEADS, DIM_HEAD, DIM)
            packed[br + "_wq"].append(wq)
            packed[br + "_wk"].append(wk)
            packed[br + "_wv"].append(wv)
            packed[br + "_wo"].append(wo)
            packed[br + "_bo"].append(p["bo"])
        for br, key in (("f1", "ff1"), ("f2", "ff2")):
            p = layer[key]
            packed[br + "_ln_g"].append(p["ln_g"])
            packed[br + "_ln_b"].append(p["ln_b"])
            packed[br + "_w1"].append(p["w1"])
            packed[br + "_b1"].append(p["b1"])
            packed[br + "_w2"].append(p["w2"])
            packed[br + "_b2"].append(p["b2"])
    return {name: jnp.stack(vals, axis=0) for name, vals in packed.items()}


def cross_transformer(x1, x2, params):
    """Forward pass of CrossTransformer — a single fused pallas_call."""
    B, N1, D = x1.shape
    _, N2, _ = x2.shape
    assert D == DIM

    packed = pack_params_for_kernel(params)
    weight_arrays = [packed[name] for name in WEIGHT_NAMES]

    x1f = x1.reshape(B * N1, D)
    x2f = x2.reshape(B * N2, D)

    in_specs = ([pl.BlockSpec((B * N1, D), lambda l: (0, 0)),
                 pl.BlockSpec((B * N2, D), lambda l: (0, 0))]
                + [_weight_spec(a) for a in weight_arrays])
    out_specs = (pl.BlockSpec((B * N1, D), lambda l: (0, 0)),
                 pl.BlockSpec((B * N2, D), lambda l: (0, 0)))

    y1f, y2f = pl.pallas_call(
        functools.partial(fused_kernel, B=B, N1=N1, N2=N2),
        out_shape=(jax.ShapeDtypeStruct((B * N1, D), x1.dtype),
                   jax.ShapeDtypeStruct((B * N2, D), x2.dtype)),
        grid=(len(params),),
        in_specs=in_specs,
        out_specs=out_specs,
        scratch_shapes=[pltpu.VMEM((B * N1, D), jnp.float32),
                        pltpu.VMEM((B * N2, D), jnp.float32)],
        compiler_params=pltpu.CompilerParams(
            dimension_semantics=("arbitrary",)),
    )(x1f, x2f, *weight_arrays)

    return y1f.reshape(B, N1, D), y2f.reshape(B, N2, D)


# ----------------------------- pure-JAX reference (check) --------------------------
def _ref_attn(xq, xk, p):
    xq = _layernorm(xq.reshape(-1, DIM), p['ln1_g'], p['ln1_b']).reshape(xq.shape)
    xk = _layernorm(xk.reshape(-1, DIM), p['ln2_g'], p['ln2_b']).reshape(xk.shape)
    inner = HEADS * DIM_HEAD
    q = xq @ p['wq']
    kv = xk @ p['wkv']
    k, v = kv[..., :inner], kv[..., inner:]
    B, Nq, _ = q.shape
    Nk = k.shape[1]
    qh = q.reshape(B, Nq, HEADS, DIM_HEAD).transpose(0, 2, 1, 3)
    kh = k.reshape(B, Nk, HEADS, DIM_HEAD).transpose(0, 2, 1, 3)
    vh = v.reshape(B, Nk, HEADS, DIM_HEAD).transpose(0, 2, 1, 3)
    dots = jnp.einsum('bhnd,bhmd->bhnm', qh, kh) * (DIM_HEAD ** -0.5)
    # true softmax_one ("quiet softmax"): exp(x) / (1 + sum(exp(x)))
    e = jnp.exp(dots)
    attn = e / (1.0 + jnp.sum(e, axis=-1, keepdims=True))
    out = jnp.einsum('bhnm,bhmd->bhnd', attn, vh)
    out = out.transpose(0, 2, 1, 3).reshape(B, Nq, inner)
    return out @ p['wo'] + p['bo']


def _ref_ff(x, p):
    xs = x.shape
    xn = _layernorm(x.reshape(-1, DIM), p['ln_g'], p['ln_b']).reshape(xs)
    return jnp.maximum(xn @ p['w1'] + p['b1'], 0.0) @ p['w2'] + p['b2']


def cross_transformer_ref(x1, x2, params):
    for layer in params:
        ax1 = _ref_attn(x1, x2, layer['attn1'])
        ax2 = _ref_attn(x2, x1, layer['attn2'])
        x1, x2 = ax1 + x1, ax2 + x2
        x1 = _ref_ff(x1, layer['ff1']) + x1
        x2 = _ref_ff(x2, layer['ff2']) + x2
    return x1, x2


# -------------------------------- parameter init -----------------------------------
def _init_attn_params(key):
    inner = HEADS * DIM_HEAD
    k1, k2, k3, k4 = jax.random.split(key, 4)
    return {
        'ln1_g': jnp.ones((1, DIM), jnp.float32),
        'ln1_b': jnp.zeros((1, DIM), jnp.float32),
        'ln2_g': jnp.ones((1, DIM), jnp.float32),
        'ln2_b': jnp.zeros((1, DIM), jnp.float32),
        'wq':  0.05 * jax.random.normal(k1, (DIM, inner), jnp.float32),
        'wkv': 0.05 * jax.random.normal(k2, (DIM, 2 * inner), jnp.float32),
        'wo':  0.05 * jax.random.normal(k3, (inner, DIM), jnp.float32),
        'bo':  0.05 * jax.random.normal(k4, (1, DIM), jnp.float32),
    }


def _init_ff_params(key):
    k1, k2, k3, k4 = jax.random.split(key, 4)
    return {
        'ln_g': jnp.ones((1, DIM), jnp.float32),
        'ln_b': jnp.zeros((1, DIM), jnp.float32),
        'w1': 0.05 * jax.random.normal(k1, (DIM, MLP_DIM), jnp.float32),
        'b1': 0.05 * jax.random.normal(k2, (1, MLP_DIM), jnp.float32),
        'w2': 0.05 * jax.random.normal(k3, (MLP_DIM, DIM), jnp.float32),
        'b2': 0.05 * jax.random.normal(k4, (1, DIM), jnp.float32),
    }


def init_params(key):
    params = []
    for _ in range(DEPTH):
        key, ka1, ka2, kf1, kf2 = jax.random.split(key, 5)
        params.append({
            'attn1': _init_attn_params(ka1),
            'attn2': _init_attn_params(ka2),
            'ff1': _init_ff_params(kf1),
            'ff2': _init_ff_params(kf2),
        })
    return params


# -------------------------------------- main ----------------------------------------
if __name__ == "__main__":
    key = jax.random.PRNGKey(0)
    kx1, kx2, kp = jax.random.split(key, 3)

    B, N1, N2 = 2, 8, 16
    x1 = jax.random.normal(kx1, (B, N1, DIM), jnp.float32)
    x2 = jax.random.normal(kx2, (B, N2, DIM), jnp.float32)
    params = init_params(kp)

    y1, y2 = cross_transformer(x1, x2, params)
    y1 = jax.block_until_ready(y1)
    y2 = jax.block_until_ready(y2)

    r1, r2 = cross_transformer_ref(x1, x2, params)
    assert jnp.allclose(y1, r1, atol=1e-4, rtol=1e-4), "x1 output mismatch vs reference"
    assert jnp.allclose(y2, r2, atol=1e-4, rtol=1e-4), "x2 output mismatch vs reference"

    print("KERNEL_OK")
</pallas_src>

<mosaic_0001>
module attributes {stable_mosaic.version = 11 : i64} {
  func.func @fused_kernel(%arg0: i32, %arg1: memref<16x32xf32, #tpu.memory_space<vmem>>, %arg2: memref<32x32xf32, #tpu.memory_space<vmem>>, %arg3: memref<1x1x32xf32, #tpu.memory_space<vmem>>, %arg4: memref<1x1x32xf32, #tpu.memory_space<vmem>>, %arg5: memref<1x1x32xf32, #tpu.memory_space<vmem>>, %arg6: memref<1x1x32xf32, #tpu.memory_space<vmem>>, %arg7: memref<1x2x32x8xf32, #tpu.memory_space<vmem>>, %arg8: memref<1x2x32x8xf32, #tpu.memory_space<vmem>>, %arg9: memref<1x2x32x8xf32, #tpu.memory_space<vmem>>, %arg10: memref<1x2x8x32xf32, #tpu.memory_space<vmem>>, %arg11: memref<1x1x32xf32, #tpu.memory_space<vmem>>, %arg12: memref<1x1x32xf32, #tpu.memory_space<vmem>>, %arg13: memref<1x1x32xf32, #tpu.memory_space<vmem>>, %arg14: memref<1x1x32xf32, #tpu.memory_space<vmem>>, %arg15: memref<1x1x32xf32, #tpu.memory_space<vmem>>, %arg16: memref<1x2x32x8xf32, #tpu.memory_space<vmem>>, %arg17: memref<1x2x32x8xf32, #tpu.memory_space<vmem>>, %arg18: memref<1x2x32x8xf32, #tpu.memory_space<vmem>>, %arg19: memref<1x2x8x32xf32, #tpu.memory_space<vmem>>, %arg20: memref<1x1x32xf32, #tpu.memory_space<vmem>>, %arg21: memref<1x1x32xf32, #tpu.memory_space<vmem>>, %arg22: memref<1x1x32xf32, #tpu.memory_space<vmem>>, %arg23: memref<1x32x64xf32, #tpu.memory_space<vmem>>, %arg24: memref<1x1x64xf32, #tpu.memory_space<vmem>>, %arg25: memref<1x64x32xf32, #tpu.memory_space<vmem>>, %arg26: memref<1x1x32xf32, #tpu.memory_space<vmem>>, %arg27: memref<1x1x32xf32, #tpu.memory_space<vmem>>, %arg28: memref<1x1x32xf32, #tpu.memory_space<vmem>>, %arg29: memref<1x32x64xf32, #tpu.memory_space<vmem>>, %arg30: memref<1x1x64xf32, #tpu.memory_space<vmem>>, %arg31: memref<1x64x32xf32, #tpu.memory_space<vmem>>, %arg32: memref<1x1x32xf32, #tpu.memory_space<vmem>>, %arg33: memref<16x32xf32, #tpu.memory_space<vmem>>, %arg34: memref<32x32xf32, #tpu.memory_space<vmem>>, %arg35: memref<16x32xf32, #tpu.memory_space<vmem>>, %arg36: memref<32x32xf32, #tpu.memory_space<vmem>>) attributes {dimension_semantics = [#tpu.dimension_semantics<arbitrary>], iteration_bounds = array<i64: 2>, scalar_prefetch = 0 : i64, scratch_operands = 2 : i64, tpu.core_type = #tpu.core_type<tc>, window_params = [{pipeline_mode = #tpu.pipeline_mode<synchronous>, transform_indices = @transform_0, window_bounds = array<i64: 16, 32>}, {pipeline_mode = #tpu.pipeline_mode<synchronous>, transform_indices = @transform_1, window_bounds = array<i64: 32, 32>}, {transform_indices = @transform_2, window_bounds = array<i64: 1, 1, 32>}, {transform_indices = @transform_3, window_bounds = array<i64: 1, 1, 32>}, {transform_indices = @transform_4, window_bounds = array<i64: 1, 1, 32>}, {transform_indices = @transform_5, window_bounds = array<i64: 1, 1, 32>}, {transform_indices = @transform_6, window_bounds = array<i64: 1, 2, 32, 8>}, {transform_indices = @transform_7, window_bounds = array<i64: 1, 2, 32, 8>}, {transform_indices = @transform_8, window_bounds = array<i64: 1, 2, 32, 8>}, {transform_indices = @transform_9, window_bounds = array<i64: 1, 2, 8, 32>}, {transform_indices = @transform_10, window_bounds = array<i64: 1, 1, 32>}, {transform_indices = @transform_11, window_bounds = array<i64: 1, 1, 32>}, {transform_indices = @transform_12, window_bounds = array<i64: 1, 1, 32>}, {transform_indices = @transform_13, window_bounds = array<i64: 1, 1, 32>}, {transform_indices = @transform_14, window_bounds = array<i64: 1, 1, 32>}, {transform_indices = @transform_15, window_bounds = array<i64: 1, 2, 32, 8>}, {transform_indices = @transform_16, window_bounds = array<i64: 1, 2, 32, 8>}, {transform_indices = @transform_17, window_bounds = array<i64: 1, 2, 32, 8>}, {transform_indices = @transform_18, window_bounds = array<i64: 1, 2, 8, 32>}, {transform_indices = @transform_19, window_bounds = array<i64: 1, 1, 32>}, {transform_indices = @transform_20, window_bounds = array<i64: 1, 1, 32>}, {transform_indices = @transform_21, window_bounds = array<i64: 1, 1, 32>}, {transform_indices = @transform_22, window_bounds = array<i64: 1, 32, 64>}, {transform_indices = @transform_23, window_bounds = array<i64: 1, 1, 64>}, {transform_indices = @transform_24, window_bounds = array<i64: 1, 64, 32>}, {transform_indices = @transform_25, window_bounds = array<i64: 1, 1, 32>}, {transform_indices = @transform_26, window_bounds = array<i64: 1, 1, 32>}, {transform_indices = @transform_27, window_bounds = array<i64: 1, 1, 32>}, {transform_indices = @transform_28, window_bounds = array<i64: 1, 32, 64>}, {transform_indices = @transform_29, window_bounds = array<i64: 1, 1, 64>}, {transform_indices = @transform_30, window_bounds = array<i64: 1, 64, 32>}, {transform_indices = @transform_31, window_bounds = array<i64: 1, 1, 32>}, {pipeline_mode = #tpu.pipeline_mode<synchronous>, transform_indices = @transform_32, window_bounds = array<i64: 16, 32>}, {pipeline_mode = #tpu.pipeline_mode<synchronous>, transform_indices = @transform_33, window_bounds = array<i64: 32, 32>}]} {
    %c0_i32 = arith.constant 0 : i32
    %0 = arith.cmpi eq, %arg0, %c0_i32 : i32
    %1 = arith.extui %0 : i1 to i32
    %c0_i32_0 = arith.constant 0 : i32
    %2 = arith.cmpi ne, %1, %c0_i32_0 : i32
    scf.if %2 {
      %c0_215 = arith.constant 0 : index
      %c0_216 = arith.constant 0 : index
      %348 = vector.load %arg1[%c0_215, %c0_216] : memref<16x32xf32, #tpu.memory_space<vmem>>, vector<16x32xf32>
      %c0_217 = arith.constant 0 : index
      %c0_218 = arith.constant 0 : index
      %349 = vector.load %arg35[%c0_217, %c0_218] : memref<16x32xf32, #tpu.memory_space<vmem>>, vector<16x32xf32>
      tpu.vector_store %arg35[%c0_217, %c0_218], %348 {strides = array<i32>} : memref<16x32xf32, #tpu.memory_space<vmem>>, vector<16x32xf32>,
      %c0_219 = arith.constant 0 : index
      %c0_220 = arith.constant 0 : index
      %350 = vector.load %arg2[%c0_219, %c0_220] : memref<32x32xf32, #tpu.memory_space<vmem>>, vector<32x32xf32>
      %c0_221 = arith.constant 0 : index
      %c0_222 = arith.constant 0 : index
      %351 = vector.load %arg36[%c0_221, %c0_222] : memref<32x32xf32, #tpu.memory_space<vmem>>, vector<32x32xf32>
      tpu.vector_store %arg36[%c0_221, %c0_222], %350 {strides = array<i32>} : memref<32x32xf32, #tpu.memory_space<vmem>>, vector<32x32xf32>,
    } else {
    }
    %c0 = arith.constant 0 : index
    %c0_1 = arith.constant 0 : index
    %3 = vector.load %arg35[%c0, %c0_1] : memref<16x32xf32, #tpu.memory_space<vmem>>, vector<16x32xf32>
    %c0_2 = arith.constant 0 : index
    %c0_3 = arith.constant 0 : index
    %4 = vector.load %arg36[%c0_2, %c0_3] : memref<32x32xf32, #tpu.memory_space<vmem>>, vector<32x32xf32>
    %c0_4 = arith.constant 0 : index
    %c0_5 = arith.constant 0 : index
    %c0_6 = arith.constant 0 : index
    %5 = vector.load %arg3[%c0_4, %c0_5, %c0_6] : memref<1x1x32xf32, #tpu.memory_space<vmem>>, vector<1x1x32xf32>
    %6 = vector.shape_cast %5 : vector<1x1x32xf32> to vector<1x32xf32>
    %c0_7 = arith.constant 0 : index
    %c0_8 = arith.constant 0 : index
    %c0_9 = arith.constant 0 : index
    %7 = vector.load %arg4[%c0_7, %c0_8, %c0_9] : memref<1x1x32xf32, #tpu.memory_space<vmem>>, vector<1x1x32xf32>
    %8 = vector.shape_cast %7 : vector<1x1x32xf32> to vector<1x32xf32>
    %cst = arith.constant dense<0.000000e+00> : vector<16xf32>
    %9 = vector.multi_reduction <add>, %3, %cst [1] : vector<16x32xf32> to vector<16xf32>
    %10 = vector.shape_cast %9 : vector<16xf32> to vector<16x1xf32>
    %cst_10 = arith.constant 3.200000e+01 : f32
    %11 = vector.broadcast %cst_10 : f32 to vector<16x1xf32>
    %12 = arith.divf %10, %11 : vector<16x1xf32>
    %13 = vector.broadcast %12 : vector<16x1xf32> to vector<16x32xf32>
    %14 = arith.subf %3, %13 : vector<16x32xf32>
    %15 = arith.mulf %14, %14 : vector<16x32xf32>
    %cst_11 = arith.constant dense<0.000000e+00> : vector<16xf32>
    %16 = vector.multi_reduction <add>, %15, %cst_11 [1] : vector<16x32xf32> to vector<16xf32>
    %17 = vector.shape_cast %16 : vector<16xf32> to vector<16x1xf32>
    %cst_12 = arith.constant 3.200000e+01 : f32
    %18 = vector.broadcast %cst_12 : f32 to vector<16x1xf32>
    %19 = arith.divf %17, %18 : vector<16x1xf32>
    %20 = vector.broadcast %12 : vector<16x1xf32> to vector<16x32xf32>
    %21 = arith.subf %3, %20 : vector<16x32xf32>
    %cst_13 = arith.constant 9.99999974E-6 : f32
    %22 = vector.broadcast %cst_13 : f32 to vector<16x1xf32>
    %23 = arith.addf %19, %22 : vector<16x1xf32>
    %24 = math.rsqrt %23 : vector<16x1xf32>
    %25 = vector.broadcast %24 : vector<16x1xf32> to vector<16x32xf32>
    %26 = arith.mulf %21, %25 : vector<16x32xf32>
    %27 = vector.broadcast %6 : vector<1x32xf32> to vector<16x32xf32>
    %28 = arith.mulf %26, %27 : vector<16x32xf32>
    %29 = vector.broadcast %8 : vector<1x32xf32> to vector<16x32xf32>
    %30 = arith.addf %28, %29 : vector<16x32xf32>
    %c0_14 = arith.constant 0 : index
    %c0_15 = arith.constant 0 : index
    %c0_16 = arith.constant 0 : index
    %31 = vector.load %arg5[%c0_14, %c0_15, %c0_16] : memref<1x1x32xf32, #tpu.memory_space<vmem>>, vector<1x1x32xf32>
    %32 = vector.shape_cast %31 : vector<1x1x32xf32> to vector<1x32xf32>
    %c0_17 = arith.constant 0 : index
    %c0_18 = arith.constant 0 : index
    %c0_19 = arith.constant 0 : index
    %33 = vector.load %arg6[%c0_17, %c0_18, %c0_19] : memref<1x1x32xf32, #tpu.memory_space<vmem>>, vector<1x1x32xf32>
    %34 = vector.shape_cast %33 : vector<1x1x32xf32> to vector<1x32xf32>
    %cst_20 = arith.constant dense<0.000000e+00> : vector<32xf32>
    %35 = vector.multi_reduction <add>, %4, %cst_20 [1] : vector<32x32xf32> to vector<32xf32>
    %36 = vector.shape_cast %35 : vector<32xf32> to vector<32x1xf32>
    %cst_21 = arith.constant 3.200000e+01 : f32
    %37 = vector.broadcast %cst_21 : f32 to vector<32x1xf32>
    %38 = arith.divf %36, %37 : vector<32x1xf32>
    %39 = vector.broadcast %38 : vector<32x1xf32> to vector<32x32xf32>
    %40 = arith.subf %4, %39 : vector<32x32xf32>
    %41 = arith.mulf %40, %40 : vector<32x32xf32>
    %cst_22 = arith.constant dense<0.000000e+00> : vector<32xf32>
    %42 = vector.multi_reduction <add>, %41, %cst_22 [1] : vector<32x32xf32> to vector<32xf32>
    %43 = vector.shape_cast %42 : vector<32xf32> to vector<32x1xf32>
    %cst_23 = arith.constant 3.200000e+01 : f32
    %44 = vector.broadcast %cst_23 : f32 to vector<32x1xf32>
    %45 = arith.divf %43, %44 : vector<32x1xf32>
    %46 = vector.broadcast %38 : vector<32x1xf32> to vector<32x32xf32>
    %47 = arith.subf %4, %46 : vector<32x32xf32>
    %cst_24 = arith.constant 9.99999974E-6 : f32
    %48 = vector.broadcast %cst_24 : f32 to vector<32x1xf32>
    %49 = arith.addf %45, %48 : vector<32x1xf32>
    %50 = math.rsqrt %49 : vector<32x1xf32>
    %51 = vector.broadcast %50 : vector<32x1xf32> to vector<32x32xf32>
    %52 = arith.mulf %47, %51 : vector<32x32xf32>
    %53 = vector.broadcast %32 : vector<1x32xf32> to vector<32x32xf32>
    %54 = arith.mulf %52, %53 : vector<32x32xf32>
    %55 = vector.broadcast %34 : vector<1x32xf32> to vector<32x32xf32>
    %56 = arith.addf %54, %55 : vector<32x32xf32>
    %cst_25 = arith.constant 0.000000e+00 : f32
    %57 = vector.broadcast %cst_25 : f32 to vector<16x32xf32>
    %c0_26 = arith.constant 0 : index
    %c0_27 = arith.constant 0 : index
    %c0_28 = arith.constant 0 : index
    %c0_29 = arith.constant 0 : index
    %58 = vector.load %arg7[%c0_26, %c0_27, %c0_28, %c0_29] : memref<1x2x32x8xf32, #tpu.memory_space<vmem>>, vector<1x1x32x8xf32>
    %59 = vector.shape_cast %58 : vector<1x1x32x8xf32> to vector<32x8xf32>
    %cst_30 = arith.constant dense<0.000000e+00> : vector<16x8xf32>
    %60 = tpu.matmul %30, %59, %cst_30 {dimension_numbers = #tpu.dot_dimension_numbers<[1], [0], [0], [1], [0, 0, 1, 1], [], []>} : vector<16x32xf32>, vector<32x8xf32>, vector<16x8xf32> -> vector<16x8xf32>
    %c0_31 = arith.constant 0 : index
    %c0_32 = arith.constant 0 : index
    %c0_33 = arith.constant 0 : index
    %c0_34 = arith.constant 0 : index
    %61 = vector.load %arg8[%c0_31, %c0_32, %c0_33, %c0_34] : memref<1x2x32x8xf32, #tpu.memory_space<vmem>>, vector<1x1x32x8xf32>
    %62 = vector.shape_cast %61 : vector<1x1x32x8xf32> to vector<32x8xf32>
    %cst_35 = arith.constant dense<0.000000e+00> : vector<32x8xf32>
    %63 = tpu.matmul %56, %62, %cst_35 {dimension_numbers = #tpu.dot_dimension_numbers<[1], [0], [0], [1], [0, 0, 1, 1], [], []>} : vector<32x32xf32>, vector<32x8xf32>, vector<32x8xf32> -> vector<32x8xf32>
    %c0_36 = arith.constant 0 : index
    %c0_37 = arith.constant 0 : index
    %c0_38 = arith.constant 0 : index
    %c0_39 = arith.constant 0 : index
    %64 = vector.load %arg9[%c0_36, %c0_37, %c0_38, %c0_39] : memref<1x2x32x8xf32, #tpu.memory_space<vmem>>, vector<1x1x32x8xf32>
    %65 = vector.shape_cast %64 : vector<1x1x32x8xf32> to vector<32x8xf32>
    %cst_40 = arith.constant dense<0.000000e+00> : vector<32x8xf32>
    %66 = tpu.matmul %56, %65, %cst_40 {dimension_numbers = #tpu.dot_dimension_numbers<[1], [0], [0], [1], [0, 0, 1, 1], [], []>} : vector<32x32xf32>, vector<32x8xf32>, vector<32x8xf32> -> vector<32x8xf32>
    %67 = vector.shape_cast %60 : vector<16x8xf32> to vector<2x8x8xf32>
    %68 = vector.shape_cast %63 : vector<32x8xf32> to vector<2x16x8xf32>
    %69 = vector.shape_cast %66 : vector<32x8xf32> to vector<2x16x8xf32>
    "tpu.trace_start"() <{level = 10 : i32, message = "bnd,bmd->bnm"}> : () -> ()
    %cst_41 = arith.constant dense<0.000000e+00> : vector<2x8x16xf32>
    %70 = tpu.matmul %67, %68, %cst_41 {dimension_numbers = #tpu.dot_dimension_numbers<[2], [2], [1], [1], [0, 0, 0, 1, 1, 1], [0], [0]>} : vector<2x8x8xf32>, vector<2x16x8xf32>, vector<2x8x16xf32> -> vector<2x8x16xf32>
    "tpu.trace_stop"() : () -> ()
    %cst_42 = arith.constant dense<0xFF800000> : vector<2x8xf32>
    %71 = vector.multi_reduction <maximumf>, %70, %cst_42 [2] : vector<2x8x16xf32> to vector<2x8xf32>
    %72 = vector.shape_cast %71 : vector<2x8xf32> to vector<2x8x1xf32>
    %cst_43 = arith.constant 0.000000e+00 : f32
    %73 = vector.broadcast %cst_43 : f32 to vector<2x8x1xf32>
    %74 = arith.maximumf %72, %73 : vector<2x8x1xf32>
    %75 = vector.broadcast %74 : vector<2x8x1xf32> to vector<2x8x16xf32>
    %76 = arith.subf %70, %75 : vector<2x8x16xf32>
    %77 = math.exp %76 : vector<2x8x16xf32>
    %cst_44 = arith.constant 0.000000e+00 : f32
    %78 = vector.broadcast %cst_44 : f32 to vector<2x8x1xf32>
    %79 = arith.subf %78, %74 : vector<2x8x1xf32>
    %80 = math.exp %79 : vector<2x8x1xf32>
    %cst_45 = arith.constant dense<0.000000e+00> : vector<2x8xf32>
    %81 = vector.multi_reduction <add>, %77, %cst_45 [2] : vector<2x8x16xf32> to vector<2x8xf32>
    %82 = vector.shape_cast %81 : vector<2x8xf32> to vector<2x8x1xf32>
    %83 = arith.addf %80, %82 : vector<2x8x1xf32>
    %84 = vector.broadcast %83 : vector<2x8x1xf32> to vector<2x8x16xf32>
    %85 = arith.divf %77, %84 : vector<2x8x16xf32>
    "tpu.trace_start"() <{level = 10 : i32, message = "bnm,bmd->bnd"}> : () -> ()
    %cst_46 = arith.constant dense<0.000000e+00> : vector<2x8x8xf32>
    %86 = tpu.matmul %85, %69, %cst_46 {dimension_numbers = #tpu.dot_dimension_numbers<[2], [1], [1], [2], [0, 0, 0, 1, 1, 2], [0], [0]>} : vector<2x8x16xf32>, vector<2x16x8xf32>, vector<2x8x8xf32> -> vector<2x8x8xf32>
    "tpu.trace_stop"() : () -> ()
    %87 = vector.shape_cast %86 : vector<2x8x8xf32> to vector<16x8xf32>
    %c0_47 = arith.constant 0 : index
    %c0_48 = arith.constant 0 : index
    %c0_49 = arith.constant 0 : index
    %c0_50 = arith.constant 0 : index
    %88 = vector.load %arg10[%c0_47, %c0_48, %c0_49, %c0_50] : memref<1x2x8x32xf32, #tpu.memory_space<vmem>>, vector<1x1x8x32xf32>
    %89 = vector.shape_cast %88 : vector<1x1x8x32xf32> to vector<8x32xf32>
    %cst_51 = arith.constant dense<0.000000e+00> : vector<16x32xf32>
    %90 = tpu.matmul %87, %89, %cst_51 {dimension_numbers = #tpu.dot_dimension_numbers<[1], [0], [0], [1], [0, 0, 1, 1], [], []>} : vector<16x8xf32>, vector<8x32xf32>, vector<16x32xf32> -> vector<16x32xf32>
    %91 = arith.addf %57, %90 : vector<16x32xf32>
    %c0_52 = arith.constant 0 : index
    %c1 = arith.constant 1 : index
    %c0_53 = arith.constant 0 : index
    %c0_54 = arith.constant 0 : index
    %92 = vector.load %arg7[%c0_52, %c1, %c0_53, %c0_54] : memref<1x2x32x8xf32, #tpu.memory_space<vmem>>, vector<1x1x32x8xf32>
    %93 = vector.shape_cast %92 : vector<1x1x32x8xf32> to vector<32x8xf32>
    %cst_55 = arith.constant dense<0.000000e+00> : vector<16x8xf32>
    %94 = tpu.matmul %30, %93, %cst_55 {dimension_numbers = #tpu.dot_dimension_numbers<[1], [0], [0], [1], [0, 0, 1, 1], [], []>} : vector<16x32xf32>, vector<32x8xf32>, vector<16x8xf32> -> vector<16x8xf32>
    %c0_56 = arith.constant 0 : index
    %c1_57 = arith.constant 1 : index
    %c0_58 = arith.constant 0 : index
    %c0_59 = arith.constant 0 : index
    %95 = vector.load %arg8[%c0_56, %c1_57, %c0_58, %c0_59] : memref<1x2x32x8xf32, #tpu.memory_space<vmem>>, vector<1x1x32x8xf32>
    %96 = vector.shape_cast %95 : vector<1x1x32x8xf32> to vector<32x8xf32>
    %cst_60 = arith.constant dense<0.000000e+00> : vector<32x8xf32>
    %97 = tpu.matmul %56, %96, %cst_60 {dimension_numbers = #tpu.dot_dimension_numbers<[1], [0], [0], [1], [0, 0, 1, 1], [], []>} : vector<32x32xf32>, vector<32x8xf32>, vector<32x8xf32> -> vector<32x8xf32>
    %c0_61 = arith.constant 0 : index
    %c1_62 = arith.constant 1 : index
    %c0_63 = arith.constant 0 : index
    %c0_64 = arith.constant 0 : index
    %98 = vector.load %arg9[%c0_61, %c1_62, %c0_63, %c0_64] : memref<1x2x32x8xf32, #tpu.memory_space<vmem>>, vector<1x1x32x8xf32>
    %99 = vector.shape_cast %98 : vector<1x1x32x8xf32> to vector<32x8xf32>
    %cst_65 = arith.constant dense<0.000000e+00> : vector<32x8xf32>
    %100 = tpu.matmul %56, %99, %cst_65 {dimension_numbers = #tpu.dot_dimension_numbers<[1], [0], [0], [1], [0, 0, 1, 1], [], []>} : vector<32x32xf32>, vector<32x8xf32>, vector<32x8xf32> -> vector<32x8xf32>
    %101 = vector.shape_cast %94 : vector<16x8xf32> to vector<2x8x8xf32>
    %102 = vector.shape_cast %97 : vector<32x8xf32> to vector<2x16x8xf32>
    %103 = vector.shape_cast %100 : vector<32x8xf32> to vector<2x16x8xf32>
    "tpu.trace_start"() <{level = 10 : i32, message = "bnd,bmd->bnm"}> : () -> ()
    %cst_66 = arith.constant dense<0.000000e+00> : vector<2x8x16xf32>
    %104 = tpu.matmul %101, %102, %cst_66 {dimension_numbers = #tpu.dot_dimension_numbers<[2], [2], [1], [1], [0, 0, 0, 1, 1, 1], [0], [0]>} : vector<2x8x8xf32>, vector<2x16x8xf32>, vector<2x8x16xf32> -> vector<2x8x16xf32>
    "tpu.trace_stop"() : () -> ()
    %cst_67 = arith.constant dense<0xFF800000> : vector<2x8xf32>
    %105 = vector.multi_reduction <maximumf>, %104, %cst_67 [2] : vector<2x8x16xf32> to vector<2x8xf32>
    %106 = vector.shape_cast %105 : vector<2x8xf32> to vector<2x8x1xf32>
    %cst_68 = arith.constant 0.000000e+00 : f32
    %107 = vector.broadcast %cst_68 : f32 to vector<2x8x1xf32>
    %108 = arith.maximumf %106, %107 : vector<2x8x1xf32>
    %109 = vector.broadcast %108 : vector<2x8x1xf32> to vector<2x8x16xf32>
    %110 = arith.subf %104, %109 : vector<2x8x16xf32>
    %111 = math.exp %110 : vector<2x8x16xf32>
    %cst_69 = arith.constant 0.000000e+00 : f32
    %112 = vector.broadcast %cst_69 : f32 to vector<2x8x1xf32>
    %113 = arith.subf %112, %108 : vector<2x8x1xf32>
    %114 = math.exp %113 : vector<2x8x1xf32>
    %cst_70 = arith.constant dense<0.000000e+00> : vector<2x8xf32>
    %115 = vector.multi_reduction <add>, %111, %cst_70 [2] : vector<2x8x16xf32> to vector<2x8xf32>
    %116 = vector.shape_cast %115 : vector<2x8xf32> to vector<2x8x1xf32>
    %117 = arith.addf %114, %116 : vector<2x8x1xf32>
    %118 = vector.broadcast %117 : vector<2x8x1xf32> to vector<2x8x16xf32>
    %119 = arith.divf %111, %118 : vector<2x8x16xf32>
    "tpu.trace_start"() <{level = 10 : i32, message = "bnm,bmd->bnd"}> : () -> ()
    %cst_71 = arith.constant dense<0.000000e+00> : vector<2x8x8xf32>
    %120 = tpu.matmul %119, %103, %cst_71 {dimension_numbers = #tpu.dot_dimension_numbers<[2], [1], [1], [2], [0, 0, 0, 1, 1, 2], [0], [0]>} : vector<2x8x16xf32>, vector<2x16x8xf32>, vector<2x8x8xf32> -> vector<2x8x8xf32>
    "tpu.trace_stop"() : () -> ()
    %121 = vector.shape_cast %120 : vector<2x8x8xf32> to vector<16x8xf32>
    %c0_72 = arith.constant 0 : index
    %c1_73 = arith.constant 1 : index
    %c0_74 = arith.constant 0 : index
    %c0_75 = arith.constant 0 : index
    %122 = vector.load %arg10[%c0_72, %c1_73, %c0_74, %c0_75] : memref<1x2x8x32xf32, #tpu.memory_space<vmem>>, vector<1x1x8x32xf32>
    %123 = vector.shape_cast %122 : vector<1x1x8x32xf32> to vector<8x32xf32>
    %cst_76 = arith.constant dense<0.000000e+00> : vector<16x32xf32>
    %124 = tpu.matmul %121, %123, %cst_76 {dimension_numbers = #tpu.dot_dimension_numbers<[1], [0], [0], [1], [0, 0, 1, 1], [], []>} : vector<16x8xf32>, vector<8x32xf32>, vector<16x32xf32> -> vector<16x32xf32>
    %125 = arith.addf %91, %124 : vector<16x32xf32>
    %c0_77 = arith.constant 0 : index
    %c0_78 = arith.constant 0 : index
    %c0_79 = arith.constant 0 : index
    %126 = vector.load %arg11[%c0_77, %c0_78, %c0_79] : memref<1x1x32xf32, #tpu.memory_space<vmem>>, vector<1x1x32xf32>
    %127 = vector.shape_cast %126 : vector<1x1x32xf32> to vector<1x32xf32>
    %128 = vector.broadcast %127 : vector<1x32xf32> to vector<16x32xf32>
    %129 = arith.addf %125, %128 : vector<16x32xf32>
    %c0_80 = arith.constant 0 : index
    %c0_81 = arith.constant 0 : index
    %c0_82 = arith.constant 0 : index
    %130 = vector.load %arg12[%c0_80, %c0_81, %c0_82] : memref<1x1x32xf32, #tpu.memory_space<vmem>>, vector<1x1x32xf32>
    %131 = vector.shape_cast %130 : vector<1x1x32xf32> to vector<1x32xf32>
    %c0_83 = arith.constant 0 : index
    %c0_84 = arith.constant 0 : index
    %c0_85 = arith.constant 0 : index
    %132 = vector.load %arg13[%c0_83, %c0_84, %c0_85] : memref<1x1x32xf32, #tpu.memory_space<vmem>>, vector<1x1x32xf32>
    %133 = vector.shape_cast %132 : vector<1x1x32xf32> to vector<1x32xf32>
    %cst_86 = arith.constant dense<0.000000e+00> : vector<32xf32>
    %134 = vector.multi_reduction <add>, %4, %cst_86 [1] : vector<32x32xf32> to vector<32xf32>
    %135 = vector.shape_cast %134 : vector<32xf32> to vector<32x1xf32>
    %cst_87 = arith.constant 3.200000e+01 : f32
    %136 = vector.broadcast %cst_87 : f32 to vector<32x1xf32>
    %137 = arith.divf %135, %136 : vector<32x1xf32>
    %138 = vector.broadcast %137 : vector<32x1xf32> to vector<32x32xf32>
    %139 = arith.subf %4, %138 : vector<32x32xf32>
    %140 = arith.mulf %139, %139 : vector<32x32xf32>
    %cst_88 = arith.constant dense<0.000000e+00> : vector<32xf32>
    %141 = vector.multi_reduction <add>, %140, %cst_88 [1] : vector<32x32xf32> to vector<32xf32>
    %142 = vector.shape_cast %141 : vector<32xf32> to vector<32x1xf32>
    %cst_89 = arith.constant 3.200000e+01 : f32
    %143 = vector.broadcast %cst_89 : f32 to vector<32x1xf32>
    %144 = arith.divf %142, %143 : vector<32x1xf32>
    %145 = vector.broadcast %137 : vector<32x1xf32> to vector<32x32xf32>
    %146 = arith.subf %4, %145 : vector<32x32xf32>
    %cst_90 = arith.constant 9.99999974E-6 : f32
    %147 = vector.broadcast %cst_90 : f32 to vector<32x1xf32>
    %148 = arith.addf %144, %147 : vector<32x1xf32>
    %149 = math.rsqrt %148 : vector<32x1xf32>
    %150 = vector.broadcast %149 : vector<32x1xf32> to vector<32x32xf32>
    %151 = arith.mulf %146, %150 : vector<32x32xf32>
    %152 = vector.broadcast %131 : vector<1x32xf32> to vector<32x32xf32>
    %153 = arith.mulf %151, %152 : vector<32x32xf32>
    %154 = vector.broadcast %133 : vector<1x32xf32> to vector<32x32xf32>
    %155 = arith.addf %153, %154 : vector<32x32xf32>
    %c0_91 = arith.constant 0 : index
    %c0_92 = arith.constant 0 : index
    %c0_93 = arith.constant 0 : index
    %156 = vector.load %arg14[%c0_91, %c0_92, %c0_93] : memref<1x1x32xf32, #tpu.memory_space<vmem>>, vector<1x1x32xf32>
    %157 = vector.shape_cast %156 : vector<1x1x32xf32> to vector<1x32xf32>
    %c0_94 = arith.constant 0 : index
    %c0_95 = arith.constant 0 : index
    %c0_96 = arith.constant 0 : index
    %158 = vector.load %arg15[%c0_94, %c0_95, %c0_96] : memref<1x1x32xf32, #tpu.memory_space<vmem>>, vector<1x1x32xf32>
    %159 = vector.shape_cast %158 : vector<1x1x32xf32> to vector<1x32xf32>
    %cst_97 = arith.constant dense<0.000000e+00> : vector<16xf32>
    %160 = vector.multi_reduction <add>, %3, %cst_97 [1] : vector<16x32xf32> to vector<16xf32>
    %161 = vector.shape_cast %160 : vector<16xf32> to vector<16x1xf32>
    %cst_98 = arith.constant 3.200000e+01 : f32
    %162 = vector.broadcast %cst_98 : f32 to vector<16x1xf32>
    %163 = arith.divf %161, %162 : vector<16x1xf32>
    %164 = vector.broadcast %163 : vector<16x1xf32> to vector<16x32xf32>
    %165 = arith.subf %3, %164 : vector<16x32xf32>
    %166 = arith.mulf %165, %165 : vector<16x32xf32>
    %cst_99 = arith.constant dense<0.000000e+00> : vector<16xf32>
    %167 = vector.multi_reduction <add>, %166, %cst_99 [1] : vector<16x32xf32> to vector<16xf32>
    %168 = vector.shape_cast %167 : vector<16xf32> to vector<16x1xf32>
    %cst_100 = arith.constant 3.200000e+01 : f32
    %169 = vector.broadcast %cst_100 : f32 to vector<16x1xf32>
    %170 = arith.divf %168, %169 : vector<16x1xf32>
    %171 = vector.broadcast %163 : vector<16x1xf32> to vector<16x32xf32>
    %172 = arith.subf %3, %171 : vector<16x32xf32>
    %cst_101 = arith.constant 9.99999974E-6 : f32
    %173 = vector.broadcast %cst_101 : f32 to vector<16x1xf32>
    %174 = arith.addf %170, %173 : vector<16x1xf32>
    %175 = math.rsqrt %174 : vector<16x1xf32>
    %176 = vector.broadcast %175 : vector<16x1xf32> to vector<16x32xf32>
    %177 = arith.mulf %172, %176 : vector<16x32xf32>
    %178 = vector.broadcast %157 : vector<1x32xf32> to vector<16x32xf32>
    %179 = arith.mulf %177, %178 : vector<16x32xf32>
    %180 = vector.broadcast %159 : vector<1x32xf32> to vector<16x32xf32>
    %181 = arith.addf %179, %180 : vector<16x32xf32>
    %cst_102 = arith.constant 0.000000e+00 : f32
    %182 = vector.broadcast %cst_102 : f32 to vector<32x32xf32>
    %c0_103 = arith.constant 0 : index
    %c0_104 = arith.constant 0 : index
    %c0_105 = arith.constant 0 : index
    %c0_106 = arith.constant 0 : index
    %183 = vector.load %arg16[%c0_103, %c0_104, %c0_105, %c0_106] : memref<1x2x32x8xf32, #tpu.memory_space<vmem>>, vector<1x1x32x8xf32>
    %184 = vector.shape_cast %183 : vector<1x1x32x8xf32> to vector<32x8xf32>
    %cst_107 = arith.constant dense<0.000000e+00> : vector<32x8xf32>
    %185 = tpu.matmul %155, %184, %cst_107 {dimension_numbers = #tpu.dot_dimension_numbers<[1], [0], [0], [1], [0, 0, 1, 1], [], []>} : vector<32x32xf32>, vector<32x8xf32>, vector<32x8xf32> -> vector<32x8xf32>
    %c0_108 = arith.constant 0 : index
    %c0_109 = arith.constant 0 : index
    %c0_110 = arith.constant 0 : index
    %c0_111 = arith.constant 0 : index
    %186 = vector.load %arg17[%c0_108, %c0_109, %c0_110, %c0_111] : memref<1x2x32x8xf32, #tpu.memory_space<vmem>>, vector<1x1x32x8xf32>
    %187 = vector.shape_cast %186 : vector<1x1x32x8xf32> to vector<32x8xf32>
    %cst_112 = arith.constant dense<0.000000e+00> : vector<16x8xf32>
    %188 = tpu.matmul %181, %187, %cst_112 {dimension_numbers = #tpu.dot_dimension_numbers<[1], [0], [0], [1], [0, 0, 1, 1], [], []>} : vector<16x32xf32>, vector<32x8xf32>, vector<16x8xf32> -> vector<16x8xf32>
    %c0_113 = arith.constant 0 : index
    %c0_114 = arith.constant 0 : index
    %c0_115 = arith.constant 0 : index
    %c0_116 = arith.constant 0 : index
    %189 = vector.load %arg18[%c0_113, %c0_114, %c0_115, %c0_116] : memref<1x2x32x8xf32, #tpu.memory_space<vmem>>, vector<1x1x32x8xf32>
    %190 = vector.shape_cast %189 : vector<1x1x32x8xf32> to vector<32x8xf32>
    %cst_117 = arith.constant dense<0.000000e+00> : vector<16x8xf32>
    %191 = tpu.matmul %181, %190, %cst_117 {dimension_numbers = #tpu.dot_dimension_numbers<[1], [0], [0], [1], [0, 0, 1, 1], [], []>} : vector<16x32xf32>, vector<32x8xf32>, vector<16x8xf32> -> vector<16x8xf32>
    %192 = vector.shape_cast %185 : vector<32x8xf32> to vector<2x16x8xf32>
    %193 = vector.shape_cast %188 : vector<16x8xf32> to vector<2x8x8xf32>
    %194 = vector.shape_cast %191 : vector<16x8xf32> to vector<2x8x8xf32>
    "tpu.trace_start"() <{level = 10 : i32, message = "bnd,bmd->bnm"}> : () -> ()
    %cst_118 = arith.constant dense<0.000000e+00> : vector<2x16x8xf32>
    %195 = tpu.matmul %192, %193, %cst_118 {dimension_numbers = #tpu.dot_dimension_numbers<[2], [2], [1], [1], [0, 0, 0, 1, 1, 1], [0], [0]>} : vector<2x16x8xf32>, vector<2x8x8xf32>, vector<2x16x8xf32> -> vector<2x16x8xf32>
    "tpu.trace_stop"() : () -> ()
    %cst_119 = arith.constant dense<0xFF800000> : vector<2x16xf32>
    %196 = vector.multi_reduction <maximumf>, %195, %cst_119 [2] : vector<2x16x8xf32> to vector<2x16xf32>
    %197 = vector.shape_cast %196 : vector<2x16xf32> to vector<2x16x1xf32>
    %cst_120 = arith.constant 0.000000e+00 : f32
    %198 = vector.broadcast %cst_120 : f32 to vector<2x16x1xf32>
    %199 = arith.maximumf %197, %198 : vector<2x16x1xf32>
    %200 = vector.broadcast %199 : vector<2x16x1xf32> to vector<2x16x8xf32>
    %201 = arith.subf %195, %200 : vector<2x16x8xf32>
    %202 = math.exp %201 : vector<2x16x8xf32>
    %cst_121 = arith.constant 0.000000e+00 : f32
    %203 = vector.broadcast %cst_121 : f32 to vector<2x16x1xf32>
    %204 = arith.subf %203, %199 : vector<2x16x1xf32>
    %205 = math.exp %204 : vector<2x16x1xf32>
    %cst_122 = arith.constant dense<0.000000e+00> : vector<2x16xf32>
    %206 = vector.multi_reduction <add>, %202, %cst_122 [2] : vector<2x16x8xf32> to vector<2x16xf32>
    %207 = vector.shape_cast %206 : vector<2x16xf32> to vector<2x16x1xf32>
    %208 = arith.addf %205, %207 : vector<2x16x1xf32>
    %209 = vector.broadcast %208 : vector<2x16x1xf32> to vector<2x16x8xf32>
    %210 = arith.divf %202, %209 : vector<2x16x8xf32>
    "tpu.trace_start"() <{level = 10 : i32, message = "bnm,bmd->bnd"}> : () -> ()
    %cst_123 = arith.constant dense<0.000000e+00> : vector<2x16x8xf32>
    %211 = tpu.matmul %210, %194, %cst_123 {dimension_numbers = #tpu.dot_dimension_numbers<[2], [1], [1], [2], [0, 0, 0, 1, 1, 2], [0], [0]>} : vector<2x16x8xf32>, vector<2x8x8xf32>, vector<2x16x8xf32> -> vector<2x16x8xf32>
    "tpu.trace_stop"() : () -> ()
    %212 = vector.shape_cast %211 : vector<2x16x8xf32> to vector<32x8xf32>
    %c0_124 = arith.constant 0 : index
    %c0_125 = arith.constant 0 : index
    %c0_126 = arith.constant 0 : index
    %c0_127 = arith.constant 0 : index
    %213 = vector.load %arg19[%c0_124, %c0_125, %c0_126, %c0_127] : memref<1x2x8x32xf32, #tpu.memory_space<vmem>>, vector<1x1x8x32xf32>
    %214 = vector.shape_cast %213 : vector<1x1x8x32xf32> to vector<8x32xf32>
    %cst_128 = arith.constant dense<0.000000e+00> : vector<32x32xf32>
    %215 = tpu.matmul %212, %214, %cst_128 {dimension_numbers = #tpu.dot_dimension_numbers<[1], [0], [0], [1], [0, 0, 1, 1], [], []>} : vector<32x8xf32>, vector<8x32xf32>, vector<32x32xf32> -> vector<32x32xf32>
    %216 = arith.addf %182, %215 : vector<32x32xf32>
    %c0_129 = arith.constant 0 : index
    %c1_130 = arith.constant 1 : index
    %c0_131 = arith.constant 0 : index
    %c0_132 = arith.constant 0 : index
    %217 = vector.load %arg16[%c0_129, %c1_130, %c0_131, %c0_132] : memref<1x2x32x8xf32, #tpu.memory_space<vmem>>, vector<1x1x32x8xf32>
    %218 = vector.shape_cast %217 : vector<1x1x32x8xf32> to vector<32x8xf32>
    %cst_133 = arith.constant dense<0.000000e+00> : vector<32x8xf32>
    %219 = tpu.matmul %155, %218, %cst_133 {dimension_numbers = #tpu.dot_dimension_numbers<[1], [0], [0], [1], [0, 0, 1, 1], [], []>} : vector<32x32xf32>, vector<32x8xf32>, vector<32x8xf32> -> vector<32x8xf32>
    %c0_134 = arith.constant 0 : index
    %c1_135 = arith.constant 1 : index
    %c0_136 = arith.constant 0 : index
    %c0_137 = arith.constant 0 : index
    %220 = vector.load %arg17[%c0_134, %c1_135, %c0_136, %c0_137] : memref<1x2x32x8xf32, #tpu.memory_space<vmem>>, vector<1x1x32x8xf32>
    %221 = vector.shape_cast %220 : vector<1x1x32x8xf32> to vector<32x8xf32>
    %cst_138 = arith.constant dense<0.000000e+00> : vector<16x8xf32>
    %222 = tpu.matmul %181, %221, %cst_138 {dimension_numbers = #tpu.dot_dimension_numbers<[1], [0], [0], [1], [0, 0, 1, 1], [], []>} : vector<16x32xf32>, vector<32x8xf32>, vector<16x8xf32> -> vector<16x8xf32>
    %c0_139 = arith.constant 0 : index
    %c1_140 = arith.constant 1 : index
    %c0_141 = arith.constant 0 : index
    %c0_142 = arith.constant 0 : index
    %223 = vector.load %arg18[%c0_139, %c1_140, %c0_141, %c0_142] : memref<1x2x32x8xf32, #tpu.memory_space<vmem>>, vector<1x1x32x8xf32>
    %224 = vector.shape_cast %223 : vector<1x1x32x8xf32> to vector<32x8xf32>
    %cst_143 = arith.constant dense<0.000000e+00> : vector<16x8xf32>
    %225 = tpu.matmul %181, %224, %cst_143 {dimension_numbers = #tpu.dot_dimension_numbers<[1], [0], [0], [1], [0, 0, 1, 1], [], []>} : vector<16x32xf32>, vector<32x8xf32>, vector<16x8xf32> -> vector<16x8xf32>
    %226 = vector.shape_cast %219 : vector<32x8xf32> to vector<2x16x8xf32>
    %227 = vector.shape_cast %222 : vector<16x8xf32> to vector<2x8x8xf32>
    %228 = vector.shape_cast %225 : vector<16x8xf32> to vector<2x8x8xf32>
    "tpu.trace_start"() <{level = 10 : i32, message = "bnd,bmd->bnm"}> : () -> ()
    %cst_144 = arith.constant dense<0.000000e+00> : vector<2x16x8xf32>
    %229 = tpu.matmul %226, %227, %cst_144 {dimension_numbers = #tpu.dot_dimension_numbers<[2], [2], [1], [1], [0, 0, 0, 1, 1, 1], [0], [0]>} : vector<2x16x8xf32>, vector<2x8x8xf32>, vector<2x16x8xf32> -> vector<2x16x8xf32>
    "tpu.trace_stop"() : () -> ()
    %cst_145 = arith.constant dense<0xFF800000> : vector<2x16xf32>
    %230 = vector.multi_reduction <maximumf>, %229, %cst_145 [2] : vector<2x16x8xf32> to vector<2x16xf32>
    %231 = vector.shape_cast %230 : vector<2x16xf32> to vector<2x16x1xf32>
    %cst_146 = arith.constant 0.000000e+00 : f32
    %232 = vector.broadcast %cst_146 : f32 to vector<2x16x1xf32>
    %233 = arith.maximumf %231, %232 : vector<2x16x1xf32>
    %234 = vector.broadcast %233 : vector<2x16x1xf32> to vector<2x16x8xf32>
    %235 = arith.subf %229, %234 : vector<2x16x8xf32>
    %236 = math.exp %235 : vector<2x16x8xf32>
    %cst_147 = arith.constant 0.000000e+00 : f32
    %237 = vector.broadcast %cst_147 : f32 to vector<2x16x1xf32>
    %238 = arith.subf %237, %233 : vector<2x16x1xf32>
    %239 = math.exp %238 : vector<2x16x1xf32>
    %cst_148 = arith.constant dense<0.000000e+00> : vector<2x16xf32>
    %240 = vector.multi_reduction <add>, %236, %cst_148 [2] : vector<2x16x8xf32> to vector<2x16xf32>
    %241 = vector.shape_cast %240 : vector<2x16xf32> to vector<2x16x1xf32>
    %242 = arith.addf %239, %241 : vector<2x16x1xf32>
    %243 = vector.broadcast %242 : vector<2x16x1xf32> to vector<2x16x8xf32>
    %244 = arith.divf %236, %243 : vector<2x16x8xf32>
    "tpu.trace_start"() <{level = 10 : i32, message = "bnm,bmd->bnd"}> : () -> ()
    %cst_149 = arith.constant dense<0.000000e+00> : vector<2x16x8xf32>
    %245 = tpu.matmul %244, %228, %cst_149 {dimension_numbers = #tpu.dot_dimension_numbers<[2], [1], [1], [2], [0, 0, 0, 1, 1, 2], [0], [0]>} : vector<2x16x8xf32>, vector<2x8x8xf32>, vector<2x16x8xf32> -> vector<2x16x8xf32>
    "tpu.trace_stop"() : () -> ()
    %246 = vector.shape_cast %245 : vector<2x16x8xf32> to vector<32x8xf32>
    %c0_150 = arith.constant 0 : index
    %c1_151 = arith.constant 1 : index
    %c0_152 = arith.constant 0 : index
    %c0_153 = arith.constant 0 : index
    %247 = vector.load %arg19[%c0_150, %c1_151, %c0_152, %c0_153] : memref<1x2x8x32xf32, #tpu.memory_space<vmem>>, vector<1x1x8x32xf32>
    %248 = vector.shape_cast %247 : vector<1x1x8x32xf32> to vector<8x32xf32>
    %cst_154 = arith.constant dense<0.000000e+00> : vector<32x32xf32>
    %249 = tpu.matmul %246, %248, %cst_154 {dimension_numbers = #tpu.dot_dimension_numbers<[1], [0], [0], [1], [0, 0, 1, 1], [], []>} : vector<32x8xf32>, vector<8x32xf32>, vector<32x32xf32> -> vector<32x32xf32>
    %250 = arith.addf %216, %249 : vector<32x32xf32>
    %c0_155 = arith.constant 0 : index
    %c0_156 = arith.constant 0 : index
    %c0_157 = arith.constant 0 : index
    %251 = vector.load %arg20[%c0_155, %c0_156, %c0_157] : memref<1x1x32xf32, #tpu.memory_space<vmem>>, vector<1x1x32xf32>
    %252 = vector.shape_cast %251 : vector<1x1x32xf32> to vector<1x32xf32>
    %253 = vector.broadcast %252 : vector<1x32xf32> to vector<32x32xf32>
    %254 = arith.addf %250, %253 : vector<32x32xf32>
    %255 = arith.addf %3, %129 : vector<16x32xf32>
    %256 = arith.addf %4, %254 : vector<32x32xf32>
    %c0_158 = arith.constant 0 : index
    %c0_159 = arith.constant 0 : index
    %c0_160 = arith.constant 0 : index
    %257 = vector.load %arg21[%c0_158, %c0_159, %c0_160] : memref<1x1x32xf32, #tpu.memory_space<vmem>>, vector<1x1x32xf32>
    %258 = vector.shape_cast %257 : vector<1x1x32xf32> to vector<1x32xf32>
    %c0_161 = arith.constant 0 : index
    %c0_162 = arith.constant 0 : index
    %c0_163 = arith.constant 0 : index
    %259 = vector.load %arg22[%c0_161, %c0_162, %c0_163] : memref<1x1x32xf32, #tpu.memory_space<vmem>>, vector<1x1x32xf32>
    %260 = vector.shape_cast %259 : vector<1x1x32xf32> to vector<1x32xf32>
    %cst_164 = arith.constant dense<0.000000e+00> : vector<16xf32>
    %261 = vector.multi_reduction <add>, %255, %cst_164 [1] : vector<16x32xf32> to vector<16xf32>
    %262 = vector.shape_cast %261 : vector<16xf32> to vector<16x1xf32>
    %cst_165 = arith.constant 3.200000e+01 : f32
    %263 = vector.broadcast %cst_165 : f32 to vector<16x1xf32>
    %264 = arith.divf %262, %263 : vector<16x1xf32>
    %265 = vector.broadcast %264 : vector<16x1xf32> to vector<16x32xf32>
    %266 = arith.subf %255, %265 : vector<16x32xf32>
    %267 = arith.mulf %266, %266 : vector<16x32xf32>
    %cst_166 = arith.constant dense<0.000000e+00> : vector<16xf32>
    %268 = vector.multi_reduction <add>, %267, %cst_166 [1] : vector<16x32xf32> to vector<16xf32>
    %269 = vector.shape_cast %268 : vector<16xf32> to vector<16x1xf32>
    %cst_167 = arith.constant 3.200000e+01 : f32
    %270 = vector.broadcast %cst_167 : f32 to vector<16x1xf32>
    %271 = arith.divf %269, %270 : vector<16x1xf32>
    %272 = vector.broadcast %264 : vector<16x1xf32> to vector<16x32xf32>
    %273 = arith.subf %255, %272 : vector<16x32xf32>
    %cst_168 = arith.constant 9.99999974E-6 : f32
    %274 = vector.broadcast %cst_168 : f32 to vector<16x1xf32>
    %275 = arith.addf %271, %274 : vector<16x1xf32>
    %276 = math.rsqrt %275 : vector<16x1xf32>
    %277 = vector.broadcast %276 : vector<16x1xf32> to vector<16x32xf32>
    %278 = arith.mulf %273, %277 : vector<16x32xf32>
    %279 = vector.broadcast %258 : vector<1x32xf32> to vector<16x32xf32>
    %280 = arith.mulf %278, %279 : vector<16x32xf32>
    %281 = vector.broadcast %260 : vector<1x32xf32> to vector<16x32xf32>
    %282 = arith.addf %280, %281 : vector<16x32xf32>
    %c0_169 = arith.constant 0 : index
    %c0_170 = arith.constant 0 : index
    %c0_171 = arith.constant 0 : index
    %283 = vector.load %arg23[%c0_169, %c0_170, %c0_171] : memref<1x32x64xf32, #tpu.memory_space<vmem>>, vector<1x32x64xf32>
    %284 = vector.shape_cast %283 : vector<1x32x64xf32> to vector<32x64xf32>
    %cst_172 = arith.constant dense<0.000000e+00> : vector<16x64xf32>
    %285 = tpu.matmul %282, %284, %cst_172 {dimension_numbers = #tpu.dot_dimension_numbers<[1], [0], [0], [1], [0, 0, 1, 1], [], []>} : vector<16x32xf32>, vector<32x64xf32>, vector<16x64xf32> -> vector<16x64xf32>
    %c0_173 = arith.constant 0 : index
    %c0_174 = arith.constant 0 : index
    %c0_175 = arith.constant 0 : index
    %286 = vector.load %arg24[%c0_173, %c0_174, %c0_175] : memref<1x1x64xf32, #tpu.memory_space<vmem>>, vector<1x1x64xf32>
    %287 = vector.shape_cast %286 : vector<1x1x64xf32> to vector<1x64xf32>
    %288 = vector.broadcast %287 : vector<1x64xf32> to vector<16x64xf32>
    %289 = arith.addf %285, %288 : vector<16x64xf32>
    %cst_176 = arith.constant 0.000000e+00 : f32
    %290 = vector.broadcast %cst_176 : f32 to vector<16x64xf32>
    %291 = arith.maximumf %289, %290 : vector<16x64xf32>
    %c0_177 = arith.constant 0 : index
    %c0_178 = arith.constant 0 : index
    %c0_179 = arith.constant 0 : index
    %292 = vector.load %arg25[%c0_177, %c0_178, %c0_179] : memref<1x64x32xf32, #tpu.memory_space<vmem>>, vector<1x64x32xf32>
    %293 = vector.shape_cast %292 : vector<1x64x32xf32> to vector<64x32xf32>
    %cst_180 = arith.constant dense<0.000000e+00> : vector<16x32xf32>
    %294 = tpu.matmul %291, %293, %cst_180 {dimension_numbers = #tpu.dot_dimension_numbers<[1], [0], [0], [1], [0, 0, 1, 1], [], []>} : vector<16x64xf32>, vector<64x32xf32>, vector<16x32xf32> -> vector<16x32xf32>
    %c0_181 = arith.constant 0 : index
    %c0_182 = arith.constant 0 : index
    %c0_183 = arith.constant 0 : index
    %295 = vector.load %arg26[%c0_181, %c0_182, %c0_183] : memref<1x1x32xf32, #tpu.memory_space<vmem>>, vector<1x1x32xf32>
    %296 = vector.shape_cast %295 : vector<1x1x32xf32> to vector<1x32xf32>
    %297 = vector.broadcast %296 : vector<1x32xf32> to vector<16x32xf32>
    %298 = arith.addf %294, %297 : vector<16x32xf32>
    %299 = arith.addf %255, %298 : vector<16x32xf32>
    %c0_184 = arith.constant 0 : index
    %c0_185 = arith.constant 0 : index
    %c0_186 = arith.constant 0 : index
    %300 = vector.load %arg27[%c0_184, %c0_185, %c0_186] : memref<1x1x32xf32, #tpu.memory_space<vmem>>, vector<1x1x32xf32>
    %301 = vector.shape_cast %300 : vector<1x1x32xf32> to vector<1x32xf32>
    %c0_187 = arith.constant 0 : index
    %c0_188 = arith.constant 0 : index
    %c0_189 = arith.constant 0 : index
    %302 = vector.load %arg28[%c0_187, %c0_188, %c0_189] : memref<1x1x32xf32, #tpu.memory_space<vmem>>, vector<1x1x32xf32>
    %303 = vector.shape_cast %302 : vector<1x1x32xf32> to vector<1x32xf32>
    %cst_190 = arith.constant dense<0.000000e+00> : vector<32xf32>
    %304 = vector.multi_reduction <add>, %256, %cst_190 [1] : vector<32x32xf32> to vector<32xf32>
    %305 = vector.shape_cast %304 : vector<32xf32> to vector<32x1xf32>
    %cst_191 = arith.constant 3.200000e+01 : f32
    %306 = vector.broadcast %cst_191 : f32 to vector<32x1xf32>
    %307 = arith.divf %305, %306 : vector<32x1xf32>
    %308 = vector.broadcast %307 : vector<32x1xf32> to vector<32x32xf32>
    %309 = arith.subf %256, %308 : vector<32x32xf32>
    %310 = arith.mulf %309, %309 : vector<32x32xf32>
    %cst_192 = arith.constant dense<0.000000e+00> : vector<32xf32>
    %311 = vector.multi_reduction <add>, %310, %cst_192 [1] : vector<32x32xf32> to vector<32xf32>
    %312 = vector.shape_cast %311 : vector<32xf32> to vector<32x1xf32>
    %cst_193 = arith.constant 3.200000e+01 : f32
    %313 = vector.broadcast %cst_193 : f32 to vector<32x1xf32>
    %314 = arith.divf %312, %313 : vector<32x1xf32>
    %315 = vector.broadcast %307 : vector<32x1xf32> to vector<32x32xf32>
    %316 = arith.subf %256, %315 : vector<32x32xf32>
    %cst_194 = arith.constant 9.99999974E-6 : f32
    %317 = vector.broadcast %cst_194 : f32 to vector<32x1xf32>
    %318 = arith.addf %314, %317 : vector<32x1xf32>
    %319 = math.rsqrt %318 : vector<32x1xf32>
    %320 = vector.broadcast %319 : vector<32x1xf32> to vector<32x32xf32>
    %321 = arith.mulf %316, %320 : vector<32x32xf32>
    %322 = vector.broadcast %301 : vector<1x32xf32> to vector<32x32xf32>
    %323 = arith.mulf %321, %322 : vector<32x32xf32>
    %324 = vector.broadcast %303 : vector<1x32xf32> to vector<32x32xf32>
    %325 = arith.addf %323, %324 : vector<32x32xf32>
    %c0_195 = arith.constant 0 : index
    %c0_196 = arith.constant 0 : index
    %c0_197 = arith.constant 0 : index
    %326 = vector.load %arg29[%c0_195, %c0_196, %c0_197] : memref<1x32x64xf32, #tpu.memory_space<vmem>>, vector<1x32x64xf32>
    %327 = vector.shape_cast %326 : vector<1x32x64xf32> to vector<32x64xf32>
    %cst_198 = arith.constant dense<0.000000e+00> : vector<32x64xf32>
    %328 = tpu.matmul %325, %327, %cst_198 {dimension_numbers = #tpu.dot_dimension_numbers<[1], [0], [0], [1], [0, 0, 1, 1], [], []>} : vector<32x32xf32>, vector<32x64xf32>, vector<32x64xf32> -> vector<32x64xf32>
    %c0_199 = arith.constant 0 : index
    %c0_200 = arith.constant 0 : index
    %c0_201 = arith.constant 0 : index
    %329 = vector.load %arg30[%c0_199, %c0_200, %c0_201] : memref<1x1x64xf32, #tpu.memory_space<vmem>>, vector<1x1x64xf32>
    %330 = vector.shape_cast %329 : vector<1x1x64xf32> to vector<1x64xf32>
    %331 = vector.broadcast %330 : vector<1x64xf32> to vector<32x64xf32>
    %332 = arith.addf %328, %331 : vector<32x64xf32>
    %cst_202 = arith.constant 0.000000e+00 : f32
    %333 = vector.broadcast %cst_202 : f32 to vector<32x64xf32>
    %334 = arith.maximumf %332, %333 : vector<32x64xf32>
    %c0_203 = arith.constant 0 : index
    %c0_204 = arith.constant 0 : index
    %c0_205 = arith.constant 0 : index
    %335 = vector.load %arg31[%c0_203, %c0_204, %c0_205] : memref<1x64x32xf32, #tpu.memory_space<vmem>>, vector<1x64x32xf32>
    %336 = vector.shape_cast %335 : vector<1x64x32xf32> to vector<64x32xf32>
    %cst_206 = arith.constant dense<0.000000e+00> : vector<32x32xf32>
    %337 = tpu.matmul %334, %336, %cst_206 {dimension_numbers = #tpu.dot_dimension_numbers<[1], [0], [0], [1], [0, 0, 1, 1], [], []>} : vector<32x64xf32>, vector<64x32xf32>, vector<32x32xf32> -> vector<32x32xf32>
    %c0_207 = arith.constant 0 : index
    %c0_208 = arith.constant 0 : index
    %c0_209 = arith.constant 0 : index
    %338 = vector.load %arg32[%c0_207, %c0_208, %c0_209] : memref<1x1x32xf32, #tpu.memory_space<vmem>>, vector<1x1x32xf32>
    %339 = vector.shape_cast %338 : vector<1x1x32xf32> to vector<1x32xf32>
    %340 = vector.broadcast %339 : vector<1x32xf32> to vector<32x32xf32>
    %341 = arith.addf %337, %340 : vector<32x32xf32>
    %342 = arith.addf %256, %341 : vector<32x32xf32>
    %c0_210 = arith.constant 0 : index
    %c0_211 = arith.constant 0 : index
    %343 = vector.load %arg35[%c0_210, %c0_211] : memref<16x32xf32, #tpu.memory_space<vmem>>, vector<16x32xf32>
    tpu.vector_store %arg35[%c0_210, %c0_211], %299 {strides = array<i32>} : memref<16x32xf32, #tpu.memory_space<vmem>>, vector<16x32xf32>,
    %c0_212 = arith.constant 0 : index
    %c0_213 = arith.constant 0 : index
    %344 = vector.load %arg36[%c0_212, %c0_213] : memref<32x32xf32, #tpu.memory_space<vmem>>, vector<32x32xf32>
    tpu.vector_store %arg36[%c0_212, %c0_213], %342 {strides = array<i32>} : memref<32x32xf32, #tpu.memory_space<vmem>>, vector<32x32xf32>,
    %c1_i32 = arith.constant 1 : i32
    %345 = arith.cmpi eq, %arg0, %c1_i32 : i32
    %346 = arith.extui %345 : i1 to i32
    %c0_i32_214 = arith.constant 0 : i32
    %347 = arith.cmpi ne, %346, %c0_i32_214 : i32
    scf.if %347 {
      %c0_215 = arith.constant 0 : index
      %c0_216 = arith.constant 0 : index
      %348 = vector.load %arg33[%c0_215, %c0_216] : memref<16x32xf32, #tpu.memory_space<vmem>>, vector<16x32xf32>
      tpu.vector_store %arg33[%c0_215, %c0_216], %299 {strides = array<i32>} : memref<16x32xf32, #tpu.memory_space<vmem>>, vector<16x32xf32>,
      %c0_217 = arith.constant 0 : index
      %c0_218 = arith.constant 0 : index
      %349 = vector.load %arg34[%c0_217, %c0_218] : memref<32x32xf32, #tpu.memory_space<vmem>>, vector<32x32xf32>
      tpu.vector_store %arg34[%c0_217, %c0_218], %342 {strides = array<i32>} : memref<32x32xf32, #tpu.memory_space<vmem>>, vector<32x32xf32>,
    } else {
    }
    return
  }
  func.func @transform_0(%arg0: i32) -> (i32, i32) {
    %c0_i32 = arith.constant 0 : i32
    %c0_i32_0 = arith.constant 0 : i32
    %c0_i32_1 = arith.constant 0 : i32
    return %c0_i32, %c0_i32_0 : i32, i32
  }
  func.func @transform_1(%arg0: i32) -> (i32, i32) {
    %c0_i32 = arith.constant 0 : i32
    %c0_i32_0 = arith.constant 0 : i32
    %c0_i32_1 = arith.constant 0 : i32
    return %c0_i32, %c0_i32_0 : i32, i32
  }
  func.func @transform_2(%arg0: i32) -> (i32, i32, i32) {
    %c0_i32 = arith.constant 0 : i32
    %c0_i32_0 = arith.constant 0 : i32
    %c0_i32_1 = arith.constant 0 : i32
    return %arg0, %c0_i32, %c0_i32_0 : i32, i32, i32
  }
  func.func @transform_3(%arg0: i32) -> (i32, i32, i32) {
    %c0_i32 = arith.constant 0 : i32
    %c0_i32_0 = arith.constant 0 : i32
    %c0_i32_1 = arith.constant 0 : i32
    return %arg0, %c0_i32, %c0_i32_0 : i32, i32, i32
  }
  func.func @transform_4(%arg0: i32) -> (i32, i32, i32) {
    %c0_i32 = arith.constant 0 : i32
    %c0_i32_0 = arith.constant 0 : i32
    %c0_i32_1 = arith.constant 0 : i32
    return %arg0, %c0_i32, %c0_i32_0 : i32, i32, i32
  }
  func.func @transform_5(%arg0: i32) -> (i32, i32, i32) {
    %c0_i32 = arith.constant 0 : i32
    %c0_i32_0 = arith.constant 0 : i32
    %c0_i32_1 = arith.constant 0 : i32
    return %arg0, %c0_i32, %c0_i32_0 : i32, i32, i32
  }
  func.func @transform_6(%arg0: i32) -> (i32, i32, i32, i32) {
    %c0_i32 = arith.constant 0 : i32
    %c0_i32_0 = arith.constant 0 : i32
    %c0_i32_1 = arith.constant 0 : i32
    %c0_i32_2 = arith.constant 0 : i32
    return %arg0, %c0_i32, %c0_i32_0, %c0_i32_1 : i32, i32, i32, i32
  }
  func.func @transform_7(%arg0: i32) -> (i32, i32, i32, i32) {
    %c0_i32 = arith.constant 0 : i32
    %c0_i32_0 = arith.constant 0 : i32
    %c0_i32_1 = arith.constant 0 : i32
    %c0_i32_2 = arith.constant 0 : i32
    return %arg0, %c0_i32, %c0_i32_0, %c0_i32_1 : i32, i32, i32, i32
  }
  func.func @transform_8(%arg0: i32) -> (i32, i32, i32, i32) {
    %c0_i32 = arith.constant 0 : i32
    %c0_i32_0 = arith.constant 0 : i32
    %c0_i32_1 = arith.constant 0 : i32
    %c0_i32_2 = arith.constant 0 : i32
    return %arg0, %c0_i32, %c0_i32_0, %c0_i32_1 : i32, i32, i32, i32
  }
  func.func @transform_9(%arg0: i32) -> (i32, i32, i32, i32) {
    %c0_i32 = arith.constant 0 : i32
    %c0_i32_0 = arith.constant 0 : i32
    %c0_i32_1 = arith.constant 0 : i32
    %c0_i32_2 = arith.constant 0 : i32
    return %arg0, %c0_i32, %c0_i32_0, %c0_i32_1 : i32, i32, i32, i32
  }
  func.func @transform_10(%arg0: i32) -> (i32, i32, i32) {
    %c0_i32 = arith.constant 0 : i32
    %c0_i32_0 = arith.constant 0 : i32
    %c0_i32_1 = arith.constant 0 : i32
    return %arg0, %c0_i32, %c0_i32_0 : i32, i32, i32
  }
  func.func @transform_11(%arg0: i32) -> (i32, i32, i32) {
    %c0_i32 = arith.constant 0 : i32
    %c0_i32_0 = arith.constant 0 : i32
    %c0_i32_1 = arith.constant 0 : i32
    return %arg0, %c0_i32, %c0_i32_0 : i32, i32, i32
  }
  func.func @transform_12(%arg0: i32) -> (i32, i32, i32) {
    %c0_i32 = arith.constant 0 : i32
    %c0_i32_0 = arith.constant 0 : i32
    %c0_i32_1 = arith.constant 0 : i32
    return %arg0, %c0_i32, %c0_i32_0 : i32, i32, i32
  }
  func.func @transform_13(%arg0: i32) -> (i32, i32, i32) {
    %c0_i32 = arith.constant 0 : i32
    %c0_i32_0 = arith.constant 0 : i32
    %c0_i32_1 = arith.constant 0 : i32
    return %arg0, %c0_i32, %c0_i32_0 : i32, i32, i32
  }
  func.func @transform_14(%arg0: i32) -> (i32, i32, i32) {
    %c0_i32 = arith.constant 0 : i32
    %c0_i32_0 = arith.constant 0 : i32
    %c0_i32_1 = arith.constant 0 : i32
    return %arg0, %c0_i32, %c0_i32_0 : i32, i32, i32
  }
  func.func @transform_15(%arg0: i32) -> (i32, i32, i32, i32) {
    %c0_i32 = arith.constant 0 : i32
    %c0_i32_0 = arith.constant 0 : i32
    %c0_i32_1 = arith.constant 0 : i32
    %c0_i32_2 = arith.constant 0 : i32
    return %arg0, %c0_i32, %c0_i32_0, %c0_i32_1 : i32, i32, i32, i32
  }
  func.func @transform_16(%arg0: i32) -> (i32, i32, i32, i32) {
    %c0_i32 = arith.constant 0 : i32
    %c0_i32_0 = arith.constant 0 : i32
    %c0_i32_1 = arith.constant 0 : i32
    %c0_i32_2 = arith.constant 0 : i32
    return %arg0, %c0_i32, %c0_i32_0, %c0_i32_1 : i32, i32, i32, i32
  }
  func.func @transform_17(%arg0: i32) -> (i32, i32, i32, i32) {
    %c0_i32 = arith.constant 0 : i32
    %c0_i32_0 = arith.constant 0 : i32
    %c0_i32_1 = arith.constant 0 : i32
    %c0_i32_2 = arith.constant 0 : i32
    return %arg0, %c0_i32, %c0_i32_0, %c0_i32_1 : i32, i32, i32, i32
  }
  func.func @transform_18(%arg0: i32) -> (i32, i32, i32, i32) {
    %c0_i32 = arith.constant 0 : i32
    %c0_i32_0 = arith.constant 0 : i32
    %c0_i32_1 = arith.constant 0 : i32
    %c0_i32_2 = arith.constant 0 : i32
    return %arg0, %c0_i32, %c0_i32_0, %c0_i32_1 : i32, i32, i32, i32
  }
  func.func @transform_19(%arg0: i32) -> (i32, i32, i32) {
    %c0_i32 = arith.constant 0 : i32
    %c0_i32_0 = arith.constant 0 : i32
    %c0_i32_1 = arith.constant 0 : i32
    return %arg0, %c0_i32, %c0_i32_0 : i32, i32, i32
  }
  func.func @transform_20(%arg0: i32) -> (i32, i32, i32) {
    %c0_i32 = arith.constant 0 : i32
    %c0_i32_0 = arith.constant 0 : i32
    %c0_i32_1 = arith.constant 0 : i32
    return %arg0, %c0_i32, %c0_i32_0 : i32, i32, i32
  }
  func.func @transform_21(%arg0: i32) -> (i32, i32, i32) {
    %c0_i32 = arith.constant 0 : i32
    %c0_i32_0 = arith.constant 0 : i32
    %c0_i32_1 = arith.constant 0 : i32
    return %arg0, %c0_i32, %c0_i32_0 : i32, i32, i32
  }
  func.func @transform_22(%arg0: i32) -> (i32, i32, i32) {
    %c0_i32 = arith.constant 0 : i32
    %c0_i32_0 = arith.constant 0 : i32
    %c0_i32_1 = arith.constant 0 : i32
    return %arg0, %c0_i32, %c0_i32_0 : i32, i32, i32
  }
  func.func @transform_23(%arg0: i32) -> (i32, i32, i32) {
    %c0_i32 = arith.constant 0 : i32
    %c0_i32_0 = arith.constant 0 : i32
    %c0_i32_1 = arith.constant 0 : i32
    return %arg0, %c0_i32, %c0_i32_0 : i32, i32, i32
  }
  func.func @transform_24(%arg0: i32) -> (i32, i32, i32) {
    %c0_i32 = arith.constant 0 : i32
    %c0_i32_0 = arith.constant 0 : i32
    %c0_i32_1 = arith.constant 0 : i32
    return %arg0, %c0_i32, %c0_i32_0 : i32, i32, i32
  }
  func.func @transform_25(%arg0: i32) -> (i32, i32, i32) {
    %c0_i32 = arith.constant 0 : i32
    %c0_i32_0 = arith.constant 0 : i32
    %c0_i32_1 = arith.constant 0 : i32
    return %arg0, %c0_i32, %c0_i32_0 : i32, i32, i32
  }
  func.func @transform_26(%arg0: i32) -> (i32, i32, i32) {
    %c0_i32 = arith.constant 0 : i32
    %c0_i32_0 = arith.constant 0 : i32
    %c0_i32_1 = arith.constant 0 : i32
    return %arg0, %c0_i32, %c0_i32_0 : i32, i32, i32
  }
  func.func @transform_27(%arg0: i32) -> (i32, i32, i32) {
    %c0_i32 = arith.constant 0 : i32
    %c0_i32_0 = arith.constant 0 : i32
    %c0_i32_1 = arith.constant 0 : i32
    return %arg0, %c0_i32, %c0_i32_0 : i32, i32, i32
  }
  func.func @transform_28(%arg0: i32) -> (i32, i32, i32) {
    %c0_i32 = arith.constant 0 : i32
    %c0_i32_0 = arith.constant 0 : i32
    %c0_i32_1 = arith.constant 0 : i32
    return %arg0, %c0_i32, %c0_i32_0 : i32, i32, i32
  }
  func.func @transform_29(%arg0: i32) -> (i32, i32, i32) {
    %c0_i32 = arith.constant 0 : i32
    %c0_i32_0 = arith.constant 0 : i32
    %c0_i32_1 = arith.constant 0 : i32
    return %arg0, %c0_i32, %c0_i32_0 : i32, i32, i32
  }
  func.func @transform_30(%arg0: i32) -> (i32, i32, i32) {
    %c0_i32 = arith.constant 0 : i32
    %c0_i32_0 = arith.constant 0 : i32
    %c0_i32_1 = arith.constant 0 : i32
    return %arg0, %c0_i32, %c0_i32_0 : i32, i32, i32
  }
  func.func @transform_31(%arg0: i32) -> (i32, i32, i32) {
    %c0_i32 = arith.constant 0 : i32
    %c0_i32_0 = arith.constant 0 : i32
    %c0_i32_1 = arith.constant 0 : i32
    return %arg0, %c0_i32, %c0_i32_0 : i32, i32, i32
  }
  func.func @transform_32(%arg0: i32) -> (i32, i32) {
    %c0_i32 = arith.constant 0 : i32
    %c0_i32_0 = arith.constant 0 : i32
    %c0_i32_1 = arith.constant 0 : i32
    return %c0_i32, %c0_i32_0 : i32, i32
  }
  func.func @transform_33(%arg0: i32) -> (i32, i32) {
    %c0_i32 = arith.constant 0 : i32
    %c0_i32_0 = arith.constant 0 : i32
    %c0_i32_1 = arith.constant 0 : i32
    return %c0_i32, %c0_i32_0 : i32, i32
  }
}

</mosaic_0001>

<llo_original>
// kernel: tpu_custom_call.1
$region0: #{tpu_custom_call.1}
  #allocation0 [shape = 'u32[]', space=smem, size = 0x4, offset = 0x4, fixed_abs, tag = 'smem constant byte address 0x4 - core index']
  #allocation1 [shape = 'u32[144,128]{1,0:T(1,128)}', space=vmem, size = 0x12000, scoped, tag = 'internal scratch']
  #allocation2 [shape = 'f32[16,32]{1,0:T(8,128)}', space=vmem, size = 0x2000, scoped, tag = 'scratch operand']
  #allocation3 [shape = 'f32[32,32]{1,0:T(8,128)}', space=vmem, size = 0x4000, scoped, tag = 'scratch operand']
  %s0 = inlined_call_operand.smem [shape: u32[34], index: -1, kind: input, shape index: {}]
  %s1 = sld [smem:[%s0]]
  %s2 = scalar_lea.smem %s0, 1
  %s3 = sld [smem:[%s2]]
  %s4 = scalar_lea.smem %s0, 2
  %s5 = sld [smem:[%s4]]
  %s6 = scalar_lea.smem %s0, 3
  %s7 = sld [smem:[%s6]]
  %s8 = scalar_lea.smem %s0, 4
  %s9 = sld [smem:[%s8]]
  %s10 = scalar_lea.smem %s0, 5
  %s11 = sld [smem:[%s10]]
  %s12 = scalar_lea.smem %s0, 6
  %s13 = sld [smem:[%s12]]
  %s14 = scalar_lea.smem %s0, 7
  %s15 = sld [smem:[%s14]]
  %s16 = scalar_lea.smem %s0, 8
  %s17 = sld [smem:[%s16]]
  %s18 = scalar_lea.smem %s0, 9
  %s19 = sld [smem:[%s18]]
  %s20 = scalar_lea.smem %s0, 10
  %s21 = sld [smem:[%s20]]
  %s22 = scalar_lea.smem %s0, 11
  %s23 = sld [smem:[%s22]]
  %s24 = scalar_lea.smem %s0, 12
  %s25 = sld [smem:[%s24]]
  %s26 = scalar_lea.smem %s0, 13
  %s27 = sld [smem:[%s26]]
  %s28 = scalar_lea.smem %s0, 14
  %s29 = sld [smem:[%s28]]
  %s30 = scalar_lea.smem %s0, 15
  %s31 = sld [smem:[%s30]]
  %s32 = scalar_lea.smem %s0, 16
  %s33 = sld [smem:[%s32]]
  %s34 = scalar_lea.smem %s0, 17
  %s35 = sld [smem:[%s34]]
  %s36 = scalar_lea.smem %s0, 18
  %s37 = sld [smem:[%s36]]
  %s38 = scalar_lea.smem %s0, 19
  %s39 = sld [smem:[%s38]]
  %s40 = scalar_lea.smem %s0, 20
  %s41 = sld [smem:[%s40]]
  %s42 = scalar_lea.smem %s0, 21
  %s43 = sld [smem:[%s42]]
  %s44 = scalar_lea.smem %s0, 22
  %s45 = sld [smem:[%s44]]
  %s46 = scalar_lea.smem %s0, 23
  %s47 = sld [smem:[%s46]]
  %s48 = scalar_lea.smem %s0, 24
  %s49 = sld [smem:[%s48]]
  %s50 = scalar_lea.smem %s0, 25
  %s51 = sld [smem:[%s50]]
  %s52 = scalar_lea.smem %s0, 26
  %s53 = sld [smem:[%s52]]
  %s54 = scalar_lea.smem %s0, 27
  %s55 = sld [smem:[%s54]]
  %s56 = scalar_lea.smem %s0, 28
  %s57 = sld [smem:[%s56]]
  %s58 = scalar_lea.smem %s0, 29
  %s59 = sld [smem:[%s58]]
  %s60 = scalar_lea.smem %s0, 30
  %s61 = sld [smem:[%s60]]
  %s62 = scalar_lea.smem %s0, 31
  %s63 = sld [smem:[%s62]]
  %s64 = scalar_lea.smem %s0, 32
  %s65 = sld [smem:[%s64]]
  %s66 = scalar_lea.smem %s0, 33
  %s67 = sld [smem:[%s66]]
  %68 = xla_tuple %s65, %s67
  %s69 = sld [smem:[#allocation0]]
  $region177: #{tpu_custom_call.1} parent=0
    _
  %s71 = ssub.s32 1, %s69
  %s72 = scalar_select 0, %s71, %s69
  $region1: #{tpu_custom_call.1} parent=0
    #allocation4 [shape = 'u8[8192]{0}', space=vmem, size = 0x2000, scoped, tag = 'output window, operand 0, single buffered']
    #allocation5 [shape = 's32[2]{0}', space=sflag, size = 0x8, scoped, tag = 'scoped memory for tpu_custom_call.1']
    #allocation6 [shape = 'u8[16384]{0}', space=vmem, size = 0x4000, scoped, tag = 'output window, operand 1, single buffered']
    #allocation7 [shape = 's32[1]{0}', space=sflag, size = 0x4, scoped, tag = 'scoped memory for tpu_custom_call.1']
    %73 = vsyncpa [#allocation5], 0
    %74 = vsyncpa [#allocation7], 0
    loop: start=0, step=1, limit=4
    $region2: #{tpu_custom_call.1} parent=1 // loop_pre_header
      _
    $region3: #{tpu_custom_call.1} parent=1 // loop_header
      %s76 = sphi 0, %s80
      %p77 = scmp.ge.s32.totalorder %s76, 4
      %s84 = sphi 0, %s84
      %s86 = sphi 0, %s84
      %s87 = sphi 0, %s86
      %s101 = sphi 0, %s87
      %s105 = sphi 0, %s105
      %s107 = sphi 0, %s105
      %s108 = sphi 0, %s107
      %s122 = sphi 0, %s108
      %s128 = sphi 0, %s130
      %s131 = sphi 0, %s128
      %s132 = sphi 0, %s131
      %s148 = sphi 0, %s132
      %s154 = sphi 0, %s156
      %s157 = sphi 0, %s154
      %s158 = sphi 0, %s157
      %s174 = sphi 0, %s158
      %s180 = sphi 0, %s182
      %s183 = sphi 0, %s180
      %s184 = sphi 0, %s183
      %s200 = sphi 0, %s184
      %s206 = sphi 0, %s208
      %s209 = sphi 0, %s206
      %s210 = sphi 0, %s209
      %s226 = sphi 0, %s210
      %s232 = sphi 0, %s234
      %s235 = sphi 0, %s232
      %s236 = sphi 0, %s235
      %s252 = sphi 0, %s236
      %s258 = sphi 0, %s260
      %s261 = sphi 0, %s258
      %s262 = sphi 0, %s261
      %s278 = sphi 0, %s262
      %s284 = sphi 0, %s286
      %s287 = sphi 0, %s284
      %s288 = sphi 0, %s287
      %s304 = sphi 0, %s288
      %s310 = sphi 0, %s312
      %s313 = sphi 0, %s310
      %s314 = sphi 0, %s313
      %s330 = sphi 0, %s314
      %s336 = sphi 0, %s338
      %s339 = sphi 0, %s336
      %s340 = sphi 0, %s339
      %s356 = sphi 0, %s340
      %s362 = sphi 0, %s364
      %s365 = sphi 0, %s362
      %s366 = sphi 0, %s365
      %s382 = sphi 0, %s366
      %s388 = sphi 0, %s390
      %s391 = sphi 0, %s388
      %s392 = sphi 0, %s391
      %s408 = sphi 0, %s392
      %s414 = sphi 0, %s416
      %s417 = sphi 0, %s414
      %s418 = sphi 0, %s417
      %s434 = sphi 0, %s418
      %s440 = sphi 0, %s442
      %s443 = sphi 0, %s440
      %s444 = sphi 0, %s443
      %s460 = sphi 0, %s444
      %s466 = sphi 0, %s468
      %s469 = sphi 0, %s466
      %s470 = sphi 0, %s469
      %s486 = sphi 0, %s470
      %s492 = sphi 0, %s494
      %s495 = sphi 0, %s492
      %s496 = sphi 0, %s495
      %s512 = sphi 0, %s496
      %s518 = sphi 0, %s520
      %s521 = sphi 0, %s518
      %s522 = sphi 0, %s521
      %s538 = sphi 0, %s522
      %s544 = sphi 0, %s546
      %s547 = sphi 0, %s544
      %s548 = sphi 0, %s547
      %s564 = sphi 0, %s548
      %s570 = sphi 0, %s572
      %s573 = sphi 0, %s570
      %s574 = sphi 0, %s573
      %s590 = sphi 0, %s574
      %s596 = sphi 0, %s598
      %s599 = sphi 0, %s596
      %s600 = sphi 0, %s599
      %s616 = sphi 0, %s600
      %s622 = sphi 0, %s624
      %s625 = sphi 0, %s622
      %s626 = sphi 0, %s625
      %s642 = sphi 0, %s626
      %s648 = sphi 0, %s650
      %s651 = sphi 0, %s648
      %s652 = sphi 0, %s651
      %s668 = sphi 0, %s652
      %s674 = sphi 0, %s676
      %s677 = sphi 0, %s674
      %s678 = sphi 0, %s677
      %s694 = sphi 0, %s678
      %s700 = sphi 0, %s702
      %s703 = sphi 0, %s700
      %s704 = sphi 0, %s703
      %s720 = sphi 0, %s704
      %s726 = sphi 0, %s728
      %s729 = sphi 0, %s726
      %s730 = sphi 0, %s729
      %s746 = sphi 0, %s730
      %s752 = sphi 0, %s754
      %s755 = sphi 0, %s752
      %s756 = sphi 0, %s755
      %s772 = sphi 0, %s756
      %s778 = sphi 0, %s780
      %s781 = sphi 0, %s778
      %s782 = sphi 0, %s781
      %s798 = sphi 0, %s782
      %s804 = sphi 0, %s806
      %s807 = sphi 0, %s804
      %s808 = sphi 0, %s807
      %s824 = sphi 0, %s808
      %s830 = sphi 0, %s832
      %s833 = sphi 0, %s830
      %s834 = sphi 0, %s833
      %s850 = sphi 0, %s834
      %s856 = sphi 0, %s858
      %s859 = sphi 0, %s856
      %s860 = sphi 0, %s859
      %s876 = sphi 0, %s860
      %s882 = sphi 0, %s884
      %s885 = sphi 0, %s882
      %s886 = sphi 0, %s885
      %s902 = sphi 0, %s886
      %s906 = sphi 0, %s906
      %s908 = sphi 0, %s906
      %s909 = sphi 0, %s908
      %s923 = sphi 0, %s909
      %s927 = sphi 0, %s927
      %s929 = sphi 0, %s927
      %s930 = sphi 0, %s929
      %s944 = sphi 0, %s930
    $region4: #{tpu_custom_call.1} parent=1 // loop_header_branch
      %79 = sbr.rel (%p77) target = $region8
    $region5: #{tpu_custom_call.1} parent=1 // loop_body
      %s81 = ssub.s32 %s76, 1
      %s82 = ssub.s32 %s76, 2
      %s83 = sadd.s32 %s76, 1
      %s85 = sadd.s32 %s84, 1
      %p88 = scmp.eq.s32.totalorder %s76, 1
      %p89 = scmp.ne.s32.totalorder %s84, %s86
      %p90 = scmp.eq.s32.totalorder %s76, 0
      %p91 = por %p89, %p90
      %p92 = scmp.ne.s32.totalorder %s84, %s86
      %p93 = scmp.eq.s32.totalorder %s81, 1
      %p94 = por %p92, %p93
      %p95 = scmp.ne.s32.totalorder %s86, %s87
      %p96 = scmp.eq.s32.totalorder %s81, 0
      %p97 = por %p95, %p96
      %p98 = scmp.ne.s32.totalorder %s86, %s87
      %p99 = scmp.eq.s32.totalorder %s82, 1
      %p100 = por %p98, %p99
      %p102 = scmp.ne.s32.totalorder %s87, %s101
      %p103 = scmp.eq.s32.totalorder %s82, 0
      %p104 = por %p102, %p103
      %s106 = sadd.s32 %s105, 1
      %p109 = scmp.eq.s32.totalorder %s76, 1
      %p110 = scmp.ne.s32.totalorder %s105, %s107
      %p111 = scmp.eq.s32.totalorder %s76, 0
      %p112 = por %p110, %p111
      %p113 = scmp.ne.s32.totalorder %s105, %s107
      %p114 = scmp.eq.s32.totalorder %s81, 1
      %p115 = por %p113, %p114
      %p116 = scmp.ne.s32.totalorder %s107, %s108
      %p117 = scmp.eq.s32.totalorder %s81, 0
      %p118 = por %p116, %p117
      %p119 = scmp.ne.s32.totalorder %s107, %s108
      %p120 = scmp.eq.s32.totalorder %s82, 1
      %p121 = por %p119, %p120
      %p123 = scmp.ne.s32.totalorder %s108, %s122
      %p124 = scmp.eq.s32.totalorder %s82, 0
      %p125 = por %p123, %p124
      %s126 = ssub.s32 %s76, %s83
      %p127 = scmp.eq.s32.totalorder %s126, 0
      %s129 = sadd.s32 %s128, 1
      %s130 = scalar_select %p127, %s128, %s129
      %p133 = pneg %p127
      %p134 = scmp.eq.s32.totalorder %s76, 1
      %p135 = por %p133, %p134
      %p136 = scmp.ne.s32.totalorder %s128, %s131
      %p137 = scmp.eq.s32.totalorder %s76, 0
      %p138 = por %p136, %p137
      %p139 = scmp.ne.s32.totalorder %s128, %s131
      %p140 = scmp.eq.s32.totalorder %s81, 1
      %p141 = por %p139, %p140
      %p142 = scmp.ne.s32.totalorder %s131, %s132
      %p143 = scmp.eq.s32.totalorder %s81, 0
      %p144 = por %p142, %p143
      %p145 = scmp.ne.s32.totalorder %s131, %s132
      %p146 = scmp.eq.s32.totalorder %s82, 1
      %p147 = por %p145, %p146
      %p149 = scmp.ne.s32.totalorder %s132, %s148
      %p150 = scmp.eq.s32.totalorder %s82, 0
      %p151 = por %p149, %p150
      %s152 = ssub.s32 %s76, %s83
      %p153 = scmp.eq.s32.totalorder %s152, 0
      %s155 = sadd.s32 %s154, 1
      %s156 = scalar_select %p153, %s154, %s155
      %p159 = pneg %p153
      %p160 = scmp.eq.s32.totalorder %s76, 1
      %p161 = por %p159, %p160
      %p162 = scmp.ne.s32.totalorder %s154, %s157
      %p163 = scmp.eq.s32.totalorder %s76, 0
      %p164 = por %p162, %p163
      %p165 = scmp.ne.s32.totalorder %s154, %s157
      %p166 = scmp.eq.s32.totalorder %s81, 1
      %p167 = por %p165, %p166
      %p168 = scmp.ne.s32.totalorder %s157, %s158
      %p169 = scmp.eq.s32.totalorder %s81, 0
      %p170 = por %p168, %p169
      %p171 = scmp.ne.s32.totalorder %s157, %s158
      %p172 = scmp.eq.s32.totalorder %s82, 1
      %p173 = por %p171, %p172
      %p175 = scmp.ne.s32.totalorder %s158, %s174
      %p176 = scmp.eq.s32.totalorder %s82, 0
      %p177 = por %p175, %p176
      %s178 = ssub.s32 %s76, %s83
      %p179 = scmp.eq.s32.totalorder %s178, 0
      %s181 = sadd.s32 %s180, 1
      %s182 = scalar_select %p179, %s180, %s181
      %p185 = pneg %p179
      %p186 = scmp.eq.s32.totalorder %s76, 1
      %p187 = por %p185, %p186
      %p188 = scmp.ne.s32.totalorder %s180, %s183
      %p189 = scmp.eq.s32.totalorder %s76, 0
      %p190 = por %p188, %p189
      %p191 = scmp.ne.s32.totalorder %s180, %s183
      %p192 = scmp.eq.s32.totalorder %s81, 1
      %p193 = por %p191, %p192
      %p194 = scmp.ne.s32.totalorder %s183, %s184
      %p195 = scmp.eq.s32.totalorder %s81, 0
      %p196 = por %p194, %p195
      %p197 = scmp.ne.s32.totalorder %s183, %s184
      %p198 = scmp.eq.s32.totalorder %s82, 1
      %p199 = por %p197, %p198
      %p201 = scmp.ne.s32.totalorder %s184, %s200
      %p202 = scmp.eq.s32.totalorder %s82, 0
      %p203 = por %p201, %p202
      %s204 = ssub.s32 %s76, %s83
      %p205 = scmp.eq.s32.totalorder %s204, 0
      %s207 = sadd.s32 %s206, 1
      %s208 = scalar_select %p205, %s206, %s207
      %p211 = pneg %p205
      %p212 = scmp.eq.s32.totalorder %s76, 1
      %p213 = por %p211, %p212
      %p214 = scmp.ne.s32.totalorder %s206, %s209
      %p215 = scmp.eq.s32.totalorder %s76, 0
      %p216 = por %p214, %p215
      %p217 = scmp.ne.s32.totalorder %s206, %s209
      %p218 = scmp.eq.s32.totalorder %s81, 1
      %p219 = por %p217, %p218
      %p220 = scmp.ne.s32.totalorder %s209, %s210
      %p221 = scmp.eq.s32.totalorder %s81, 0
      %p222 = por %p220, %p221
      %p223 = scmp.ne.s32.totalorder %s209, %s210
      %p224 = scmp.eq.s32.totalorder %s82, 1
      %p225 = por %p223, %p224
      %p227 = scmp.ne.s32.totalorder %s210, %s226
      %p228 = scmp.eq.s32.totalorder %s82, 0
      %p229 = por %p227, %p228
      %s230 = ssub.s32 %s76, %s83
      %p231 = scmp.eq.s32.totalorder %s230, 0
      %s233 = sadd.s32 %s232, 1
      %s234 = scalar_select %p231, %s232, %s233
      %p237 = pneg %p231
      %p238 = scmp.eq.s32.totalorder %s76, 1
      %p239 = por %p237, %p238
      %p240 = scmp.ne.s32.totalorder %s232, %s235
      %p241 = scmp.eq.s32.totalorder %s76, 0
      %p242 = por %p240, %p241
      %p243 = scmp.ne.s32.totalorder %s232, %s235
      %p244 = scmp.eq.s32.totalorder %s81, 1
      %p245 = por %p243, %p244
      %p246 = scmp.ne.s32.totalorder %s235, %s236
      %p247 = scmp.eq.s32.totalorder %s81, 0
      %p248 = por %p246, %p247
      %p249 = scmp.ne.s32.totalorder %s235, %s236
      %p250 = scmp.eq.s32.totalorder %s82, 1
      %p251 = por %p249, %p250
      %p253 = scmp.ne.s32.totalorder %s236, %s252
      %p254 = scmp.eq.s32.totalorder %s82, 0
      %p255 = por %p253, %p254
      %s256 = ssub.s32 %s76, %s83
      %p257 = scmp.eq.s32.totalorder %s256, 0
      %s259 = sadd.s32 %s258, 1
      %s260 = scalar_select %p257, %s258, %s259
      %p263 = pneg %p257
      %p264 = scmp.eq.s32.totalorder %s76, 1
      %p265 = por %p263, %p264
      %p266 = scmp.ne.s32.totalorder %s258, %s261
      %p267 = scmp.eq.s32.totalorder %s76, 0
      %p268 = por %p266, %p267
      %p269 = scmp.ne.s32.totalorder %s258, %s261
      %p270 = scmp.eq.s32.totalorder %s81, 1
      %p271 = por %p269, %p270
      %p272 = scmp.ne.s32.totalorder %s261, %s262
      %p273 = scmp.eq.s32.totalorder %s81, 0
      %p274 = por %p272, %p273
      %p275 = scmp.ne.s32.totalorder %s261, %s262
      %p276 = scmp.eq.s32.totalorder %s82, 1
      %p277 = por %p275, %p276
      %p279 = scmp.ne.s32.totalorder %s262, %s278
      %p280 = scmp.eq.s32.totalorder %s82, 0
      %p281 = por %p279, %p280
      %s282 = ssub.s32 %s76, %s83
      %p283 = scmp.eq.s32.totalorder %s282, 0
      %s285 = sadd.s32 %s284, 1
      %s286 = scalar_select %p283, %s284, %s285
      %p289 = pneg %p283
      %p290 = scmp.eq.s32.totalorder %s76, 1
      %p291 = por %p289, %p290
      %p292 = scmp.ne.s32.totalorder %s284, %s287
      %p293 = scmp.eq.s32.totalorder %s76, 0
      %p294 = por %p292, %p293
      %p295 = scmp.ne.s32.totalorder %s284, %s287
      %p296 = scmp.eq.s32.totalorder %s81, 1
      %p297 = por %p295, %p296
      %p298 = scmp.ne.s32.totalorder %s287, %s288
      %p299 = scmp.eq.s32.totalorder %s81, 0
      %p300 = por %p298, %p299
      %p301 = scmp.ne.s32.totalorder %s287, %s288
      %p302 = scmp.eq.s32.totalorder %s82, 1
      %p303 = por %p301, %p302
      %p305 = scmp.ne.s32.totalorder %s288, %s304
      %p306 = scmp.eq.s32.totalorder %s82, 0
      %p307 = por %p305, %p306
      %s308 = ssub.s32 %s76, %s83
      %p309 = scmp.eq.s32.totalorder %s308, 0
      %s311 = sadd.s32 %s310, 1
      %s312 = scalar_select %p309, %s310, %s311
      %p315 = pneg %p309
      %p316 = scmp.eq.s32.totalorder %s76, 1
      %p317 = por %p315, %p316
      %p318 = scmp.ne.s32.totalorder %s310, %s313
      %p319 = scmp.eq.s32.totalorder %s76, 0
      %p320 = por %p318, %p319
      %p321 = scmp.ne.s32.totalorder %s310, %s313
      %p322 = scmp.eq.s32.totalorder %s81, 1
      %p323 = por %p321, %p322
      %p324 = scmp.ne.s32.totalorder %s313, %s314
      %p325 = scmp.eq.s32.totalorder %s81, 0
      %p326 = por %p324, %p325
      %p327 = scmp.ne.s32.totalorder %s313, %s314
      %p328 = scmp.eq.s32.totalorder %s82, 1
      %p329 = por %p327, %p328
      %p331 = scmp.ne.s32.totalorder %s314, %s330
      %p332 = scmp.eq.s32.totalorder %s82, 0
      %p333 = por %p331, %p332
      %s334 = ssub.s32 %s76, %s83
      %p335 = scmp.eq.s32.totalorder %s334, 0
      %s337 = sadd.s32 %s336, 1
      %s338 = scalar_select %p335, %s336, %s337
      %p341 = pneg %p335
      %p342 = scmp.eq.s32.totalorder %s76, 1
      %p343 = por %p341, %p342
      %p344 = scmp.ne.s32.totalorder %s336, %s339
      %p345 = scmp.eq.s32.totalorder %s76, 0
      %p346 = por %p344, %p345
      %p347 = scmp.ne.s32.totalorder %s336, %s339
      %p348 = scmp.eq.s32.totalorder %s81, 1
      %p349 = por %p347, %p348
      %p350 = scmp.ne.s32.totalorder %s339, %s340
      %p351 = scmp.eq.s32.totalorder %s81, 0
      %p352 = por %p350, %p351
      %p353 = scmp.ne.s32.totalorder %s339, %s340
      %p354 = scmp.eq.s32.totalorder %s82, 1
      %p355 = por %p353, %p354
      %p357 = scmp.ne.s32.totalorder %s340, %s356
      %p358 = scmp.eq.s32.totalorder %s82, 0
      %p359 = por %p357, %p358
      %s360 = ssub.s32 %s76, %s83
      %p361 = scmp.eq.s32.totalorder %s360, 0
      %s363 = sadd.s32 %s362, 1
      %s364 = scalar_select %p361, %s362, %s363
      %p367 = pneg %p361
      %p368 = scmp.eq.s32.totalorder %s76, 1
      %p369 = por %p367, %p368
      %p370 = scmp.ne.s32.totalorder %s362, %s365
      %p371 = scmp.eq.s32.totalorder %s76, 0
      %p372 = por %p370, %p371
      %p373 = scmp.ne.s32.totalorder %s362, %s365
      %p374 = scmp.eq.s32.totalorder %s81, 1
      %p375 = por %p373, %p374
      %p376 = scmp.ne.s32.totalorder %s365, %s366
      %p377 = scmp.eq.s32.totalorder %s81, 0
      %p378 = por %p376, %p377
      %p379 = scmp.ne.s32.totalorder %s365, %s366
      %p380 = scmp.eq.s32.totalorder %s82, 1
      %p381 = por %p379, %p380
      %p383 = scmp.ne.s32.totalorder %s366, %s382
      %p384 = scmp.eq.s32.totalorder %s82, 0
      %p385 = por %p383, %p384
      %s386 = ssub.s32 %s76, %s83
      %p387 = scmp.eq.s32.totalorder %s386, 0
      %s389 = sadd.s32 %s388, 1
      %s390 = scalar_select %p387, %s388, %s389
      %p393 = pneg %p387
      %p394 = scmp.eq.s32.totalorder %s76, 1
      %p395 = por %p393, %p394
      %p396 = scmp.ne.s32.totalorder %s388, %s391
      %p397 = scmp.eq.s32.totalorder %s76, 0
      %p398 = por %p396, %p397
      %p399 = scmp.ne.s32.totalorder %s388, %s391
      %p400 = scmp.eq.s32.totalorder %s81, 1
      %p401 = por %p399, %p400
      %p402 = scmp.ne.s32.totalorder %s391, %s392
      %p403 = scmp.eq.s32.totalorder %s81, 0
      %p404 = por %p402, %p403
      %p405 = scmp.ne.s32.totalorder %s391, %s392
      %p406 = scmp.eq.s32.totalorder %s82, 1
      %p407 = por %p405, %p406
      %p409 = scmp.ne.s32.totalorder %s392, %s408
      %p410 = scmp.eq.s32.totalorder %s82, 0
      %p411 = por %p409, %p410
      %s412 = ssub.s32 %s76, %s83
      %p413 = scmp.eq.s32.totalorder %s412, 0
      %s415 = sadd.s32 %s414, 1
      %s416 = scalar_select %p413, %s414, %s415
      %p419 = pneg %p413
      %p420 = scmp.eq.s32.totalorder %s76, 1
      %p421 = por %p419, %p420
      %p422 = scmp.ne.s32.totalorder %s414, %s417
      %p423 = scmp.eq.s32.totalorder %s76, 0
      %p424 = por %p422, %p423
      %p425 = scmp.ne.s32.totalorder %s414, %s417
      %p426 = scmp.eq.s32.totalorder %s81, 1
      %p427 = por %p425, %p426
      %p428 = scmp.ne.s32.totalorder %s417, %s418
      %p429 = scmp.eq.s32.totalorder %s81, 0
      %p430 = por %p428, %p429
      %p431 = scmp.ne.s32.totalorder %s417, %s418
      %p432 = scmp.eq.s32.totalorder %s82, 1
      %p433 = por %p431, %p432
      %p435 = scmp.ne.s32.totalorder %s418, %s434
      %p436 = scmp.eq.s32.totalorder %s82, 0
      %p437 = por %p435, %p436
      %s438 = ssub.s32 %s76, %s83
      %p439 = scmp.eq.s32.totalorder %s438, 0
      %s441 = sadd.s32 %s440, 1
      %s442 = scalar_select %p439, %s440, %s441
      %p445 = pneg %p439
      %p446 = scmp.eq.s32.totalorder %s76, 1
      %p447 = por %p445, %p446
      %p448 = scmp.ne.s32.totalorder %s440, %s443
      %p449 = scmp.eq.s32.totalorder %s76, 0
      %p450 = por %p448, %p449
      %p451 = scmp.ne.s32.totalorder %s440, %s443
      %p452 = scmp.eq.s32.totalorder %s81, 1
      %p453 = por %p451, %p452
      %p454 = scmp.ne.s32.totalorder %s443, %s444
      %p455 = scmp.eq.s32.totalorder %s81, 0
      %p456 = por %p454, %p455
      %p457 = scmp.ne.s32.totalorder %s443, %s444
      %p458 = scmp.eq.s32.totalorder %s82, 1
      %p459 = por %p457, %p458
      %p461 = scmp.ne.s32.totalorder %s444, %s460
      %p462 = scmp.eq.s32.totalorder %s82, 0
      %p463 = por %p461, %p462
      %s464 = ssub.s32 %s76, %s83
      %p465 = scmp.eq.s32.totalorder %s464, 0
      %s467 = sadd.s32 %s466, 1
      %s468 = scalar_select %p465, %s466, %s467
      %p471 = pneg %p465
      %p472 = scmp.eq.s32.totalorder %s76, 1
      %p473 = por %p471, %p472
      %p474 = scmp.ne.s32.totalorder %s466, %s469
      %p475 = scmp.eq.s32.totalorder %s76, 0
      %p476 = por %p474, %p475
      %p477 = scmp.ne.s32.totalorder %s466, %s469
      %p478 = scmp.eq.s32.totalorder %s81, 1
      %p479 = por %p477, %p478
      %p480 = scmp.ne.s32.totalorder %s469, %s470
      %p481 = scmp.eq.s32.totalorder %s81, 0
      %p482 = por %p480, %p481
      %p483 = scmp.ne.s32.totalorder %s469, %s470
      %p484 = scmp.eq.s32.totalorder %s82, 1
      %p485 = por %p483, %p484
      %p487 = scmp.ne.s32.totalorder %s470, %s486
      %p488 = scmp.eq.s32.totalorder %s82, 0
      %p489 = por %p487, %p488
      %s490 = ssub.s32 %s76, %s83
      %p491 = scmp.eq.s32.totalorder %s490, 0
      %s493 = sadd.s32 %s492, 1
      %s494 = scalar_select %p491, %s492, %s493
      %p497 = pneg %p491
      %p498 = scmp.eq.s32.totalorder %s76, 1
      %p499 = por %p497, %p498
      %p500 = scmp.ne.s32.totalorder %s492, %s495
      %p501 = scmp.eq.s32.totalorder %s76, 0
      %p502 = por %p500, %p501
      %p503 = scmp.ne.s32.totalorder %s492, %s495
      %p504 = scmp.eq.s32.totalorder %s81, 1
      %p505 = por %p503, %p504
      %p506 = scmp.ne.s32.totalorder %s495, %s496
      %p507 = scmp.eq.s32.totalorder %s81, 0
      %p508 = por %p506, %p507
      %p509 = scmp.ne.s32.totalorder %s495, %s496
      %p510 = scmp.eq.s32.totalorder %s82, 1
      %p511 = por %p509, %p510
      %p513 = scmp.ne.s32.totalorder %s496, %s512
      %p514 = scmp.eq.s32.totalorder %s82, 0
      %p515 = por %p513, %p514
      %s516 = ssub.s32 %s76, %s83
      %p517 = scmp.eq.s32.totalorder %s516, 0
      %s519 = sadd.s32 %s518, 1
      %s520 = scalar_select %p517, %s518, %s519
      %p523 = pneg %p517
      %p524 = scmp.eq.s32.totalorder %s76, 1
      %p525 = por %p523, %p524
      %p526 = scmp.ne.s32.totalorder %s518, %s521
      %p527 = scmp.eq.s32.totalorder %s76, 0
      %p528 = por %p526, %p527
      %p529 = scmp.ne.s32.totalorder %s518, %s521
      %p530 = scmp.eq.s32.totalorder %s81, 1
      %p531 = por %p529, %p530
      %p532 = scmp.ne.s32.totalorder %s521, %s522
      %p533 = scmp.eq.s32.totalorder %s81, 0
      %p534 = por %p532, %p533
      %p535 = scmp.ne.s32.totalorder %s521, %s522
      %p536 = scmp.eq.s32.totalorder %s82, 1
      %p537 = por %p535, %p536
      %p539 = scmp.ne.s32.totalorder %s522, %s538
      %p540 = scmp.eq.s32.totalorder %s82, 0
      %p541 = por %p539, %p540
      %s542 = ssub.s32 %s76, %s83
      %p543 = scmp.eq.s32.totalorder %s542, 0
      %s545 = sadd.s32 %s544, 1
      %s546 = scalar_select %p543, %s544, %s545
      %p549 = pneg %p543
      %p550 = scmp.eq.s32.totalorder %s76, 1
      %p551 = por %p549, %p550
      %p552 = scmp.ne.s32.totalorder %s544, %s547
      %p553 = scmp.eq.s32.totalorder %s76, 0
      %p554 = por %p552, %p553
      %p555 = scmp.ne.s32.totalorder %s544, %s547
      %p556 = scmp.eq.s32.totalorder %s81, 1
      %p557 = por %p555, %p556
      %p558 = scmp.ne.s32.totalorder %s547, %s548
      %p559 = scmp.eq.s32.totalorder %s81, 0
      %p560 = por %p558, %p559
      %p561 = scmp.ne.s32.totalorder %s547, %s548
      %p562 = scmp.eq.s32.totalorder %s82, 1
      %p563 = por %p561, %p562
      %p565 = scmp.ne.s32.totalorder %s548, %s564
      %p566 = scmp.eq.s32.totalorder %s82, 0
      %p567 = por %p565, %p566
      %s568 = ssub.s32 %s76, %s83
      %p569 = scmp.eq.s32.totalorder %s568, 0
      %s571 = sadd.s32 %s570, 1
      %s572 = scalar_select %p569, %s570, %s571
      %p575 = pneg %p569
      %p576 = scmp.eq.s32.totalorder %s76, 1
      %p577 = por %p575, %p576
      %p578 = scmp.ne.s32.totalorder %s570, %s573
      %p579 = scmp.eq.s32.totalorder %s76, 0
      %p580 = por %p578, %p579
      %p581 = scmp.ne.s32.totalorder %s570, %s573
      %p582 = scmp.eq.s32.totalorder %s81, 1
      %p583 = por %p581, %p582
      %p584 = scmp.ne.s32.totalorder %s573, %s574
      %p585 = scmp.eq.s32.totalorder %s81, 0
      %p586 = por %p584, %p585
      %p587 = scmp.ne.s32.totalorder %s573, %s574
      %p588 = scmp.eq.s32.totalorder %s82, 1
      %p589 = por %p587, %p588
      %p591 = scmp.ne.s32.totalorder %s574, %s590
      %p592 = scmp.eq.s32.totalorder %s82, 0
      %p593 = por %p591, %p592
      %s594 = ssub.s32 %s76, %s83
      %p595 = scmp.eq.s32.totalorder %s594, 0
      %s597 = sadd.s32 %s596, 1
      %s598 = scalar_select %p595, %s596, %s597
      %p601 = pneg %p595
      %p602 = scmp.eq.s32.totalorder %s76, 1
      %p603 = por %p601, %p602
      %p604 = scmp.ne.s32.totalorder %s596, %s599
      %p605 = scmp.eq.s32.totalorder %s76, 0
      %p606 = por %p604, %p605
      %p607 = scmp.ne.s32.totalorder %s596, %s599
      %p608 = scmp.eq.s32.totalorder %s81, 1
      %p609 = por %p607, %p608
      %p610 = scmp.ne.s32.totalorder %s599, %s600
      %p611 = scmp.eq.s32.totalorder %s81, 0
      %p612 = por %p610, %p611
      %p613 = scmp.ne.s32.totalorder %s599, %s600
      %p614 = scmp.eq.s32.totalorder %s82, 1
      %p615 = por %p613, %p614
      %p617 = scmp.ne.s32.totalorder %s600, %s616
      %p618 = scmp.eq.s32.totalorder %s82, 0
      %p619 = por %p617, %p618
      %s620 = ssub.s32 %s76, %s83
      %p621 = scmp.eq.s32.totalorder %s620, 0
      %s623 = sadd.s32 %s622, 1
      %s624 = scalar_select %p621, %s622, %s623
      %p627 = pneg %p621
      %p628 = scmp.eq.s32.totalorder %s76, 1
      %p629 = por %p627, %p628
      %p630 = scmp.ne.s32.totalorder %s622, %s625
      %p631 = scmp.eq.s32.totalorder %s76, 0
      %p632 = por %p630, %p631
      %p633 = scmp.ne.s32.totalorder %s622, %s625
      %p634 = scmp.eq.s32.totalorder %s81, 1
      %p635 = por %p633, %p634
      %p636 = scmp.ne.s32.totalorder %s625, %s626
      %p637 = scmp.eq.s32.totalorder %s81, 0
      %p638 = por %p636, %p637
      %p639 = scmp.ne.s32.totalorder %s625, %s626
      %p640 = scmp.eq.s32.totalorder %s82, 1
      %p641 = por %p639, %p640
      %p643 = scmp.ne.s32.totalorder %s626, %s642
      %p644 = scmp.eq.s32.totalorder %s82, 0
      %p645 = por %p643, %p644
      %s646 = ssub.s32 %s76, %s83
      %p647 = scmp.eq.s32.totalorder %s646, 0
      %s649 = sadd.s32 %s648, 1
      %s650 = scalar_select %p647, %s648, %s649
      %p653 = pneg %p647
      %p654 = scmp.eq.s32.totalorder %s76, 1
      %p655 = por %p653, %p654
      %p656 = scmp.ne.s32.totalorder %s648, %s651
      %p657 = scmp.eq.s32.totalorder %s76, 0
      %p658 = por %p656, %p657
      %p659 = scmp.ne.s32.totalorder %s648, %s651
      %p660 = scmp.eq.s32.totalorder %s81, 1
      %p661 = por %p659, %p660
      %p662 = scmp.ne.s32.totalorder %s651, %s652
      %p663 = scmp.eq.s32.totalorder %s81, 0
      %p664 = por %p662, %p663
      %p665 = scmp.ne.s32.totalorder %s651, %s652
      %p666 = scmp.eq.s32.totalorder %s82, 1
      %p667 = por %p665, %p666
      %p669 = scmp.ne.s32.totalorder %s652, %s668
      %p670 = scmp.eq.s32.totalorder %s82, 0
      %p671 = por %p669, %p670
      %s672 = ssub.s32 %s76, %s83
      %p673 = scmp.eq.s32.totalorder %s672, 0
      %s675 = sadd.s32 %s674, 1
      %s676 = scalar_select %p673, %s674, %s675
      %p679 = pneg %p673
      %p680 = scmp.eq.s32.totalorder %s76, 1
      %p681 = por %p679, %p680
      %p682 = scmp.ne.s32.totalorder %s674, %s677
      %p683 = scmp.eq.s32.totalorder %s76, 0
      %p684 = por %p682, %p683
      %p685 = scmp.ne.s32.totalorder %s674, %s677
      %p686 = scmp.eq.s32.totalorder %s81, 1
      %p687 = por %p685, %p686
      %p688 = scmp.ne.s32.totalorder %s677, %s678
      %p689 = scmp.eq.s32.totalorder %s81, 0
      %p690 = por %p688, %p689
      %p691 = scmp.ne.s32.totalorder %s677, %s678
      %p692 = scmp.eq.s32.totalorder %s82, 1
      %p693 = por %p691, %p692
      %p695 = scmp.ne.s32.totalorder %s678, %s694
      %p696 = scmp.eq.s32.totalorder %s82, 0
      %p697 = por %p695, %p696
      %s698 = ssub.s32 %s76, %s83
      %p699 = scmp.eq.s32.totalorder %s698, 0
      %s701 = sadd.s32 %s700, 1
      %s702 = scalar_select %p699, %s700, %s701
      %p705 = pneg %p699
      %p706 = scmp.eq.s32.totalorder %s76, 1
      %p707 = por %p705, %p706
      %p708 = scmp.ne.s32.totalorder %s700, %s703
      %p709 = scmp.eq.s32.totalorder %s76, 0
      %p710 = por %p708, %p709
      %p711 = scmp.ne.s32.totalorder %s700, %s703
      %p712 = scmp.eq.s32.totalorder %s81, 1
      %p713 = por %p711, %p712
      %p714 = scmp.ne.s32.totalorder %s703, %s704
      %p715 = scmp.eq.s32.totalorder %s81, 0
      %p716 = por %p714, %p715
      %p717 = scmp.ne.s32.totalorder %s703, %s704
      %p718 = scmp.eq.s32.totalorder %s82, 1
      %p719 = por %p717, %p718
      %p721 = scmp.ne.s32.totalorder %s704, %s720
      %p722 = scmp.eq.s32.totalorder %s82, 0
      %p723 = por %p721, %p722
      %s724 = ssub.s32 %s76, %s83
      %p725 = scmp.eq.s32.totalorder %s724, 0
      %s727 = sadd.s32 %s726, 1
      %s728 = scalar_select %p725, %s726, %s727
      %p731 = pneg %p725
      %p732 = scmp.eq.s32.totalorder %s76, 1
      %p733 = por %p731, %p732
      %p734 = scmp.ne.s32.totalorder %s726, %s729
      %p735 = scmp.eq.s32.totalorder %s76, 0
      %p736 = por %p734, %p735
      %p737 = scmp.ne.s32.totalorder %s726, %s729
      %p738 = scmp.eq.s32.totalorder %s81, 1
      %p739 = por %p737, %p738
      %p740 = scmp.ne.s32.totalorder %s729, %s730
      %p741 = scmp.eq.s32.totalorder %s81, 0
      %p742 = por %p740, %p741
      %p743 = scmp.ne.s32.totalorder %s729, %s730
      %p744 = scmp.eq.s32.totalorder %s82, 1
      %p745 = por %p743, %p744
      %p747 = scmp.ne.s32.totalorder %s730, %s746
      %p748 = scmp.eq.s32.totalorder %s82, 0
      %p749 = por %p747, %p748
      %s750 = ssub.s32 %s76, %s83
      %p751 = scmp.eq.s32.totalorder %s750, 0
      %s753 = sadd.s32 %s752, 1
      %s754 = scalar_select %p751, %s752, %s753
      %p757 = pneg %p751
      %p758 = scmp.eq.s32.totalorder %s76, 1
      %p759 = por %p757, %p758
      %p760 = scmp.ne.s32.totalorder %s752, %s755
      %p761 = scmp.eq.s32.totalorder %s76, 0
      %p762 = por %p760, %p761
      %p763 = scmp.ne.s32.totalorder %s752, %s755
      %p764 = scmp.eq.s32.totalorder %s81, 1
      %p765 = por %p763, %p764
      %p766 = scmp.ne.s32.totalorder %s755, %s756
      %p767 = scmp.eq.s32.totalorder %s81, 0
      %p768 = por %p766, %p767
      %p769 = scmp.ne.s32.totalorder %s755, %s756
      %p770 = scmp.eq.s32.totalorder %s82, 1
      %p771 = por %p769, %p770
      %p773 = scmp.ne.s32.totalorder %s756, %s772
      %p774 = scmp.eq.s32.totalorder %s82, 0
      %p775 = por %p773, %p774
      %s776 = ssub.s32 %s76, %s83
      %p777 = scmp.eq.s32.totalorder %s776, 0
      %s779 = sadd.s32 %s778, 1
      %s780 = scalar_select %p777, %s778, %s779
      %p783 = pneg %p777
      %p784 = scmp.eq.s32.totalorder %s76, 1
      %p785 = por %p783, %p784
      %p786 = scmp.ne.s32.totalorder %s778, %s781
      %p787 = scmp.eq.s32.totalorder %s76, 0
      %p788 = por %p786, %p787
      %p789 = scmp.ne.s32.totalorder %s778, %s781
      %p790 = scmp.eq.s32.totalorder %s81, 1
      %p791 = por %p789, %p790
      %p792 = scmp.ne.s32.totalorder %s781, %s782
      %p793 = scmp.eq.s32.totalorder %s81, 0
      %p794 = por %p792, %p793
      %p795 = scmp.ne.s32.totalorder %s781, %s782
      %p796 = scmp.eq.s32.totalorder %s82, 1
      %p797 = por %p795, %p796
      %p799 = scmp.ne.s32.totalorder %s782, %s798
      %p800 = scmp.eq.s32.totalorder %s82, 0
      %p801 = por %p799, %p800
      %s802 = ssub.s32 %s76, %s83
      %p803 = scmp.eq.s32.totalorder %s802, 0
      %s805 = sadd.s32 %s804, 1
      %s806 = scalar_select %p803, %s804, %s805
      %p809 = pneg %p803
      %p810 = scmp.eq.s32.totalorder %s76, 1
      %p811 = por %p809, %p810
      %p812 = scmp.ne.s32.totalorder %s804, %s807
      %p813 = scmp.eq.s32.totalorder %s76, 0
      %p814 = por %p812, %p813
      %p815 = scmp.ne.s32.totalorder %s804, %s807
      %p816 = scmp.eq.s32.totalorder %s81, 1
      %p817 = por %p815, %p816
      %p818 = scmp.ne.s32.totalorder %s807, %s808
      %p819 = scmp.eq.s32.totalorder %s81, 0
      %p820 = por %p818, %p819
      %p821 = scmp.ne.s32.totalorder %s807, %s808
      %p822 = scmp.eq.s32.totalorder %s82, 1
      %p823 = por %p821, %p822
      %p825 = scmp.ne.s32.totalorder %s808, %s824
      %p826 = scmp.eq.s32.totalorder %s82, 0
      %p827 = por %p825, %p826
      %s828 = ssub.s32 %s76, %s83
      %p829 = scmp.eq.s32.totalorder %s828, 0
      %s831 = sadd.s32 %s830, 1
      %s832 = scalar_select %p829, %s830, %s831
      %p835 = pneg %p829
      %p836 = scmp.eq.s32.totalorder %s76, 1
      %p837 = por %p835, %p836
      %p838 = scmp.ne.s32.totalorder %s830, %s833
      %p839 = scmp.eq.s32.totalorder %s76, 0
      %p840 = por %p838, %p839
      %p841 = scmp.ne.s32.totalorder %s830, %s833
      %p842 = scmp.eq.s32.totalorder %s81, 1
      %p843 = por %p841, %p842
      %p844 = scmp.ne.s32.totalorder %s833, %s834
      %p845 = scmp.eq.s32.totalorder %s81, 0
      %p846 = por %p844, %p845
      %p847 = scmp.ne.s32.totalorder %s833, %s834
      %p848 = scmp.eq.s32.totalorder %s82, 1
      %p849 = por %p847, %p848
      %p851 = scmp.ne.s32.totalorder %s834, %s850
      %p852 = scmp.eq.s32.totalorder %s82, 0
      %p853 = por %p851, %p852
      %s854 = ssub.s32 %s76, %s83
      %p855 = scmp.eq.s32.totalorder %s854, 0
      %s857 = sadd.s32 %s856, 1
      %s858 = scalar_select %p855, %s856, %s857
      %p861 = pneg %p855
      %p862 = scmp.eq.s32.totalorder %s76, 1
      %p863 = por %p861, %p862
      %p864 = scmp.ne.s32.totalorder %s856, %s859
      %p865 = scmp.eq.s32.totalorder %s76, 0
      %p866 = por %p864, %p865
      %p867 = scmp.ne.s32.totalorder %s856, %s859
      %p868 = scmp.eq.s32.totalorder %s81, 1
      %p869 = por %p867, %p868
      %p870 = scmp.ne.s32.totalorder %s859, %s860
      %p871 = scmp.eq.s32.totalorder %s81, 0
      %p872 = por %p870, %p871
      %p873 = scmp.ne.s32.totalorder %s859, %s860
      %p874 = scmp.eq.s32.totalorder %s82, 1
      %p875 = por %p873, %p874
      %p877 = scmp.ne.s32.totalorder %s860, %s876
      %p878 = scmp.eq.s32.totalorder %s82, 0
      %p879 = por %p877, %p878
      %s880 = ssub.s32 %s76, %s83
      %p881 = scmp.eq.s32.totalorder %s880, 0
      %s883 = sadd.s32 %s882, 1
      %s884 = scalar_select %p881, %s882, %s883
      %p887 = pneg %p881
      %p888 = scmp.eq.s32.totalorder %s76, 1
      %p889 = por %p887, %p888
      %p890 = scmp.ne.s32.totalorder %s882, %s885
      %p891 = scmp.eq.s32.totalorder %s76, 0
      %p892 = por %p890, %p891
      %p893 = scmp.ne.s32.totalorder %s882, %s885
      %p894 = scmp.eq.s32.totalorder %s81, 1
      %p895 = por %p893, %p894
      %p896 = scmp.ne.s32.totalorder %s885, %s886
      %p897 = scmp.eq.s32.totalorder %s81, 0
      %p898 = por %p896, %p897
      %p899 = scmp.ne.s32.totalorder %s885, %s886
      %p900 = scmp.eq.s32.totalorder %s82, 1
      %p901 = por %p899, %p900
      %p903 = scmp.ne.s32.totalorder %s886, %s902
      %p904 = scmp.eq.s32.totalorder %s82, 0
      %p905 = por %p903, %p904
      %s907 = sadd.s32 %s906, 1
      %p910 = scmp.eq.s32.totalorder %s76, 1
      %p911 = scmp.ne.s32.totalorder %s906, %s908
      %p912 = scmp.eq.s32.totalorder %s76, 0
      %p913 = por %p911, %p912
      %p914 = scmp.ne.s32.totalorder %s906, %s908
      %p915 = scmp.eq.s32.totalorder %s81, 1
      %p916 = por %p914, %p915
      %p917 = scmp.ne.s32.totalorder %s908, %s909
      %p918 = scmp.eq.s32.totalorder %s81, 0
      %p919 = por %p917, %p918
      %p920 = scmp.ne.s32.totalorder %s908, %s909
      %p921 = scmp.eq.s32.totalorder %s82, 1
      %p922 = por %p920, %p921
      %p924 = scmp.ne.s32.totalorder %s909, %s923
      %p925 = scmp.eq.s32.totalorder %s82, 0
      %p926 = por %p924, %p925
      %s928 = sadd.s32 %s927, 1
      %p931 = scmp.eq.s32.totalorder %s76, 1
      %p932 = scmp.ne.s32.totalorder %s927, %s929
      %p933 = scmp.eq.s32.totalorder %s76, 0
      %p934 = por %p932, %p933
      %p935 = scmp.ne.s32.totalorder %s927, %s929
      %p936 = scmp.eq.s32.totalorder %s81, 1
      %p937 = por %p935, %p936
      %p938 = scmp.ne.s32.totalorder %s929, %s930
      %p939 = scmp.eq.s32.totalorder %s81, 0
      %p940 = por %p938, %p939
      %p941 = scmp.ne.s32.totalorder %s929, %s930
      %p942 = scmp.eq.s32.totalorder %s82, 1
      %p943 = por %p941, %p942
      %p945 = scmp.ne.s32.totalorder %s930, %s944
      %p946 = scmp.eq.s32.totalorder %s82, 0
      %p947 = por %p945, %p946
      %p948 = scmp.le.s32.totalorder 1, %s76
      %p949 = scmp.lt.s32.totalorder %s76, 3
      %p950 = pnand %p948, %p949
      %p951 = pneg %p950
      // Predicated region
      $region9: #{tpu_custom_call.1} parent=5 // pred_check
        _
      $region10: #{tpu_custom_call.1} parent=5 // pred_check_branch
        %953 = sbr.rel (%p950) target = $region12
      $region11: #{tpu_custom_call.1} parent=5 // pred_region
        %s954 = ssub.s32 %s76, 1
        // Predicated region
        $region13: #{tpu_custom_call.1} parent=11 // pred_check
          %p955 = pneg %p97
        $region14: #{tpu_custom_call.1} parent=11 // pred_check_branch
          %957 = sbr.rel (%p955) target = $region16
        $region15: #{tpu_custom_call.1} parent=11 // pred_region
          _
        $region16: #{tpu_custom_call.1} parent=11 // pred_fallthru
          _
        // Predicated region
        $region17: #{tpu_custom_call.1} parent=11 // pred_check
          %p958 = pneg %p118
        $region18: #{tpu_custom_call.1} parent=11 // pred_check_branch
          %960 = sbr.rel (%p958) target = $region20
        $region19: #{tpu_custom_call.1} parent=11 // pred_region
          _
        $region20: #{tpu_custom_call.1} parent=11 // pred_fallthru
          _
      $region12: #{tpu_custom_call.1} parent=5 // pred_fallthru
        _
      %p961 = scmp.lt.s32.totalorder %s76, 2
      // Predicated region
      $region21: #{tpu_custom_call.1} parent=5 // pred_check
        %p962 = pneg %p961
      $region22: #{tpu_custom_call.1} parent=5 // pred_check_branch
        %964 = sbr.rel (%p962) target = $region24
      $region23: #{tpu_custom_call.1} parent=5 // pred_region
        // Predicated region
        $region25: #{tpu_custom_call.1} parent=23 // pred_check
          %p965 = pneg %p138
        $region26: #{tpu_custom_call.1} parent=23 // pred_check_branch
          %967 = sbr.rel (%p965) target = $region28
        $region27: #{tpu_custom_call.1} parent=23 // pred_region
          %p968 = scmp.lt.s32.totalorder %s76, 1
          %s969 = scalar_select %p968, %s76, 1
          %s970 = scalar_lea.vmem %s5, %s969
        $region28: #{tpu_custom_call.1} parent=23 // pred_fallthru
          _
        // Predicated region
        $region29: #{tpu_custom_call.1} parent=23 // pred_check
          %p971 = pneg %p164
        $region30: #{tpu_custom_call.1} parent=23 // pred_check_branch
          %973 = sbr.rel (%p971) target = $region32
        $region31: #{tpu_custom_call.1} parent=23 // pred_region
          %p974 = scmp.lt.s32.totalorder %s76, 1
          %s975 = scalar_select %p974, %s76, 1
          %s976 = scalar_lea.vmem %s7, %s975
        $region32: #{tpu_custom_call.1} parent=23 // pred_fallthru
          _
        // Predicated region
        $region33: #{tpu_custom_call.1} parent=23 // pred_check
          %p977 = pneg %p190
        $region34: #{tpu_custom_call.1} parent=23 // pred_check_branch
          %979 = sbr.rel (%p977) target = $region36
        $region35: #{tpu_custom_call.1} parent=23 // pred_region
          %p980 = scmp.lt.s32.totalorder %s76, 1
          %s981 = scalar_select %p980, %s76, 1
          %s982 = scalar_lea.vmem %s9, %s981
        $region36: #{tpu_custom_call.1} parent=23 // pred_fallthru
          _
        // Predicated region
        $region37: #{tpu_custom_call.1} parent=23 // pred_check
          %p983 = pneg %p216
        $region38: #{tpu_custom_call.1} parent=23 // pred_check_branch
          %985 = sbr.rel (%p983) target = $region40
        $region39: #{tpu_custom_call.1} parent=23 // pred_region
          %p986 = scmp.lt.s32.totalorder %s76, 1
          %s987 = scalar_select %p986, %s76, 1
          %s988 = scalar_lea.vmem %s11, %s987
        $region40: #{tpu_custom_call.1} parent=23 // pred_fallthru
          _
        // Predicated region
        $region41: #{tpu_custom_call.1} parent=23 // pred_check
          %p989 = pneg %p242
        $region42: #{tpu_custom_call.1} parent=23 // pred_check_branch
          %991 = sbr.rel (%p989) target = $region44
        $region43: #{tpu_custom_call.1} parent=23 // pred_region
          %p992 = scmp.lt.s32.totalorder %s76, 1
          %s993 = scalar_select %p992, %s76, 1
          %s994 = smul.addr %s993, 8
          %s995 = smul.addr %s994, 8
          %s996 = scalar_lea.vmem %s13, %s995
        $region44: #{tpu_custom_call.1} parent=23 // pred_fallthru
          _
        // Predicated region
        $region45: #{tpu_custom_call.1} parent=23 // pred_check
          %p997 = pneg %p268
        $region46: #{tpu_custom_call.1} parent=23 // pred_check_branch
          %999 = sbr.rel (%p997) target = $region48
        $region47: #{tpu_custom_call.1} parent=23 // pred_region
          %p1000 = scmp.lt.s32.totalorder %s76, 1
          %s1001 = scalar_select %p1000, %s76, 1
          %s1002 = smul.addr %s1001, 8
          %s1003 = smul.addr %s1002, 8
          %s1004 = scalar_lea.vmem %s15, %s1003
        $region48: #{tpu_custom_call.1} parent=23 // pred_fallthru
          _
        // Predicated region
        $region49: #{tpu_custom_call.1} parent=23 // pred_check
          %p1005 = pneg %p294
        $region50: #{tpu_custom_call.1} parent=23 // pred_check_branch
          %1007 = sbr.rel (%p1005) target = $region52
        $region51: #{tpu_custom_call.1} parent=23 // pred_region
          %p1008 = scmp.lt.s32.totalorder %s76, 1
          %s1009 = scalar_select %p1008, %s76, 1
          %s1010 = smul.addr %s1009, 8
          %s1011 = smul.addr %s1010, 8
          %s1012 = scalar_lea.vmem %s17, %s1011
        $region52: #{tpu_custom_call.1} parent=23 // pred_fallthru
          _
        // Predicated region
        $region53: #{tpu_custom_call.1} parent=23 // pred_check
          %p1013 = pneg %p320
        $region54: #{tpu_custom_call.1} parent=23 // pred_check_branch
          %1015 = sbr.rel (%p1013) target = $region56
        $region55: #{tpu_custom_call.1} parent=23 // pred_region
          %p1016 = scmp.lt.s32.totalorder %s76, 1
          %s1017 = scalar_select %p1016, %s76, 1
          %s1018 = smul.addr %s1017, 2
          %s1019 = smul.addr %s1018, 8
          %s1020 = scalar_lea.vmem %s19, %s1019
        $region56: #{tpu_custom_call.1} parent=23 // pred_fallthru
          _
        // Predicated region
        $region57: #{tpu_custom_call.1} parent=23 // pred_check
          %p1021 = pneg %p346
        $region58: #{tpu_custom_call.1} parent=23 // pred_check_branch
          %1023 = sbr.rel (%p1021) target = $region60
        $region59: #{tpu_custom_call.1} parent=23 // pred_region
          %p1024 = scmp.lt.s32.totalorder %s76, 1
          %s1025 = scalar_select %p1024, %s76, 1
          %s1026 = scalar_lea.vmem %s21, %s1025
        $region60: #{tpu_custom_call.1} parent=23 // pred_fallthru
          _
        // Predicated region
        $region61: #{tpu_custom_call.1} parent=23 // pred_check
          %p1027 = pneg %p372
        $region62: #{tpu_custom_call.1} parent=23 // pred_check_branch
          %1029 = sbr.rel (%p1027) target = $region64
        $region63: #{tpu_custom_call.1} parent=23 // pred_region
          %p1030 = scmp.lt.s32.totalorder %s76, 1
          %s1031 = scalar_select %p1030, %s76, 1
          %s1032 = scalar_lea.vmem %s23, %s1031
        $region64: #{tpu_custom_call.1} parent=23 // pred_fallthru
          _
        // Predicated region
        $region65: #{tpu_custom_call.1} parent=23 // pred_check
          %p1033 = pneg %p398
        $region66: #{tpu_custom_call.1} parent=23 // pred_check_branch
          %1035 = sbr.rel (%p1033) target = $region68
        $region67: #{tpu_custom_call.1} parent=23 // pred_region
          %p1036 = scmp.lt.s32.totalorder %s76, 1
          %s1037 = scalar_select %p1036, %s76, 1
          %s1038 = scalar_lea.vmem %s25, %s1037
        $region68: #{tpu_custom_call.1} parent=23 // pred_fallthru
          _
        // Predicated region
        $region69: #{tpu_custom_call.1} parent=23 // pred_check
          %p1039 = pneg %p424
        $region70: #{tpu_custom_call.1} parent=23 // pred_check_branch
          %1041 = sbr.rel (%p1039) target = $region72
        $region71: #{tpu_custom_call.1} parent=23 // pred_region
          %p1042 = scmp.lt.s32.totalorder %s76, 1
          %s1043 = scalar_select %p1042, %s76, 1
          %s1044 = scalar_lea.vmem %s27, %s1043
        $region72: #{tpu_custom_call.1} parent=23 // pred_fallthru
          _
        // Predicated region
        $region73: #{tpu_custom_call.1} parent=23 // pred_check
          %p1045 = pneg %p450
        $region74: #{tpu_custom_call.1} parent=23 // pred_check_branch
          %1047 = sbr.rel (%p1045) target = $region76
        $region75: #{tpu_custom_call.1} parent=23 // pred_region
          %p1048 = scmp.lt.s32.totalorder %s76, 1
          %s1049 = scalar_select %p1048, %s76, 1
          %s1050 = scalar_lea.vmem %s29, %s1049
        $region76: #{tpu_custom_call.1} parent=23 // pred_fallthru
          _
        // Predicated region
        $region77: #{tpu_custom_call.1} parent=23 // pred_check
          %p1051 = pneg %p476
        $region78: #{tpu_custom_call.1} parent=23 // pred_check_branch
          %1053 = sbr.rel (%p1051) target = $region80
        $region79: #{tpu_custom_call.1} parent=23 // pred_region
          %p1054 = scmp.lt.s32.totalorder %s76, 1
          %s1055 = scalar_select %p1054, %s76, 1
          %s1056 = smul.addr %s1055, 8
          %s1057 = smul.addr %s1056, 8
          %s1058 = scalar_lea.vmem %s31, %s1057
        $region80: #{tpu_custom_call.1} parent=23 // pred_fallthru
          _
        // Predicated region
        $region81: #{tpu_custom_call.1} parent=23 // pred_check
          %p1059 = pneg %p502
        $region82: #{tpu_custom_call.1} parent=23 // pred_check_branch
          %1061 = sbr.rel (%p1059) target = $region84
        $region83: #{tpu_custom_call.1} parent=23 // pred_region
          %p1062 = scmp.lt.s32.totalorder %s76, 1
          %s1063 = scalar_select %p1062, %s76, 1
          %s1064 = smul.addr %s1063, 8
          %s1065 = smul.addr %s1064, 8
          %s1066 = scalar_lea.vmem %s33, %s1065
        $region84: #{tpu_custom_call.1} parent=23 // pred_fallthru
          _
        // Predicated region
        $region85: #{tpu_custom_call.1} parent=23 // pred_check
          %p1067 = pneg %p528
        $region86: #{tpu_custom_call.1} parent=23 // pred_check_branch
          %1069 = sbr.rel (%p1067) target = $region88
        $region87: #{tpu_custom_call.1} parent=23 // pred_region
          %p1070 = scmp.lt.s32.totalorder %s76, 1
          %s1071 = scalar_select %p1070, %s76, 1
          %s1072 = smul.addr %s1071, 8
          %s1073 = smul.addr %s1072, 8
          %s1074 = scalar_lea.vmem %s35, %s1073
        $region88: #{tpu_custom_call.1} parent=23 // pred_fallthru
          _
        // Predicated region
        $region89: #{tpu_custom_call.1} parent=23 // pred_check
          %p1075 = pneg %p554
        $region90: #{tpu_custom_call.1} parent=23 // pred_check_branch
          %1077 = sbr.rel (%p1075) target = $region92
        $region91: #{tpu_custom_call.1} parent=23 // pred_region
          %p1078 = scmp.lt.s32.totalorder %s76, 1
          %s1079 = scalar_select %p1078, %s76, 1
          %s1080 = smul.addr %s1079, 2
          %s1081 = smul.addr %s1080, 8
          %s1082 = scalar_lea.vmem %s37, %s1081
        $region92: #{tpu_custom_call.1} parent=23 // pred_fallthru
          _
        // Predicated region
        $region93: #{tpu_custom_call.1} parent=23 // pred_check
          %p1083 = pneg %p580
        $region94: #{tpu_custom_call.1} parent=23 // pred_check_branch
          %1085 = sbr.rel (%p1083) target = $region96
        $region95: #{tpu_custom_call.1} parent=23 // pred_region
          %p1086 = scmp.lt.s32.totalorder %s76, 1
          %s1087 = scalar_select %p1086, %s76, 1
          %s1088 = scalar_lea.vmem %s39, %s1087
        $region96: #{tpu_custom_call.1} parent=23 // pred_fallthru
          _
        // Predicated region
        $region97: #{tpu_custom_call.1} parent=23 // pred_check
          %p1089 = pneg %p606
        $region98: #{tpu_custom_call.1} parent=23 // pred_check_branch
          %1091 = sbr.rel (%p1089) target = $region100
        $region99: #{tpu_custom_call.1} parent=23 // pred_region
          %p1092 = scmp.lt.s32.totalorder %s76, 1
          %s1093 = scalar_select %p1092, %s76, 1
          %s1094 = scalar_lea.vmem %s41, %s1093
        $region100: #{tpu_custom_call.1} parent=23 // pred_fallthru
          _
        // Predicated region
        $region101: #{tpu_custom_call.1} parent=23 // pred_check
          %p1095 = pneg %p632
        $region102: #{tpu_custom_call.1} parent=23 // pred_check_branch
          %1097 = sbr.rel (%p1095) target = $region104
        $region103: #{tpu_custom_call.1} parent=23 // pred_region
          %p1098 = scmp.lt.s32.totalorder %s76, 1
          %s1099 = scalar_select %p1098, %s76, 1
          %s1100 = scalar_lea.vmem %s43, %s1099
        $region104: #{tpu_custom_call.1} parent=23 // pred_fallthru
          _
        // Predicated region
        $region105: #{tpu_custom_call.1} parent=23 // pred_check
          %p1101 = pneg %p658
        $region106: #{tpu_custom_call.1} parent=23 // pred_check_branch
          %1103 = sbr.rel (%p1101) target = $region108
        $region107: #{tpu_custom_call.1} parent=23 // pred_region
          %p1104 = scmp.lt.s32.totalorder %s76, 1
          %s1105 = scalar_select %p1104, %s76, 1
          %s1106 = smul.addr %s1105, 4
          %s1107 = smul.addr %s1106, 8
          %s1108 = scalar_lea.vmem %s45, %s1107
        $region108: #{tpu_custom_call.1} parent=23 // pred_fallthru
          _
        // Predicated region
        $region109: #{tpu_custom_call.1} parent=23 // pred_check
          %p1109 = pneg %p684
        $region110: #{tpu_custom_call.1} parent=23 // pred_check_branch
          %1111 = sbr.rel (%p1109) target = $region112
        $region111: #{tpu_custom_call.1} parent=23 // pred_region
          %p1112 = scmp.lt.s32.totalorder %s76, 1
          %s1113 = scalar_select %p1112, %s76, 1
          %s1114 = scalar_lea.vmem %s47, %s1113
        $region112: #{tpu_custom_call.1} parent=23 // pred_fallthru
          _
        // Predicated region
        $region113: #{tpu_custom_call.1} parent=23 // pred_check
          %p1115 = pneg %p710
        $region114: #{tpu_custom_call.1} parent=23 // pred_check_branch
          %1117 = sbr.rel (%p1115) target = $region116
        $region115: #{tpu_custom_call.1} parent=23 // pred_region
          %p1118 = scmp.lt.s32.totalorder %s76, 1
          %s1119 = scalar_select %p1118, %s76, 1
          %s1120 = smul.addr %s1119, 8
          %s1121 = smul.addr %s1120, 8
          %s1122 = scalar_lea.vmem %s49, %s1121
        $region116: #{tpu_custom_call.1} parent=23 // pred_fallthru
          _
        // Predicated region
        $region117: #{tpu_custom_call.1} parent=23 // pred_check
          %p1123 = pneg %p736
        $region118: #{tpu_custom_call.1} parent=23 // pred_check_branch
          %1125 = sbr.rel (%p1123) target = $region120
        $region119: #{tpu_custom_call.1} parent=23 // pred_region
          %p1126 = scmp.lt.s32.totalorder %s76, 1
          %s1127 = scalar_select %p1126, %s76, 1
          %s1128 = scalar_lea.vmem %s51, %s1127
        $region120: #{tpu_custom_call.1} parent=23 // pred_fallthru
          _
        // Predicated region
        $region121: #{tpu_custom_call.1} parent=23 // pred_check
          %p1129 = pneg %p762
        $region122: #{tpu_custom_call.1} parent=23 // pred_check_branch
          %1131 = sbr.rel (%p1129) target = $region124
        $region123: #{tpu_custom_call.1} parent=23 // pred_region
          %p1132 = scmp.lt.s32.totalorder %s76, 1
          %s1133 = scalar_select %p1132, %s76, 1
          %s1134 = scalar_lea.vmem %s53, %s1133
        $region124: #{tpu_custom_call.1} parent=23 // pred_fallthru
          _
        // Predicated region
        $region125: #{tpu_custom_call.1} parent=23 // pred_check
          %p1135 = pneg %p788
        $region126: #{tpu_custom_call.1} parent=23 // pred_check_branch
          %1137 = sbr.rel (%p1135) target = $region128
        $region127: #{tpu_custom_call.1} parent=23 // pred_region
          %p1138 = scmp.lt.s32.totalorder %s76, 1
          %s1139 = scalar_select %p1138, %s76, 1
          %s1140 = scalar_lea.vmem %s55, %s1139
        $region128: #{tpu_custom_call.1} parent=23 // pred_fallthru
          _
        // Predicated region
        $region129: #{tpu_custom_call.1} parent=23 // pred_check
          %p1141 = pneg %p814
        $region130: #{tpu_custom_call.1} parent=23 // pred_check_branch
          %1143 = sbr.rel (%p1141) target = $region132
        $region131: #{tpu_custom_call.1} parent=23 // pred_region
          %p1144 = scmp.lt.s32.totalorder %s76, 1
          %s1145 = scalar_select %p1144, %s76, 1
          %s1146 = smul.addr %s1145, 4
          %s1147 = smul.addr %s1146, 8
          %s1148 = scalar_lea.vmem %s57, %s1147
        $region132: #{tpu_custom_call.1} parent=23 // pred_fallthru
          _
        // Predicated region
        $region133: #{tpu_custom_call.1} parent=23 // pred_check
          %p1149 = pneg %p840
        $region134: #{tpu_custom_call.1} parent=23 // pred_check_branch
          %1151 = sbr.rel (%p1149) target = $region136
        $region135: #{tpu_custom_call.1} parent=23 // pred_region
          %p1152 = scmp.lt.s32.totalorder %s76, 1
          %s1153 = scalar_select %p1152, %s76, 1
          %s1154 = scalar_lea.vmem %s59, %s1153
        $region136: #{tpu_custom_call.1} parent=23 // pred_fallthru
          _
        // Predicated region
        $region137: #{tpu_custom_call.1} parent=23 // pred_check
          %p1155 = pneg %p866
        $region138: #{tpu_custom_call.1} parent=23 // pred_check_branch
          %1157 = sbr.rel (%p1155) target = $region140
        $region139: #{tpu_custom_call.1} parent=23 // pred_region
          %p1158 = scmp.lt.s32.totalorder %s76, 1
          %s1159 = scalar_select %p1158, %s76, 1
          %s1160 = smul.addr %s1159, 8
          %s1161 = smul.addr %s1160, 8
          %s1162 = scalar_lea.vmem %s61, %s1161
        $region140: #{tpu_custom_call.1} parent=23 // pred_fallthru
          _
        // Predicated region
        $region141: #{tpu_custom_call.1} parent=23 // pred_check
          %p1163 = pneg %p892
        $region142: #{tpu_custom_call.1} parent=23 // pred_check_branch
          %1165 = sbr.rel (%p1163) target = $region144
        $region143: #{tpu_custom_call.1} parent=23 // pred_region
          %p1166 = scmp.lt.s32.totalorder %s76, 1
          %s1167 = scalar_select %p1166, %s76, 1
          %s1168 = scalar_lea.vmem %s63, %s1167
        $region144: #{tpu_custom_call.1} parent=23 // pred_fallthru
          _
      $region24: #{tpu_custom_call.1} parent=5 // pred_fallthru
        _
      %p1169 = scmp.le.s32.totalorder 1, %s76
      %p1170 = scmp.lt.s32.totalorder %s76, 3
      %p1171 = pnand %p1169, %p1170
      %p1172 = pneg %p1171
      // Predicated region
      $region145: #{tpu_custom_call.1} parent=5 // pred_check
        _
      $region146: #{tpu_custom_call.1} parent=5 // pred_check_branch
        %1174 = sbr.rel (%p1171) target = $region148
      $region147: #{tpu_custom_call.1} parent=5 // pred_region
        %s1175 = ssub.s32 %s76, 1
        %p1176 = pneg %p97
        %p1177 = pneg %p94
        %p1178 = pneg %p118
        %p1179 = pneg %p115
        %p1180 = scmp.lt.s32.totalorder %s81, 1
        %s1181 = scalar_select %p1180, %s81, 1
        %s1182 = scalar_lea.vmem %s5, %s1181
        %p1183 = pneg %p144
        %p1184 = pneg %p141
        %p1185 = scmp.lt.s32.totalorder %s81, 1
        %s1186 = scalar_select %p1185, %s81, 1
        %s1187 = scalar_lea.vmem %s7, %s1186
        %p1188 = pneg %p170
        %p1189 = pneg %p167
        %p1190 = scmp.lt.s32.totalorder %s81, 1
        %s1191 = scalar_select %p1190, %s81, 1
        %s1192 = scalar_lea.vmem %s9, %s1191
        %p1193 = pneg %p196
        %p1194 = pneg %p193
        %p1195 = scmp.lt.s32.totalorder %s81, 1
        %s1196 = scalar_select %p1195, %s81, 1
        %s1197 = scalar_lea.vmem %s11, %s1196
        %p1198 = pneg %p222
        %p1199 = pneg %p219
        %p1200 = scmp.lt.s32.totalorder %s81, 1
        %s1201 = scalar_select %p1200, %s81, 1
        %s1202 = smul.addr %s1201, 8
        %s1203 = smul.addr %s1202, 8
        %s1204 = scalar_lea.vmem %s13, %s1203
        %p1205 = pneg %p248
        %p1206 = pneg %p245
        %p1207 = scmp.lt.s32.totalorder %s81, 1
        %s1208 = scalar_select %p1207, %s81, 1
        %s1209 = smul.addr %s1208, 8
        %s1210 = smul.addr %s1209, 8
        %s1211 = scalar_lea.vmem %s15, %s1210
        %p1212 = pneg %p274
        %p1213 = pneg %p271
        %p1214 = scmp.lt.s32.totalorder %s81, 1
        %s1215 = scalar_select %p1214, %s81, 1
        %s1216 = smul.addr %s1215, 8
        %s1217 = smul.addr %s1216, 8
        %s1218 = scalar_lea.vmem %s17, %s1217
        %p1219 = pneg %p300
        %p1220 = pneg %p297
        %p1221 = scmp.lt.s32.totalorder %s81, 1
        %s1222 = scalar_select %p1221, %s81, 1
        %s1223 = smul.addr %s1222, 2
        %s1224 = smul.addr %s1223, 8
        %s1225 = scalar_lea.vmem %s19, %s1224
        %p1226 = pneg %p326
        %p1227 = pneg %p323
        %p1228 = scmp.lt.s32.totalorder %s81, 1
        %s1229 = scalar_select %p1228, %s81, 1
        %s1230 = scalar_lea.vmem %s21, %s1229
        %p1231 = pneg %p352
        %p1232 = pneg %p349
        %p1233 = scmp.lt.s32.totalorder %s81, 1
        %s1234 = scalar_select %p1233, %s81, 1
        %s1235 = scalar_lea.vmem %s23, %s1234
        %p1236 = pneg %p378
        %p1237 = pneg %p375
        %p1238 = scmp.lt.s32.totalorder %s81, 1
        %s1239 = scalar_select %p1238, %s81, 1
        %s1240 = scalar_lea.vmem %s25, %s1239
        %p1241 = pneg %p404
        %p1242 = pneg %p401
        %p1243 = scmp.lt.s32.totalorder %s81, 1
        %s1244 = scalar_select %p1243, %s81, 1
        %s1245 = scalar_lea.vmem %s27, %s1244
        %p1246 = pneg %p430
        %p1247 = pneg %p427
        %p1248 = scmp.lt.s32.totalorder %s81, 1
        %s1249 = scalar_select %p1248, %s81, 1
        %s1250 = scalar_lea.vmem %s29, %s1249
        %p1251 = pneg %p456
        %p1252 = pneg %p453
        %p1253 = scmp.lt.s32.totalorder %s81, 1
        %s1254 = scalar_select %p1253, %s81, 1
        %s1255 = smul.addr %s1254, 8
        %s1256 = smul.addr %s1255, 8
        %s1257 = scalar_lea.vmem %s31, %s1256
        %p1258 = pneg %p482
        %p1259 = pneg %p479
        %p1260 = scmp.lt.s32.totalorder %s81, 1
        %s1261 = scalar_select %p1260, %s81, 1
        %s1262 = smul.addr %s1261, 8
        %s1263 = smul.addr %s1262, 8
        %s1264 = scalar_lea.vmem %s33, %s1263
        %p1265 = pneg %p508
        %p1266 = pneg %p505
        %p1267 = scmp.lt.s32.totalorder %s81, 1
        %s1268 = scalar_select %p1267, %s81, 1
        %s1269 = smul.addr %s1268, 8
        %s1270 = smul.addr %s1269, 8
        %s1271 = scalar_lea.vmem %s35, %s1270
        %p1272 = pneg %p534
        %p1273 = pneg %p531
        %p1274 = scmp.lt.s32.totalorder %s81, 1
        %s1275 = scalar_select %p1274, %s81, 1
        %s1276 = smul.addr %s1275, 2
        %s1277 = smul.addr %s1276, 8
        %s1278 = scalar_lea.vmem %s37, %s1277
        %p1279 = pneg %p560
        %p1280 = pneg %p557
        %p1281 = scmp.lt.s32.totalorder %s81, 1
        %s1282 = scalar_select %p1281, %s81, 1
        %s1283 = scalar_lea.vmem %s39, %s1282
        %p1284 = pneg %p586
        %p1285 = pneg %p583
        %p1286 = scmp.lt.s32.totalorder %s81, 1
        %s1287 = scalar_select %p1286, %s81, 1
        %s1288 = scalar_lea.vmem %s41, %s1287
        %p1289 = pneg %p612
        %p1290 = pneg %p609
        %p1291 = scmp.lt.s32.totalorder %s81, 1
        %s1292 = scalar_select %p1291, %s81, 1
        %s1293 = scalar_lea.vmem %s43, %s1292
        %p1294 = pneg %p638
        %p1295 = pneg %p635
        %p1296 = scmp.lt.s32.totalorder %s81, 1
        %s1297 = scalar_select %p1296, %s81, 1
        %s1298 = smul.addr %s1297, 4
        %s1299 = smul.addr %s1298, 8
        %s1300 = scalar_lea.vmem %s45, %s1299
        %p1301 = pneg %p664
        %p1302 = pneg %p661
        %p1303 = scmp.lt.s32.totalorder %s81, 1
        %s1304 = scalar_select %p1303, %s81, 1
        %s1305 = scalar_lea.vmem %s47, %s1304
        %p1306 = pneg %p690
        %p1307 = pneg %p687
        %p1308 = scmp.lt.s32.totalorder %s81, 1
        %s1309 = scalar_select %p1308, %s81, 1
        %s1310 = smul.addr %s1309, 8
        %s1311 = smul.addr %s1310, 8
        %s1312 = scalar_lea.vmem %s49, %s1311
        %p1313 = pneg %p716
        %p1314 = pneg %p713
        %p1315 = scmp.lt.s32.totalorder %s81, 1
        %s1316 = scalar_select %p1315, %s81, 1
        %s1317 = scalar_lea.vmem %s51, %s1316
        %p1318 = pneg %p742
        %p1319 = pneg %p739
        %p1320 = scmp.lt.s32.totalorder %s81, 1
        %s1321 = scalar_select %p1320, %s81, 1
        %s1322 = scalar_lea.vmem %s53, %s1321
        %p1323 = pneg %p768
        %p1324 = pneg %p765
        %p1325 = scmp.lt.s32.totalorder %s81, 1
        %s1326 = scalar_select %p1325, %s81, 1
        %s1327 = scalar_lea.vmem %s55, %s1326
        %p1328 = pneg %p794
        %p1329 = pneg %p791
        %p1330 = scmp.lt.s32.totalorder %s81, 1
        %s1331 = scalar_select %p1330, %s81, 1
        %s1332 = smul.addr %s1331, 4
        %s1333 = smul.addr %s1332, 8
        %s1334 = scalar_lea.vmem %s57, %s1333
        %p1335 = pneg %p820
        %p1336 = pneg %p817
        %p1337 = scmp.lt.s32.totalorder %s81, 1
        %s1338 = scalar_select %p1337, %s81, 1
        %s1339 = scalar_lea.vmem %s59, %s1338
        %p1340 = pneg %p846
        %p1341 = pneg %p843
        %p1342 = scmp.lt.s32.totalorder %s81, 1
        %s1343 = scalar_select %p1342, %s81, 1
        %s1344 = smul.addr %s1343, 8
        %s1345 = smul.addr %s1344, 8
        %s1346 = scalar_lea.vmem %s61, %s1345
        %p1347 = pneg %p872
        %p1348 = pneg %p869
        %p1349 = scmp.lt.s32.totalorder %s81, 1
        %s1350 = scalar_select %p1349, %s81, 1
        %s1351 = scalar_lea.vmem %s63, %s1350
        %p1352 = pneg %p898
        %p1353 = pneg %p895
        %p1354 = pneg %p919
        %p1355 = pneg %p916
        %p1356 = pneg %p940
        %p1357 = pneg %p937
        %p1358 = scmp.lt.s32.totalorder %s81, 1
        %s1359 = scalar_select %p1358, %s81, 1
        %s1360 = scalar_lea.vmem %s5, %s1359
        %p1361 = scmp.lt.s32.totalorder %s81, 1
        %s1362 = scalar_select %p1361, %s81, 1
        %s1363 = scalar_lea.vmem %s7, %s1362
        %p1364 = scmp.lt.s32.totalorder %s81, 1
        %s1365 = scalar_select %p1364, %s81, 1
        %s1366 = scalar_lea.vmem %s9, %s1365
        %p1367 = scmp.lt.s32.totalorder %s81, 1
        %s1368 = scalar_select %p1367, %s81, 1
        %s1369 = scalar_lea.vmem %s11, %s1368
        %p1370 = scmp.lt.s32.totalorder %s81, 1
        %s1371 = scalar_select %p1370, %s81, 1
        %s1372 = smul.addr %s1371, 8
        %s1373 = smul.addr %s1372, 8
        %s1374 = scalar_lea.vmem %s13, %s1373
        %p1375 = scmp.lt.s32.totalorder %s81, 1
        %s1376 = scalar_select %p1375, %s81, 1
        %s1377 = smul.addr %s1376, 8
        %s1378 = smul.addr %s1377, 8
        %s1379 = scalar_lea.vmem %s15, %s1378
        %p1380 = scmp.lt.s32.totalorder %s81, 1
        %s1381 = scalar_select %p1380, %s81, 1
        %s1382 = smul.addr %s1381, 8
        %s1383 = smul.addr %s1382, 8
        %s1384 = scalar_lea.vmem %s17, %s1383
        %p1385 = scmp.lt.s32.totalorder %s81, 1
        %s1386 = scalar_select %p1385, %s81, 1
        %s1387 = smul.addr %s1386, 2
        %s1388 = smul.addr %s1387, 8
        %s1389 = scalar_lea.vmem %s19, %s1388
        %p1390 = scmp.lt.s32.totalorder %s81, 1
        %s1391 = scalar_select %p1390, %s81, 1
        %s1392 = scalar_lea.vmem %s21, %s1391
        %p1393 = scmp.lt.s32.totalorder %s81, 1
        %s1394 = scalar_select %p1393, %s81, 1
        %s1395 = scalar_lea.vmem %s23, %s1394
        %p1396 = scmp.lt.s32.totalorder %s81, 1
        %s1397 = scalar_select %p1396, %s81, 1
        %s1398 = scalar_lea.vmem %s25, %s1397
        %p1399 = scmp.lt.s32.totalorder %s81, 1
        %s1400 = scalar_select %p1399, %s81, 1
        %s1401 = scalar_lea.vmem %s27, %s1400
        %p1402 = scmp.lt.s32.totalorder %s81, 1
        %s1403 = scalar_select %p1402, %s81, 1
        %s1404 = scalar_lea.vmem %s29, %s1403
        %p1405 = scmp.lt.s32.totalorder %s81, 1
        %s1406 = scalar_select %p1405, %s81, 1
        %s1407 = smul.addr %s1406, 8
        %s1408 = smul.addr %s1407, 8
        %s1409 = scalar_lea.vmem %s31, %s1408
        %p1410 = scmp.lt.s32.totalorder %s81, 1
        %s1411 = scalar_select %p1410, %s81, 1
        %s1412 = smul.addr %s1411, 8
        %s1413 = smul.addr %s1412, 8
        %s1414 = scalar_lea.vmem %s33, %s1413
        %p1415 = scmp.lt.s32.totalorder %s81, 1
        %s1416 = scalar_select %p1415, %s81, 1
        %s1417 = smul.addr %s1416, 8
        %s1418 = smul.addr %s1417, 8
        %s1419 = scalar_lea.vmem %s35, %s1418
        %p1420 = scmp.lt.s32.totalorder %s81, 1
        %s1421 = scalar_select %p1420, %s81, 1
        %s1422 = smul.addr %s1421, 2
        %s1423 = smul.addr %s1422, 8
        %s1424 = scalar_lea.vmem %s37, %s1423
        %p1425 = scmp.lt.s32.totalorder %s81, 1
        %s1426 = scalar_select %p1425, %s81, 1
        %s1427 = scalar_lea.vmem %s39, %s1426
        %p1428 = scmp.lt.s32.totalorder %s81, 1
        %s1429 = scalar_select %p1428, %s81, 1
        %s1430 = scalar_lea.vmem %s41, %s1429
        %p1431 = scmp.lt.s32.totalorder %s81, 1
        %s1432 = scalar_select %p1431, %s81, 1
        %s1433 = scalar_lea.vmem %s43, %s1432
        %p1434 = scmp.lt.s32.totalorder %s81, 1
        %s1435 = scalar_select %p1434, %s81, 1
        %s1436 = smul.addr %s1435, 4
        %s1437 = smul.addr %s1436, 8
        %s1438 = scalar_lea.vmem %s45, %s1437
        %p1439 = scmp.lt.s32.totalorder %s81, 1
        %s1440 = scalar_select %p1439, %s81, 1
        %s1441 = scalar_lea.vmem %s47, %s1440
        %p1442 = scmp.lt.s32.totalorder %s81, 1
        %s1443 = scalar_select %p1442, %s81, 1
        %s1444 = smul.addr %s1443, 8
        %s1445 = smul.addr %s1444, 8
        %s1446 = scalar_lea.vmem %s49, %s1445
        %p1447 = scmp.lt.s32.totalorder %s81, 1
        %s1448 = scalar_select %p1447, %s81, 1
        %s1449 = scalar_lea.vmem %s51, %s1448
        %p1450 = scmp.lt.s32.totalorder %s81, 1
        %s1451 = scalar_select %p1450, %s81, 1
        %s1452 = scalar_lea.vmem %s53, %s1451
        %p1453 = scmp.lt.s32.totalorder %s81, 1
        %s1454 = scalar_select %p1453, %s81, 1
        %s1455 = scalar_lea.vmem %s55, %s1454
        %p1456 = scmp.lt.s32.totalorder %s81, 1
        %s1457 = scalar_select %p1456, %s81, 1
        %s1458 = smul.addr %s1457, 4
        %s1459 = smul.addr %s1458, 8
        %s1460 = scalar_lea.vmem %s57, %s1459
        %p1461 = scmp.lt.s32.totalorder %s81, 1
        %s1462 = scalar_select %p1461, %s81, 1
        %s1463 = scalar_lea.vmem %s59, %s1462
        %p1464 = scmp.lt.s32.totalorder %s81, 1
        %s1465 = scalar_select %p1464, %s81, 1
        %s1466 = smul.addr %s1465, 8
        %s1467 = smul.addr %s1466, 8
        %s1468 = scalar_lea.vmem %s61, %s1467
        %p1469 = scmp.lt.s32.totalorder %s81, 1
        %s1470 = scalar_select %p1469, %s81, 1
        %s1471 = scalar_lea.vmem %s63, %s1470
        %p1472 = scmp.eq.s32.totalorder %s81, 0
        // Predicated region
        $region149: #{tpu_custom_call.1} parent=147 // pred_check
          %p1473 = pneg %p1472
        $region150: #{tpu_custom_call.1} parent=147 // pred_check_branch
          %1475 = sbr.rel (%p1473) target = $region152
        $region151: #{tpu_custom_call.1} parent=147 // pred_region
          %v1476 = vld [vmem:[%s1] sm:$0xff]
          %v1477 = vld [vmem:[%s1 + $0x8] sm:$0xff]
          %vm1478 = vcmask 261120
          %1479 = vst.msk [vmem:[#allocation2] sm:$0xff] %vm1478, %v1476
          %1480 = vst.msk [vmem:[#allocation2 + $0x8] sm:$0xff] %vm1478, %v1477
          %v1481 = vld [vmem:[%s3] sm:$0xff]
          %v1482 = vld [vmem:[%s3 + $0x8] sm:$0xff]
          %v1483 = vld [vmem:[%s3 + $0x10] sm:$0xff]
          %v1484 = vld [vmem:[%s3 + $0x18] sm:$0xff]
          %1485 = vst.msk [vmem:[#allocation3] sm:$0xff] %vm1478, %v1481
          %1486 = vst.msk [vmem:[#allocation3 + $0x8] sm:$0xff] %vm1478, %v1482
          %1487 = vst.msk [vmem:[#allocation3 + $0x10] sm:$0xff] %vm1478, %v1483
          %1488 = vst.msk [vmem:[#allocation3 + $0x18] sm:$0xff] %vm1478, %v1484
        $region152: #{tpu_custom_call.1} parent=147 // pred_fallthru
          _
        %v1489 = vld [vmem:[#allocation2] sm:$0xff]
        %v1490 = vld [vmem:[#allocation2 + $0x8] sm:$0xff]
        %v1491 = vld [vmem:[#allocation3] sm:$0xff]
        %v1492 = vld [vmem:[#allocation3 + $0x8] sm:$0xff]
        %v1493 = vld [vmem:[#allocation3 + $0x10] sm:$0xff]
        %v1494 = vld [vmem:[#allocation3 + $0x18] sm:$0xff]
        %v1495 = vld [vmem:[%s1360] sm:$0x1]
        %v1496 = vld [vmem:[%s1363] sm:$0x1]
        %vm1497 = vcmask 261120
        %v1498 = vsel %vm1497, %v1489, 0.0
        %1499 = vadd.xlane.f32.xlu0 %v1498
        %v1500 = vpop.xlane.xlu0 %1499
        %v1501 = vsel %vm1497, %v1490, 0.0
        %1502 = vadd.xlane.f32.xlu0 %v1501
        %v1503 = vpop.xlane.xlu0 %1502
        %v1504 = vrcp.pop 32.0
        %v1505 = vmul.f32 %v1500, %v1504
        %v1506 = vmul.f32 %v1503, %v1504
        %v1507 = vsub.f32 %v1489, %v1505
        %v1508 = vsub.f32 %v1490, %v1506
        %v1509 = vmul.f32 %v1507, %v1507
        %v1510 = vmul.f32 %v1508, %v1508
        %v1511 = vsel %vm1497, %v1509, 0.0
        %1512 = vadd.xlane.f32.xlu0 %v1511
        %v1513 = vpop.xlane.xlu0 %1512
        %v1514 = vsel %vm1497, %v1510, 0.0
        %1515 = vadd.xlane.f32.xlu0 %v1514
        %v1516 = vpop.xlane.xlu0 %1515
        %v1517 = vmul.f32 %v1513, %v1504
        %v1518 = vmul.f32 %v1516, %v1504
        %v1519 = vadd.f32 %v1517, 1e-05
        %v1520 = vadd.f32 %v1518, 1e-05
        %v1521 = vrsqrt.pop %v1519
        %v1522 = vrsqrt.pop %v1520
        %v1523 = vmul.f32 %v1507, %v1521
        %v1524 = vmul.f32 %v1508, %v1522
        %v1526 = vlaneseq
        %v1527 = vshrl.u32 %v1526, 7
        %v1528 = vsub.s32 0, %v1527
        %v1529 = vrot.slane %v1495, %v1528
        %v1531 = vmul.f32 %v1523, %v1529
        %v1532 = vmul.f32 %v1524, %v1529
        %v1534 = vlaneseq
        %v1535 = vshrl.u32 %v1534, 7
        %v1536 = vsub.s32 0, %v1535
        %v1537 = vrot.slane %v1496, %v1536
        %v1539 = vadd.f32 %v1531, %v1537
        %v1540 = vadd.f32 %v1532, %v1537
        %v1541 = vld [vmem:[%s1366] sm:$0x1]
        %v1542 = vld [vmem:[%s1369] sm:$0x1]
        %v1543 = vsel %vm1497, %v1491, 0.0
        %1544 = vadd.xlane.f32.xlu0 %v1543
        %v1545 = vpop.xlane.xlu0 %1544
        %v1546 = vsel %vm1497, %v1492, 0.0
        %1547 = vadd.xlane.f32.xlu0 %v1546
        %v1548 = vpop.xlane.xlu0 %1547
        %v1549 = vsel %vm1497, %v1493, 0.0
        %1550 = vadd.xlane.f32.xlu0 %v1549
        %v1551 = vpop.xlane.xlu0 %1550
        %v1552 = vsel %vm1497, %v1494, 0.0
        %1553 = vadd.xlane.f32.xlu0 %v1552
        %v1554 = vpop.xlane.xlu0 %1553
        %v1555 = vmul.f32 %v1545, %v1504
        %v1556 = vmul.f32 %v1548, %v1504
        %v1557 = vmul.f32 %v1551, %v1504
        %v1558 = vmul.f32 %v1554, %v1504
        %v1559 = vsub.f32 %v1491, %v1555
        %v1560 = vsub.f32 %v1492, %v1556
        %v1561 = vsub.f32 %v1493, %v1557
        %v1562 = vsub.f32 %v1494, %v1558
        %v1563 = vmul.f32 %v1559, %v1559
        %v1564 = vmul.f32 %v1560, %v1560
        %v1565 = vmul.f32 %v1561, %v1561
        %v1566 = vmul.f32 %v1562, %v1562
        %v1567 = vsel %vm1497, %v1563, 0.0
        %1568 = vadd.xlane.f32.xlu0 %v1567
        %v1569 = vpop.xlane.xlu0 %1568
        %v1570 = vsel %vm1497, %v1564, 0.0
        %1571 = vadd.xlane.f32.xlu0 %v1570
        %v1572 = vpop.xlane.xlu0 %1571
        %v1573 = vsel %vm1497, %v1565, 0.0
        %1574 = vadd.xlane.f32.xlu0 %v1573
        %v1575 = vpop.xlane.xlu0 %1574
        %v1576 = vsel %vm1497, %v1566, 0.0
        %1577 = vadd.xlane.f32.xlu0 %v1576
        %v1578 = vpop.xlane.xlu0 %1577
        %v1579 = vmul.f32 %v1569, %v1504
        %v1580 = vmul.f32 %v1572, %v1504
        %v1581 = vmul.f32 %v1575, %v1504
        %v1582 = vmul.f32 %v1578, %v1504
        %v1583 = vadd.f32 %v1579, 1e-05
        %v1584 = vadd.f32 %v1580, 1e-05
        %v1585 = vadd.f32 %v1581, 1e-05
        %v1586 = vadd.f32 %v1582, 1e-05
        %v1587 = vrsqrt.pop %v1583
        %v1588 = vrsqrt.pop %v1584
        %v1589 = vrsqrt.pop %v1585
        %v1590 = vrsqrt.pop %v1586
        %v1591 = vmul.f32 %v1559, %v1587
        %v1592 = vmul.f32 %v1560, %v1588
        %v1593 = vmul.f32 %v1561, %v1589
        %v1594 = vmul.f32 %v1562, %v1590
        %v1596 = vlaneseq
        %v1597 = vshrl.u32 %v1596, 7
        %v1598 = vsub.s32 0, %v1597
        %v1599 = vrot.slane %v1541, %v1598
        %v1601 = vmul.f32 %v1591, %v1599
        %v1602 = vmul.f32 %v1592, %v1599
        %v1603 = vmul.f32 %v1593, %v1599
        %v1604 = vmul.f32 %v1594, %v1599
        %v1606 = vlaneseq
        %v1607 = vshrl.u32 %v1606, 7
        %v1608 = vsub.s32 0, %v1607
        %v1609 = vrot.slane %v1542, %v1608
        %v1611 = vadd.f32 %v1601, %v1609
        %v1612 = vadd.f32 %v1602, %v1609
        %v1613 = vadd.f32 %v1603, %v1609
        %v1614 = vadd.f32 %v1604, %v1609
        %v1615 = vld [vmem:[%s1374] sm:$0xff]
        %v1616 = vld [vmem:[%s1374 + $0x8] sm:$0xff]
        %v1617 = vld [vmem:[%s1374 + $0x10] sm:$0xff]
        %v1618 = vld [vmem:[%s1374 + $0x18] sm:$0xff]
        %v1620 = vsel %vm1497, %v1539, 0
        %v1623 = vsel %vm1497, %v1540, 0
        %1625 = vmatprep.subr.mxu0 0.0
        %1626 = vmatpush1.msra.mxu0 %v1615
        %1627 = vmatprep.subr.mxu0 0.0
        %1628 = vmatpush1.msra.mxu0 %v1616
        %1629 = vmatprep.subr.mxu0 0.0
        %1630 = vmatpush1.msra.mxu0 %v1617
        %1631 = vmatprep.subr.mxu0 0.0
        %1632 = vmatpush1.msra.mxu0 %v1618
        %1633 = vmatprep.subr.mxu0 0.0
        %1634 = vmatpush1.msra.mxu0 0.0
        %1635 = vmatprep.subr.mxu0 0.0
        %1636 = vmatpush1.msra.mxu0 0.0
        %1637 = vmatprep.subr.mxu0 0.0
        %1638 = vmatpush1.msra.mxu0 0.0
        %1639 = vmatprep.subr.mxu0 0.0
        %1640 = vmatpush1.msra.mxu0 0.0
        %1641 = vmatprep.subr.mxu0 0.0
        %1642 = vmatpush1.msra.mxu0 0.0
        %1643 = vmatprep.subr.mxu0 0.0
        %1644 = vmatpush1.msra.mxu0 0.0
        %1645 = vmatprep.subr.mxu0 0.0
        %1646 = vmatpush1.msra.mxu0 0.0
        %1647 = vmatprep.subr.mxu0 0.0
        %1648 = vmatpush1.msra.mxu0 0.0
        %1649 = vmatprep.subr.mxu0 0.0
        %1650 = vmatpush1.msra.mxu0 0.0
        %1651 = vmatprep.subr.mxu0 0.0
        %1652 = vmatpush1.msra.mxu0 0.0
        %1653 = vmatprep.subr.mxu0 0.0
        %1654 = vmatpush1.msra.mxu0 0.0
        %1655 = vmatprep.subr.mxu0 0.0
        %1656 = vmatpush1.msra.mxu0 0.0
        %1657 = vmatprep.subr.mxu0 0.0
        %1658 = vmatpush1.msra.mxu0 0.0
        %1659 = vmatprep.subr.mxu0 0.0
        %1660 = vmatpush1.msra.mxu0 0.0
        %1661 = vmatprep.subr.mxu0 0.0
        %1662 = vmatpush1.msra.mxu0 0.0
        %1663 = vmatprep.subr.mxu0 0.0
        %1664 = vmatpush1.msra.mxu0 0.0
        %1665 = vmatprep.subr.mxu0 0.0
        %1666 = vmatpush1.msra.mxu0 0.0
        %1667 = vmatprep.subr.mxu0 0.0
        %1668 = vmatpush1.msra.mxu0 0.0
        %1669 = vmatprep.subr.mxu0 0.0
        %1670 = vmatpush1.msra.mxu0 0.0
        %1671 = vmatprep.subr.mxu0 0.0
        %1672 = vmatpush1.msra.mxu0 0.0
        %1673 = vmatprep.subr.mxu0 0.0
        %1674 = vmatpush1.msra.mxu0 0.0
        %1675 = vmatprep.subr.mxu0 0.0
        %1676 = vmatpush1.msra.mxu0 0.0
        %1677 = vmatprep.subr.mxu0 0.0
        %1678 = vmatpush1.msra.mxu0 0.0
        %1679 = vmatprep.subr.mxu0 0.0
        %1680 = vmatpush1.msra.mxu0 0.0
        %1681 = vmatprep.subr.mxu0 0.0
        %1682 = vmatpush1.msra.mxu0 0.0
        %1683 = vmatprep.subr.mxu0 0.0
        %1684 = vmatpush1.msra.mxu0 0.0
        %1685 = vmatprep.subr.mxu0 0.0
        %1686 = vmatpush1.msra.mxu0 0.0
        %1687 = vmatprep.subr.mxu0 0.0
        %1688 = vmatpush1.msra.mxu0 0.0
        %1689 = vmatprep.mubr.f32.mxu0 0.0
        %1690 = vmatmul.mubr.f32.gmra.mrb[0].mxu0 %v1620
        %v1691 = vpop.f32.mrb[0].mxu0
        %v1692 = vadd.f32 0.0, %v1691
        %v1693 = vpop.f32.mrb[0].mxu0
        %1694 = vmatprep.mubr.f32.mxu0 0.0
        %1695 = vmatmul.mubr.f32.gmra.mrb[0].mxu0 %v1623
        %v1696 = vpop.f32.mrb[0].mxu0
        %v1697 = vadd.f32 0.0, %v1696
        %v1698 = vpop.f32.mrb[0].mxu0
        %1699 = vdwg.mxu0
        %v1700 = vld [vmem:[%s1379] sm:$0xff]
        %v1701 = vld [vmem:[%s1379 + $0x8] sm:$0xff]
        %v1702 = vld [vmem:[%s1379 + $0x10] sm:$0xff]
        %v1703 = vld [vmem:[%s1379 + $0x18] sm:$0xff]
        %v1705 = vsel %vm1497, %v1611, 0
        %v1708 = vsel %vm1497, %v1612, 0
        %v1711 = vsel %vm1497, %v1613, 0
        %v1714 = vsel %vm1497, %v1614, 0
        %1716 = vmatprep.subr.mxu0 0.0
        %1717 = vmatpush1.msra.mxu0 %v1700
        %1718 = vmatprep.subr.mxu0 0.0
        %1719 = vmatpush1.msra.mxu0 %v1701
        %1720 = vmatprep.subr.mxu0 0.0
        %1721 = vmatpush1.msra.mxu0 %v1702
        %1722 = vmatprep.subr.mxu0 0.0
        %1723 = vmatpush1.msra.mxu0 %v1703
        %1724 = vmatprep.subr.mxu0 0.0
        %1725 = vmatpush1.msra.mxu0 0.0
        %1726 = vmatprep.subr.mxu0 0.0
        %1727 = vmatpush1.msra.mxu0 0.0
        %1728 = vmatprep.subr.mxu0 0.0
        %1729 = vmatpush1.msra.mxu0 0.0
        %1730 = vmatprep.subr.mxu0 0.0
        %1731 = vmatpush1.msra.mxu0 0.0
        %1732 = vmatprep.subr.mxu0 0.0
        %1733 = vmatpush1.msra.mxu0 0.0
        %1734 = vmatprep.subr.mxu0 0.0
        %1735 = vmatpush1.msra.mxu0 0.0
        %1736 = vmatprep.subr.mxu0 0.0
        %1737 = vmatpush1.msra.mxu0 0.0
        %1738 = vmatprep.subr.mxu0 0.0
        %1739 = vmatpush1.msra.mxu0 0.0
        %1740 = vmatprep.subr.mxu0 0.0
        %1741 = vmatpush1.msra.mxu0 0.0
        %1742 = vmatprep.subr.mxu0 0.0
        %1743 = vmatpush1.msra.mxu0 0.0
        %1744 = vmatprep.subr.mxu0 0.0
        %1745 = vmatpush1.msra.mxu0 0.0
        %1746 = vmatprep.subr.mxu0 0.0
        %1747 = vmatpush1.msra.mxu0 0.0
        %1748 = vmatprep.subr.mxu0 0.0
        %1749 = vmatpush1.msra.mxu0 0.0
        %1750 = vmatprep.subr.mxu0 0.0
        %1751 = vmatpush1.msra.mxu0 0.0
        %1752 = vmatprep.subr.mxu0 0.0
        %1753 = vmatpush1.msra.mxu0 0.0
        %1754 = vmatprep.subr.mxu0 0.0
        %1755 = vmatpush1.msra.mxu0 0.0
        %1756 = vmatprep.subr.mxu0 0.0
        %1757 = vmatpush1.msra.mxu0 0.0
        %1758 = vmatprep.subr.mxu0 0.0
        %1759 = vmatpush1.msra.mxu0 0.0
        %1760 = vmatprep.subr.mxu0 0.0
        %1761 = vmatpush1.msra.mxu0 0.0
        %1762 = vmatprep.subr.mxu0 0.0
        %1763 = vmatpush1.msra.mxu0 0.0
        %1764 = vmatprep.subr.mxu0 0.0
        %1765 = vmatpush1.msra.mxu0 0.0
        %1766 = vmatprep.subr.mxu0 0.0
        %1767 = vmatpush1.msra.mxu0 0.0
        %1768 = vmatprep.subr.mxu0 0.0
        %1769 = vmatpush1.msra.mxu0 0.0
        %1770 = vmatprep.subr.mxu0 0.0
        %1771 = vmatpush1.msra.mxu0 0.0
        %1772 = vmatprep.subr.mxu0 0.0
        %1773 = vmatpush1.msra.mxu0 0.0
        %1774 = vmatprep.subr.mxu0 0.0
        %1775 = vmatpush1.msra.mxu0 0.0
        %1776 = vmatprep.subr.mxu0 0.0
        %1777 = vmatpush1.msra.mxu0 0.0
        %1778 = vmatprep.subr.mxu0 0.0
        %1779 = vmatpush1.msra.mxu0 0.0
        %1780 = vmatprep.mubr.f32.mxu0 0.0
        %1781 = vmatmul.mubr.f32.gmra.mrb[0].mxu0 %v1705
        %v1782 = vpop.f32.mrb[0].mxu0
        %v1783 = vadd.f32 0.0, %v1782
        %v1784 = vpop.f32.mrb[0].mxu0
        %1785 = vmatprep.mubr.f32.mxu0 0.0
        %1786 = vmatmul.mubr.f32.gmra.mrb[0].mxu0 %v1708
        %v1787 = vpop.f32.mrb[0].mxu0
        %v1788 = vadd.f32 0.0, %v1787
        %v1789 = vpop.f32.mrb[0].mxu0
        %1790 = vmatprep.mubr.f32.mxu0 0.0
        %1791 = vmatmul.mubr.f32.gmra.mrb[0].mxu0 %v1711
        %v1792 = vpop.f32.mrb[0].mxu0
        %v1793 = vadd.f32 0.0, %v1792
        %v1794 = vpop.f32.mrb[0].mxu0
        %1795 = vmatprep.mubr.f32.mxu0 0.0
        %1796 = vmatmul.mubr.f32.gmra.mrb[0].mxu0 %v1714
        %v1797 = vpop.f32.mrb[0].mxu0
        %v1798 = vadd.f32 0.0, %v1797
        %v1799 = vpop.f32.mrb[0].mxu0
        %1800 = vdwg.mxu0
        %v1801 = vld [vmem:[%s1384] sm:$0xff]
        %v1802 = vld [vmem:[%s1384 + $0x8] sm:$0xff]
        %v1803 = vld [vmem:[%s1384 + $0x10] sm:$0xff]
        %v1804 = vld [vmem:[%s1384 + $0x18] sm:$0xff]
        %1805 = vmatprep.subr.mxu0 0.0
        %1806 = vmatpush1.msra.mxu0 %v1801
        %1807 = vmatprep.subr.mxu0 0.0
        %1808 = vmatpush1.msra.mxu0 %v1802
        %1809 = vmatprep.subr.mxu0 0.0
        %1810 = vmatpush1.msra.mxu0 %v1803
        %1811 = vmatprep.subr.mxu0 0.0
        %1812 = vmatpush1.msra.mxu0 %v1804
        %1813 = vmatprep.subr.mxu0 0.0
        %1814 = vmatpush1.msra.mxu0 0.0
        %1815 = vmatprep.subr.mxu0 0.0
        %1816 = vmatpush1.msra.mxu0 0.0
        %1817 = vmatprep.subr.mxu0 0.0
        %1818 = vmatpush1.msra.mxu0 0.0
        %1819 = vmatprep.subr.mxu0 0.0
        %1820 = vmatpush1.msra.mxu0 0.0
        %1821 = vmatprep.subr.mxu0 0.0
        %1822 = vmatpush1.msra.mxu0 0.0
        %1823 = vmatprep.subr.mxu0 0.0
        %1824 = vmatpush1.msra.mxu0 0.0
        %1825 = vmatprep.subr.mxu0 0.0
        %1826 = vmatpush1.msra.mxu0 0.0
        %1827 = vmatprep.subr.mxu0 0.0
        %1828 = vmatpush1.msra.mxu0 0.0
        %1829 = vmatprep.subr.mxu0 0.0
        %1830 = vmatpush1.msra.mxu0 0.0
        %1831 = vmatprep.subr.mxu0 0.0
        %1832 = vmatpush1.msra.mxu0 0.0
        %1833 = vmatprep.subr.mxu0 0.0
        %1834 = vmatpush1.msra.mxu0 0.0
        %1835 = vmatprep.subr.mxu0 0.0
        %1836 = vmatpush1.msra.mxu0 0.0
        %1837 = vmatprep.subr.mxu0 0.0
        %1838 = vmatpush1.msra.mxu0 0.0
        %1839 = vmatprep.subr.mxu0 0.0
        %1840 = vmatpush1.msra.mxu0 0.0
        %1841 = vmatprep.subr.mxu0 0.0
        %1842 = vmatpush1.msra.mxu0 0.0
        %1843 = vmatprep.subr.mxu0 0.0
        %1844 = vmatpush1.msra.mxu0 0.0
        %1845 = vmatprep.subr.mxu0 0.0
        %1846 = vmatpush1.msra.mxu0 0.0
        %1847 = vmatprep.subr.mxu0 0.0
        %1848 = vmatpush1.msra.mxu0 0.0
        %1849 = vmatprep.subr.mxu0 0.0
        %1850 = vmatpush1.msra.mxu0 0.0
        %1851 = vmatprep.subr.mxu0 0.0
        %1852 = vmatpush1.msra.mxu0 0.0
        %1853 = vmatprep.subr.mxu0 0.0
        %1854 = vmatpush1.msra.mxu0 0.0
        %1855 = vmatprep.subr.mxu0 0.0
        %1856 = vmatpush1.msra.mxu0 0.0
        %1857 = vmatprep.subr.mxu0 0.0
        %1858 = vmatpush1.msra.mxu0 0.0
        %1859 = vmatprep.subr.mxu0 0.0
        %1860 = vmatpush1.msra.mxu0 0.0
        %1861 = vmatprep.subr.mxu0 0.0
        %1862 = vmatpush1.msra.mxu0 0.0
        %1863 = vmatprep.subr.mxu0 0.0
        %1864 = vmatpush1.msra.mxu0 0.0
        %1865 = vmatprep.subr.mxu0 0.0
        %1866 = vmatpush1.msra.mxu0 0.0
        %1867 = vmatprep.subr.mxu0 0.0
        %1868 = vmatpush1.msra.mxu0 0.0
        %1869 = vmatprep.mubr.f32.mxu0 0.0
        %1870 = vmatmul.mubr.f32.gmra.mrb[0].mxu0 %v1705
        %v1871 = vpop.f32.mrb[0].mxu0
        %v1872 = vadd.f32 0.0, %v1871
        %v1873 = vpop.f32.mrb[0].mxu0
        %1874 = vmatprep.mubr.f32.mxu0 0.0
        %1875 = vmatmul.mubr.f32.gmra.mrb[0].mxu0 %v1708
        %v1876 = vpop.f32.mrb[0].mxu0
        %v1877 = vadd.f32 0.0, %v1876
        %v1878 = vpop.f32.mrb[0].mxu0
        %1879 = vmatprep.mubr.f32.mxu0 0.0
        %1880 = vmatmul.mubr.f32.gmra.mrb[0].mxu0 %v1711
        %v1881 = vpop.f32.mrb[0].mxu0
        %v1882 = vadd.f32 0.0, %v1881
        %v1883 = vpop.f32.mrb[0].mxu0
        %1884 = vmatprep.mubr.f32.mxu0 0.0
        %1885 = vmatmul.mubr.f32.gmra.mrb[0].mxu0 %v1714
        %v1886 = vpop.f32.mrb[0].mxu0
        %v1887 = vadd.f32 0.0, %v1886
        %v1888 = vpop.f32.mrb[0].mxu0
        %1889 = vdwg.mxu0
        %vm1890 = vcmask 64512
        %v1892 = vsel %vm1890, %v1692, 0
        %v1895 = vsel %vm1890, %v1783, 0
        %v1898 = vsel %vm1890, %v1788, 0
        %1900 = vmatprep.subr.mxu0 0.0
        %1901 = vmatpush1.xpose.msra.mxu0 %v1895
        %1902 = vmatprep.subr.mxu0 0.0
        %1903 = vmatpush1.xpose.msra.mxu0 %v1898
        %1904 = vmatprep.subr.mxu0 0.0
        %1905 = vmatpush1.xpose.msra.mxu0 0.0
        %1906 = vmatprep.subr.mxu0 0.0
        %1907 = vmatpush1.xpose.msra.mxu0 0.0
        %1908 = vmatprep.subr.mxu0 0.0
        %1909 = vmatpush1.xpose.msra.mxu0 0.0
        %1910 = vmatprep.subr.mxu0 0.0
        %1911 = vmatpush1.xpose.msra.mxu0 0.0
        %1912 = vmatprep.subr.mxu0 0.0
        %1913 = vmatpush1.xpose.msra.mxu0 0.0
        %1914 = vmatprep.subr.mxu0 0.0
        %1915 = vmatpush1.xpose.msra.mxu0 0.0
        %1916 = vmatprep.subr.mxu0 0.0
        %1917 = vmatpush1.xpose.msra.mxu0 0.0
        %1918 = vmatprep.subr.mxu0 0.0
        %1919 = vmatpush1.xpose.msra.mxu0 0.0
        %1920 = vmatprep.subr.mxu0 0.0
        %1921 = vmatpush1.xpose.msra.mxu0 0.0
        %1922 = vmatprep.subr.mxu0 0.0
        %1923 = vmatpush1.xpose.msra.mxu0 0.0
        %1924 = vmatprep.subr.mxu0 0.0
        %1925 = vmatpush1.xpose.msra.mxu0 0.0
        %1926 = vmatprep.subr.mxu0 0.0
        %1927 = vmatpush1.xpose.msra.mxu0 0.0
        %1928 = vmatprep.subr.mxu0 0.0
        %1929 = vmatpush1.xpose.msra.mxu0 0.0
        %1930 = vmatprep.subr.mxu0 0.0
        %1931 = vmatpush1.xpose.msra.mxu0 0.0
        %1932 = vmatprep.subr.mxu0 0.0
        %1933 = vmatpush1.xpose.msra.mxu0 0.0
        %1934 = vmatprep.subr.mxu0 0.0
        %1935 = vmatpush1.xpose.msra.mxu0 0.0
        %1936 = vmatprep.subr.mxu0 0.0
        %1937 = vmatpush1.xpose.msra.mxu0 0.0
        %1938 = vmatprep.subr.mxu0 0.0
        %1939 = vmatpush1.xpose.msra.mxu0 0.0
        %1940 = vmatprep.subr.mxu0 0.0
        %1941 = vmatpush1.xpose.msra.mxu0 0.0
        %1942 = vmatprep.subr.mxu0 0.0
        %1943 = vmatpush1.xpose.msra.mxu0 0.0
        %1944 = vmatprep.subr.mxu0 0.0
        %1945 = vmatpush1.xpose.msra.mxu0 0.0
        %1946 = vmatprep.subr.mxu0 0.0
        %1947 = vmatpush1.xpose.msra.mxu0 0.0
        %1948 = vmatprep.subr.mxu0 0.0
        %1949 = vmatpush1.xpose.msra.mxu0 0.0
        %1950 = vmatprep.subr.mxu0 0.0
        %1951 = vmatpush1.xpose.msra.mxu0 0.0
        %1952 = vmatprep.subr.mxu0 0.0
        %1953 = vmatpush1.xpose.msra.mxu0 0.0
        %1954 = vmatprep.subr.mxu0 0.0
        %1955 = vmatpush1.xpose.msra.mxu0 0.0
        %1956 = vmatprep.subr.mxu0 0.0
        %1957 = vmatpush1.xpose.msra.mxu0 0.0
        %1958 = vmatprep.subr.mxu0 0.0
        %1959 = vmatpush1.xpose.msra.mxu0 0.0
        %1960 = vmatprep.subr.mxu0 0.0
        %1961 = vmatpush1.xpose.msra.mxu0 0.0
        %1962 = vmatprep.subr.mxu0 0.0
        %1963 = vmatpush1.xpose.msra.mxu0 0.0
        %1964 = vmatprep.mubr.f32.mxu0 0.0
        %1965 = vmatmul.mubr.f32.gmra.mrb[0].mxu0 %v1892
        %v1966 = vpop.f32.mrb[0].mxu0
        %v1967 = vadd.f32 0.0, %v1966
        %v1968 = vpop.f32.mrb[0].mxu0
        %1969 = vdwg.mxu0
        %v1971 = vsel %vm1890, %v1697, 0
        %v1974 = vsel %vm1890, %v1793, 0
        %v1977 = vsel %vm1890, %v1798, 0
        %1979 = vmatprep.subr.mxu0 0.0
        %1980 = vmatpush1.xpose.msra.mxu0 %v1974
        %1981 = vmatprep.subr.mxu0 0.0
        %1982 = vmatpush1.xpose.msra.mxu0 %v1977
        %1983 = vmatprep.subr.mxu0 0.0
        %1984 = vmatpush1.xpose.msra.mxu0 0.0
        %1985 = vmatprep.subr.mxu0 0.0
        %1986 = vmatpush1.xpose.msra.mxu0 0.0
        %1987 = vmatprep.subr.mxu0 0.0
        %1988 = vmatpush1.xpose.msra.mxu0 0.0
        %1989 = vmatprep.subr.mxu0 0.0
        %1990 = vmatpush1.xpose.msra.mxu0 0.0
        %1991 = vmatprep.subr.mxu0 0.0
        %1992 = vmatpush1.xpose.msra.mxu0 0.0
        %1993 = vmatprep.subr.mxu0 0.0
        %1994 = vmatpush1.xpose.msra.mxu0 0.0
        %1995 = vmatprep.subr.mxu0 0.0
        %1996 = vmatpush1.xpose.msra.mxu0 0.0
        %1997 = vmatprep.subr.mxu0 0.0
        %1998 = vmatpush1.xpose.msra.mxu0 0.0
        %1999 = vmatprep.subr.mxu0 0.0
        %2000 = vmatpush1.xpose.msra.mxu0 0.0
        %2001 = vmatprep.subr.mxu0 0.0
        %2002 = vmatpush1.xpose.msra.mxu0 0.0
        %2003 = vmatprep.subr.mxu0 0.0
        %2004 = vmatpush1.xpose.msra.mxu0 0.0
        %2005 = vmatprep.subr.mxu0 0.0
        %2006 = vmatpush1.xpose.msra.mxu0 0.0
        %2007 = vmatprep.subr.mxu0 0.0
        %2008 = vmatpush1.xpose.msra.mxu0 0.0
        %2009 = vmatprep.subr.mxu0 0.0
        %2010 = vmatpush1.xpose.msra.mxu0 0.0
        %2011 = vmatprep.subr.mxu0 0.0
        %2012 = vmatpush1.xpose.msra.mxu0 0.0
        %2013 = vmatprep.subr.mxu0 0.0
        %2014 = vmatpush1.xpose.msra.mxu0 0.0
        %2015 = vmatprep.subr.mxu0 0.0
        %2016 = vmatpush1.xpose.msra.mxu0 0.0
        %2017 = vmatprep.subr.mxu0 0.0
        %2018 = vmatpush1.xpose.msra.mxu0 0.0
        %2019 = vmatprep.subr.mxu0 0.0
        %2020 = vmatpush1.xpose.msra.mxu0 0.0
        %2021 = vmatprep.subr.mxu0 0.0
        %2022 = vmatpush1.xpose.msra.mxu0 0.0
        %2023 = vmatprep.subr.mxu0 0.0
        %2024 = vmatpush1.xpose.msra.mxu0 0.0
        %2025 = vmatprep.subr.mxu0 0.0
        %2026 = vmatpush1.xpose.msra.mxu0 0.0
        %2027 = vmatprep.subr.mxu0 0.0
        %2028 = vmatpush1.xpose.msra.mxu0 0.0
        %2029 = vmatprep.subr.mxu0 0.0
        %2030 = vmatpush1.xpose.msra.mxu0 0.0
        %2031 = vmatprep.subr.mxu0 0.0
        %2032 = vmatpush1.xpose.msra.mxu0 0.0
        %2033 = vmatprep.subr.mxu0 0.0
        %2034 = vmatpush1.xpose.msra.mxu0 0.0
        %2035 = vmatprep.subr.mxu0 0.0
        %2036 = vmatpush1.xpose.msra.mxu0 0.0
        %2037 = vmatprep.subr.mxu0 0.0
        %2038 = vmatpush1.xpose.msra.mxu0 0.0
        %2039 = vmatprep.subr.mxu0 0.0
        %2040 = vmatpush1.xpose.msra.mxu0 0.0
        %2041 = vmatprep.subr.mxu0 0.0
        %2042 = vmatpush1.xpose.msra.mxu0 0.0
        %2043 = vmatprep.mubr.f32.mxu0 0.0
        %2044 = vmatmul.mubr.f32.gmra.mrb[0].mxu0 %v1971
        %v2045 = vpop.f32.mrb[0].mxu0
        %v2046 = vadd.f32 0.0, %v2045
        %v2047 = vpop.f32.mrb[0].mxu0
        %2048 = vdwg.mxu0
        %vm2049 = vcmask 130048
        %v2050 = vsel %vm2049, %v1967, -inf
        %2051 = vmax.xlane.f32.xlu0 %v2050
        %v2052 = vpop.xlane.xlu0 %2051
        %v2053 = vsel %vm2049, %v2046, -inf
        %2054 = vmax.xlane.f32.xlu0 %v2053
        %v2055 = vpop.xlane.xlu0 %2054
        %v2056 = vmax.f32 %v2052, 0.0
        %v2057 = vmax.f32 %v2055, 0.0
        %v2058 = vsub.f32 %v1967, %v2056
        %v2059 = vsub.f32 %v2046, %v2057
        %v2060 = vmul.f32 %v2058, 1.442695
        %v2061 = vpow.pop %v2060
        %v2062 = vmul.f32 %v2059, 1.442695
        %v2063 = vpow.pop %v2062
        %v2064 = vsub.f32 0.0, %v2056
        %v2065 = vsub.f32 0.0, %v2057
        %v2066 = vmul.f32 %v2064, 1.442695
        %v2067 = vpow.pop %v2066
        %v2068 = vmul.f32 %v2065, 1.442695
        %v2069 = vpow.pop %v2068
        %v2070 = vsel %vm2049, %v2061, 0.0
        %2071 = vadd.xlane.f32.xlu0 %v2070
        %v2072 = vpop.xlane.xlu0 %2071
        %v2073 = vsel %vm2049, %v2063, 0.0
        %2074 = vadd.xlane.f32.xlu0 %v2073
        %v2075 = vpop.xlane.xlu0 %2074
        %v2076 = vadd.f32 %v2067, %v2072
        %v2077 = vadd.f32 %v2069, %v2075
        %v2078 = vrcp.pop %v2076
        %v2079 = vmul.f32 %v2061, %v2078
        %v2080 = vrcp.pop %v2077
        %v2081 = vmul.f32 %v2063, %v2080
        %v2083 = vsel %vm2049, %v2079, 0
        %2085 = vmatprep.subr.mxu0 0.0
        %2086 = vmatpush1.msra.mxu0 %v1872
        %2087 = vmatprep.subr.mxu0 0.0
        %2088 = vmatpush1.msra.mxu0 %v1877
        %2089 = vmatprep.subr.mxu0 0.0
        %2090 = vmatpush1.msra.mxu0 0.0
        %2091 = vmatprep.subr.mxu0 0.0
        %2092 = vmatpush1.msra.mxu0 0.0
        %2093 = vmatprep.subr.mxu0 0.0
        %2094 = vmatpush1.msra.mxu0 0.0
        %2095 = vmatprep.subr.mxu0 0.0
        %2096 = vmatpush1.msra.mxu0 0.0
        %2097 = vmatprep.subr.mxu0 0.0
        %2098 = vmatpush1.msra.mxu0 0.0
        %2099 = vmatprep.subr.mxu0 0.0
        %2100 = vmatpush1.msra.mxu0 0.0
        %2101 = vmatprep.subr.mxu0 0.0
        %2102 = vmatpush1.msra.mxu0 0.0
        %2103 = vmatprep.subr.mxu0 0.0
        %2104 = vmatpush1.msra.mxu0 0.0
        %2105 = vmatprep.subr.mxu0 0.0
        %2106 = vmatpush1.msra.mxu0 0.0
        %2107 = vmatprep.subr.mxu0 0.0
        %2108 = vmatpush1.msra.mxu0 0.0
        %2109 = vmatprep.subr.mxu0 0.0
        %2110 = vmatpush1.msra.mxu0 0.0
        %2111 = vmatprep.subr.mxu0 0.0
        %2112 = vmatpush1.msra.mxu0 0.0
        %2113 = vmatprep.subr.mxu0 0.0
        %2114 = vmatpush1.msra.mxu0 0.0
        %2115 = vmatprep.subr.mxu0 0.0
        %2116 = vmatpush1.msra.mxu0 0.0
        %2117 = vmatprep.subr.mxu0 0.0
        %2118 = vmatpush1.msra.mxu0 0.0
        %2119 = vmatprep.subr.mxu0 0.0
        %2120 = vmatpush1.msra.mxu0 0.0
        %2121 = vmatprep.subr.mxu0 0.0
        %2122 = vmatpush1.msra.mxu0 0.0
        %2123 = vmatprep.subr.mxu0 0.0
        %2124 = vmatpush1.msra.mxu0 0.0
        %2125 = vmatprep.subr.mxu0 0.0
        %2126 = vmatpush1.msra.mxu0 0.0
        %2127 = vmatprep.subr.mxu0 0.0
        %2128 = vmatpush1.msra.mxu0 0.0
        %2129 = vmatprep.subr.mxu0 0.0
        %2130 = vmatpush1.msra.mxu0 0.0
        %2131 = vmatprep.subr.mxu0 0.0
        %2132 = vmatpush1.msra.mxu0 0.0
        %2133 = vmatprep.subr.mxu0 0.0
        %2134 = vmatpush1.msra.mxu0 0.0
        %2135 = vmatprep.subr.mxu0 0.0
        %2136 = vmatpush1.msra.mxu0 0.0
        %2137 = vmatprep.subr.mxu0 0.0
        %2138 = vmatpush1.msra.mxu0 0.0
        %2139 = vmatprep.subr.mxu0 0.0
        %2140 = vmatpush1.msra.mxu0 0.0
        %2141 = vmatprep.subr.mxu0 0.0
        %2142 = vmatpush1.msra.mxu0 0.0
        %2143 = vmatprep.subr.mxu0 0.0
        %2144 = vmatpush1.msra.mxu0 0.0
        %2145 = vmatprep.subr.mxu0 0.0
        %2146 = vmatpush1.msra.mxu0 0.0
        %2147 = vmatprep.subr.mxu0 0.0
        %2148 = vmatpush1.msra.mxu0 0.0
        %2149 = vmatprep.mubr.f32.mxu0 0.0
        %2150 = vmatmul.mubr.f32.gmra.mrb[0].mxu0 %v2083
        %v2151 = vpop.f32.mrb[0].mxu0
        %v2152 = vadd.f32 0.0, %v2151
        %v2153 = vpop.f32.mrb[0].mxu0
        %2154 = vdwg.mxu0
        %v2156 = vsel %vm2049, %v2081, 0
        %2158 = vmatprep.subr.mxu0 0.0
        %2159 = vmatpush1.msra.mxu0 %v1882
        %2160 = vmatprep.subr.mxu0 0.0
        %2161 = vmatpush1.msra.mxu0 %v1887
        %2162 = vmatprep.subr.mxu0 0.0
        %2163 = vmatpush1.msra.mxu0 0.0
        %2164 = vmatprep.subr.mxu0 0.0
        %2165 = vmatpush1.msra.mxu0 0.0
        %2166 = vmatprep.subr.mxu0 0.0
        %2167 = vmatpush1.msra.mxu0 0.0
        %2168 = vmatprep.subr.mxu0 0.0
        %2169 = vmatpush1.msra.mxu0 0.0
        %2170 = vmatprep.subr.mxu0 0.0
        %2171 = vmatpush1.msra.mxu0 0.0
        %2172 = vmatprep.subr.mxu0 0.0
        %2173 = vmatpush1.msra.mxu0 0.0
        %2174 = vmatprep.subr.mxu0 0.0
        %2175 = vmatpush1.msra.mxu0 0.0
        %2176 = vmatprep.subr.mxu0 0.0
        %2177 = vmatpush1.msra.mxu0 0.0
        %2178 = vmatprep.subr.mxu0 0.0
        %2179 = vmatpush1.msra.mxu0 0.0
        %2180 = vmatprep.subr.mxu0 0.0
        %2181 = vmatpush1.msra.mxu0 0.0
        %2182 = vmatprep.subr.mxu0 0.0
        %2183 = vmatpush1.msra.mxu0 0.0
        %2184 = vmatprep.subr.mxu0 0.0
        %2185 = vmatpush1.msra.mxu0 0.0
        %2186 = vmatprep.subr.mxu0 0.0
        %2187 = vmatpush1.msra.mxu0 0.0
        %2188 = vmatprep.subr.mxu0 0.0
        %2189 = vmatpush1.msra.mxu0 0.0
        %2190 = vmatprep.subr.mxu0 0.0
        %2191 = vmatpush1.msra.mxu0 0.0
        %2192 = vmatprep.subr.mxu0 0.0
        %2193 = vmatpush1.msra.mxu0 0.0
        %2194 = vmatprep.subr.mxu0 0.0
        %2195 = vmatpush1.msra.mxu0 0.0
        %2196 = vmatprep.subr.mxu0 0.0
        %2197 = vmatpush1.msra.mxu0 0.0
        %2198 = vmatprep.subr.mxu0 0.0
        %2199 = vmatpush1.msra.mxu0 0.0
        %2200 = vmatprep.subr.mxu0 0.0
        %2201 = vmatpush1.msra.mxu0 0.0
        %2202 = vmatprep.subr.mxu0 0.0
        %2203 = vmatpush1.msra.mxu0 0.0
        %2204 = vmatprep.subr.mxu0 0.0
        %2205 = vmatpush1.msra.mxu0 0.0
        %2206 = vmatprep.subr.mxu0 0.0
        %2207 = vmatpush1.msra.mxu0 0.0
        %2208 = vmatprep.subr.mxu0 0.0
        %2209 = vmatpush1.msra.mxu0 0.0
        %2210 = vmatprep.subr.mxu0 0.0
        %2211 = vmatpush1.msra.mxu0 0.0
        %2212 = vmatprep.subr.mxu0 0.0
        %2213 = vmatpush1.msra.mxu0 0.0
        %2214 = vmatprep.subr.mxu0 0.0
        %2215 = vmatpush1.msra.mxu0 0.0
        %2216 = vmatprep.subr.mxu0 0.0
        %2217 = vmatpush1.msra.mxu0 0.0
        %2218 = vmatprep.subr.mxu0 0.0
        %2219 = vmatpush1.msra.mxu0 0.0
        %2220 = vmatprep.subr.mxu0 0.0
        %2221 = vmatpush1.msra.mxu0 0.0
        %2222 = vmatprep.mubr.f32.mxu0 0.0
        %2223 = vmatmul.mubr.f32.gmra.mrb[0].mxu0 %v2156
        %v2224 = vpop.f32.mrb[0].mxu0
        %v2225 = vadd.f32 0.0, %v2224
        %v2226 = vpop.f32.mrb[0].mxu0
        %2227 = vdwg.mxu0
        %v2228 = vld [vmem:[%s1389] sm:$0xff]
        %s2229 = scalar_lea.vmem %s1374, 32
        %v2230 = vld [vmem:[%s2229] sm:$0xff]
        %v2231 = vld [vmem:[%s2229 + $0x8] sm:$0xff]
        %v2232 = vld [vmem:[%s2229 + $0x10] sm:$0xff]
        %v2233 = vld [vmem:[%s2229 + $0x18] sm:$0xff]
        %2234 = vmatprep.subr.mxu0 0.0
        %2235 = vmatpush1.msra.mxu0 %v2230
        %2236 = vmatprep.subr.mxu0 0.0
        %2237 = vmatpush1.msra.mxu0 %v2231
        %2238 = vmatprep.subr.mxu0 0.0
        %2239 = vmatpush1.msra.mxu0 %v2232
        %2240 = vmatprep.subr.mxu0 0.0
        %2241 = vmatpush1.msra.mxu0 %v2233
        %2242 = vmatprep.subr.mxu0 0.0
        %2243 = vmatpush1.msra.mxu0 0.0
        %2244 = vmatprep.subr.mxu0 0.0
        %2245 = vmatpush1.msra.mxu0 0.0
        %2246 = vmatprep.subr.mxu0 0.0
        %2247 = vmatpush1.msra.mxu0 0.0
        %2248 = vmatprep.subr.mxu0 0.0
        %2249 = vmatpush1.msra.mxu0 0.0
        %2250 = vmatprep.subr.mxu0 0.0
        %2251 = vmatpush1.msra.mxu0 0.0
        %2252 = vmatprep.subr.mxu0 0.0
        %2253 = vmatpush1.msra.mxu0 0.0
        %2254 = vmatprep.subr.mxu0 0.0
        %2255 = vmatpush1.msra.mxu0 0.0
        %2256 = vmatprep.subr.mxu0 0.0
        %2257 = vmatpush1.msra.mxu0 0.0
        %2258 = vmatprep.subr.mxu0 0.0
        %2259 = vmatpush1.msra.mxu0 0.0
        %2260 = vmatprep.subr.mxu0 0.0
        %2261 = vmatpush1.msra.mxu0 0.0
        %2262 = vmatprep.subr.mxu0 0.0
        %2263 = vmatpush1.msra.mxu0 0.0
        %2264 = vmatprep.subr.mxu0 0.0
        %2265 = vmatpush1.msra.mxu0 0.0
        %2266 = vmatprep.subr.mxu0 0.0
        %2267 = vmatpush1.msra.mxu0 0.0
        %2268 = vmatprep.subr.mxu0 0.0
        %2269 = vmatpush1.msra.mxu0 0.0
        %2270 = vmatprep.subr.mxu0 0.0
        %2271 = vmatpush1.msra.mxu0 0.0
        %2272 = vmatprep.subr.mxu0 0.0
        %2273 = vmatpush1.msra.mxu0 0.0
        %2274 = vmatprep.subr.mxu0 0.0
        %2275 = vmatpush1.msra.mxu0 0.0
        %2276 = vmatprep.subr.mxu0 0.0
        %2277 = vmatpush1.msra.mxu0 0.0
        %2278 = vmatprep.subr.mxu0 0.0
        %2279 = vmatpush1.msra.mxu0 0.0
        %2280 = vmatprep.subr.mxu0 0.0
        %2281 = vmatpush1.msra.mxu0 0.0
        %2282 = vmatprep.subr.mxu0 0.0
        %2283 = vmatpush1.msra.mxu0 0.0
        %2284 = vmatprep.subr.mxu0 0.0
        %2285 = vmatpush1.msra.mxu0 0.0
        %2286 = vmatprep.subr.mxu0 0.0
        %2287 = vmatpush1.msra.mxu0 0.0
        %2288 = vmatprep.subr.mxu0 0.0
        %2289 = vmatpush1.msra.mxu0 0.0
        %2290 = vmatprep.subr.mxu0 0.0
        %2291 = vmatpush1.msra.mxu0 0.0
        %2292 = vmatprep.subr.mxu0 0.0
        %2293 = vmatpush1.msra.mxu0 0.0
        %2294 = vmatprep.subr.mxu0 0.0
        %2295 = vmatpush1.msra.mxu0 0.0
        %2296 = vmatprep.subr.mxu0 0.0
        %2297 = vmatpush1.msra.mxu0 0.0
        %2298 = vmatprep.mubr.f32.mxu0 0.0
        %2299 = vmatmul.mubr.f32.gmra.mrb[0].mxu0 %v1620
        %v2300 = vpop.f32.mrb[0].mxu0
        %v2301 = vadd.f32 0.0, %v2300
        %v2302 = vpop.f32.mrb[0].mxu0
        %2303 = vmatprep.mubr.f32.mxu0 0.0
        %2304 = vmatmul.mubr.f32.gmra.mrb[0].mxu0 %v1623
        %v2305 = vpop.f32.mrb[0].mxu0
        %v2306 = vadd.f32 0.0, %v2305
        %v2307 = vpop.f32.mrb[0].mxu0
        %2308 = vdwg.mxu0
        %s2309 = scalar_lea.vmem %s1379, 32
        %v2310 = vld [vmem:[%s2309] sm:$0xff]
        %v2311 = vld [vmem:[%s2309 + $0x8] sm:$0xff]
        %v2312 = vld [vmem:[%s2309 + $0x10] sm:$0xff]
        %v2313 = vld [vmem:[%s2309 + $0x18] sm:$0xff]
        %2314 = vmatprep.subr.mxu0 0.0
        %2315 = vmatpush1.msra.mxu0 %v2310
        %2316 = vmatprep.subr.mxu0 0.0
        %2317 = vmatpush1.msra.mxu0 %v2311
        %2318 = vmatprep.subr.mxu0 0.0
        %2319 = vmatpush1.msra.mxu0 %v2312
        %2320 = vmatprep.subr.mxu0 0.0
        %2321 = vmatpush1.msra.mxu0 %v2313
        %2322 = vmatprep.subr.mxu0 0.0
        %2323 = vmatpush1.msra.mxu0 0.0
        %2324 = vmatprep.subr.mxu0 0.0
        %2325 = vmatpush1.msra.mxu0 0.0
        %2326 = vmatprep.subr.mxu0 0.0
        %2327 = vmatpush1.msra.mxu0 0.0
        %2328 = vmatprep.subr.mxu0 0.0
        %2329 = vmatpush1.msra.mxu0 0.0
        %2330 = vmatprep.subr.mxu0 0.0
        %2331 = vmatpush1.msra.mxu0 0.0
        %2332 = vmatprep.subr.mxu0 0.0
        %2333 = vmatpush1.msra.mxu0 0.0
        %2334 = vmatprep.subr.mxu0 0.0
        %2335 = vmatpush1.msra.mxu0 0.0
        %2336 = vmatprep.subr.mxu0 0.0
        %2337 = vmatpush1.msra.mxu0 0.0
        %2338 = vmatprep.subr.mxu0 0.0
        %2339 = vmatpush1.msra.mxu0 0.0
        %2340 = vmatprep.subr.mxu0 0.0
        %2341 = vmatpush1.msra.mxu0 0.0
        %2342 = vmatprep.subr.mxu0 0.0
        %2343 = vmatpush1.msra.mxu0 0.0
        %2344 = vmatprep.subr.mxu0 0.0
        %2345 = vmatpush1.msra.mxu0 0.0
        %2346 = vmatprep.subr.mxu0 0.0
        %2347 = vmatpush1.msra.mxu0 0.0
        %2348 = vmatprep.subr.mxu0 0.0
        %2349 = vmatpush1.msra.mxu0 0.0
        %2350 = vmatprep.subr.mxu0 0.0
        %2351 = vmatpush1.msra.mxu0 0.0
        %2352 = vmatprep.subr.mxu0 0.0
        %2353 = vmatpush1.msra.mxu0 0.0
        %2354 = vmatprep.subr.mxu0 0.0
        %2355 = vmatpush1.msra.mxu0 0.0
        %2356 = vmatprep.subr.mxu0 0.0
        %2357 = vmatpush1.msra.mxu0 0.0
        %2358 = vmatprep.subr.mxu0 0.0
        %2359 = vmatpush1.msra.mxu0 0.0
        %2360 = vmatprep.subr.mxu0 0.0
        %2361 = vmatpush1.msra.mxu0 0.0
        %2362 = vmatprep.subr.mxu0 0.0
        %2363 = vmatpush1.msra.mxu0 0.0
        %2364 = vmatprep.subr.mxu0 0.0
        %2365 = vmatpush1.msra.mxu0 0.0
        %2366 = vmatprep.subr.mxu0 0.0
        %2367 = vmatpush1.msra.mxu0 0.0
        %2368 = vmatprep.subr.mxu0 0.0
        %2369 = vmatpush1.msra.mxu0 0.0
        %2370 = vmatprep.subr.mxu0 0.0
        %2371 = vmatpush1.msra.mxu0 0.0
        %2372 = vmatprep.subr.mxu0 0.0
        %2373 = vmatpush1.msra.mxu0 0.0
        %2374 = vmatprep.subr.mxu0 0.0
        %2375 = vmatpush1.msra.mxu0 0.0
        %2376 = vmatprep.subr.mxu0 0.0
        %2377 = vmatpush1.msra.mxu0 0.0
        %2378 = vmatprep.mubr.f32.mxu0 0.0
        %2379 = vmatmul.mubr.f32.gmra.mrb[0].mxu0 %v1705
        %v2380 = vpop.f32.mrb[0].mxu0
        %v2381 = vadd.f32 0.0, %v2380
        %v2382 = vpop.f32.mrb[0].mxu0
        %2383 = vmatprep.mubr.f32.mxu0 0.0
        %2384 = vmatmul.mubr.f32.gmra.mrb[0].mxu0 %v1708
        %v2385 = vpop.f32.mrb[0].mxu0
        %v2386 = vadd.f32 0.0, %v2385
        %v2387 = vpop.f32.mrb[0].mxu0
        %2388 = vmatprep.mubr.f32.mxu0 0.0
        %2389 = vmatmul.mubr.f32.gmra.mrb[0].mxu0 %v1711
        %v2390 = vpop.f32.mrb[0].mxu0
        %v2391 = vadd.f32 0.0, %v2390
        %v2392 = vpop.f32.mrb[0].mxu0
        %2393 = vmatprep.mubr.f32.mxu0 0.0
        %2394 = vmatmul.mubr.f32.gmra.mrb[0].mxu0 %v1714
        %v2395 = vpop.f32.mrb[0].mxu0
        %v2396 = vadd.f32 0.0, %v2395
        %v2397 = vpop.f32.mrb[0].mxu0
        %2398 = vdwg.mxu0
        %s2399 = scalar_lea.vmem %s1384, 32
        %v2400 = vld [vmem:[%s2399] sm:$0xff]
        %v2401 = vld [vmem:[%s2399 + $0x8] sm:$0xff]
        %v2402 = vld [vmem:[%s2399 + $0x10] sm:$0xff]
        %v2403 = vld [vmem:[%s2399 + $0x18] sm:$0xff]
        %2404 = vmatprep.subr.mxu0 0.0
        %2405 = vmatpush1.msra.mxu0 %v2400
        %2406 = vmatprep.subr.mxu0 0.0
        %2407 = vmatpush1.msra.mxu0 %v2401
        %2408 = vmatprep.subr.mxu0 0.0
        %2409 = vmatpush1.msra.mxu0 %v2402
        %2410 = vmatprep.subr.mxu0 0.0
        %2411 = vmatpush1.msra.mxu0 %v2403
        %2412 = vmatprep.subr.mxu0 0.0
        %2413 = vmatpush1.msra.mxu0 0.0
        %2414 = vmatprep.subr.mxu0 0.0
        %2415 = vmatpush1.msra.mxu0 0.0
        %2416 = vmatprep.subr.mxu0 0.0
        %2417 = vmatpush1.msra.mxu0 0.0
        %2418 = vmatprep.subr.mxu0 0.0
        %2419 = vmatpush1.msra.mxu0 0.0
        %2420 = vmatprep.subr.mxu0 0.0
        %2421 = vmatpush1.msra.mxu0 0.0
        %2422 = vmatprep.subr.mxu0 0.0
        %2423 = vmatpush1.msra.mxu0 0.0
        %2424 = vmatprep.subr.mxu0 0.0
        %2425 = vmatpush1.msra.mxu0 0.0
        %2426 = vmatprep.subr.mxu0 0.0
        %2427 = vmatpush1.msra.mxu0 0.0
        %2428 = vmatprep.subr.mxu0 0.0
        %2429 = vmatpush1.msra.mxu0 0.0
        %2430 = vmatprep.subr.mxu0 0.0
        %2431 = vmatpush1.msra.mxu0 0.0
        %2432 = vmatprep.subr.mxu0 0.0
        %2433 = vmatpush1.msra.mxu0 0.0
        %2434 = vmatprep.subr.mxu0 0.0
        %2435 = vmatpush1.msra.mxu0 0.0
        %2436 = vmatprep.subr.mxu0 0.0
        %2437 = vmatpush1.msra.mxu0 0.0
        %2438 = vmatprep.subr.mxu0 0.0
        %2439 = vmatpush1.msra.mxu0 0.0
        %2440 = vmatprep.subr.mxu0 0.0
        %2441 = vmatpush1.msra.mxu0 0.0
        %2442 = vmatprep.subr.mxu0 0.0
        %2443 = vmatpush1.msra.mxu0 0.0
        %2444 = vmatprep.subr.mxu0 0.0
        %2445 = vmatpush1.msra.mxu0 0.0
        %2446 = vmatprep.subr.mxu0 0.0
        %2447 = vmatpush1.msra.mxu0 0.0
        %2448 = vmatprep.subr.mxu0 0.0
        %2449 = vmatpush1.msra.mxu0 0.0
        %2450 = vmatprep.subr.mxu0 0.0
        %2451 = vmatpush1.msra.mxu0 0.0
        %2452 = vmatprep.subr.mxu0 0.0
        %2453 = vmatpush1.msra.mxu0 0.0
        %2454 = vmatprep.subr.mxu0 0.0
        %2455 = vmatpush1.msra.mxu0 0.0
        %2456 = vmatprep.subr.mxu0 0.0
        %2457 = vmatpush1.msra.mxu0 0.0
        %2458 = vmatprep.subr.mxu0 0.0
        %2459 = vmatpush1.msra.mxu0 0.0
        %2460 = vmatprep.subr.mxu0 0.0
        %2461 = vmatpush1.msra.mxu0 0.0
        %2462 = vmatprep.subr.mxu0 0.0
        %2463 = vmatpush1.msra.mxu0 0.0
        %2464 = vmatprep.subr.mxu0 0.0
        %2465 = vmatpush1.msra.mxu0 0.0
        %2466 = vmatprep.subr.mxu0 0.0
        %2467 = vmatpush1.msra.mxu0 0.0
        %2468 = vmatprep.mubr.f32.mxu0 0.0
        %2469 = vmatmul.mubr.f32.gmra.mrb[0].mxu0 %v1705
        %v2470 = vpop.f32.mrb[0].mxu0
        %v2471 = vadd.f32 0.0, %v2470
        %v2472 = vpop.f32.mrb[0].mxu0
        %2473 = vmatprep.mubr.f32.mxu0 0.0
        %2474 = vmatmul.mubr.f32.gmra.mrb[0].mxu0 %v1708
        %v2475 = vpop.f32.mrb[0].mxu0
        %v2476 = vadd.f32 0.0, %v2475
        %v2477 = vpop.f32.mrb[0].mxu0
        %2478 = vmatprep.mubr.f32.mxu0 0.0
        %2479 = vmatmul.mubr.f32.gmra.mrb[0].mxu0 %v1711
        %v2480 = vpop.f32.mrb[0].mxu0
        %v2481 = vadd.f32 0.0, %v2480
        %v2482 = vpop.f32.mrb[0].mxu0
        %2483 = vmatprep.mubr.f32.mxu0 0.0
        %2484 = vmatmul.mubr.f32.gmra.mrb[0].mxu0 %v1714
        %v2485 = vpop.f32.mrb[0].mxu0
        %v2486 = vadd.f32 0.0, %v2485
        %v2487 = vpop.f32.mrb[0].mxu0
        %2488 = vdwg.mxu0
        %v2490 = vsel %vm1890, %v2301, 0
        %v2493 = vsel %vm1890, %v2381, 0
        %v2496 = vsel %vm1890, %v2386, 0
        %2498 = vmatprep.subr.mxu0 0.0
        %2499 = vmatpush1.xpose.msra.mxu0 %v2493
        %2500 = vmatprep.subr.mxu0 0.0
        %2501 = vmatpush1.xpose.msra.mxu0 %v2496
        %2502 = vmatprep.subr.mxu0 0.0
        %2503 = vmatpush1.xpose.msra.mxu0 0.0
        %2504 = vmatprep.subr.mxu0 0.0
        %2505 = vmatpush1.xpose.msra.mxu0 0.0
        %2506 = vmatprep.subr.mxu0 0.0
        %2507 = vmatpush1.xpose.msra.mxu0 0.0
        %2508 = vmatprep.subr.mxu0 0.0
        %2509 = vmatpush1.xpose.msra.mxu0 0.0
        %2510 = vmatprep.subr.mxu0 0.0
        %2511 = vmatpush1.xpose.msra.mxu0 0.0
        %2512 = vmatprep.subr.mxu0 0.0
        %2513 = vmatpush1.xpose.msra.mxu0 0.0
        %2514 = vmatprep.subr.mxu0 0.0
        %2515 = vmatpush1.xpose.msra.mxu0 0.0
        %2516 = vmatprep.subr.mxu0 0.0
        %2517 = vmatpush1.xpose.msra.mxu0 0.0
        %2518 = vmatprep.subr.mxu0 0.0
        %2519 = vmatpush1.xpose.msra.mxu0 0.0
        %2520 = vmatprep.subr.mxu0 0.0
        %2521 = vmatpush1.xpose.msra.mxu0 0.0
        %2522 = vmatprep.subr.mxu0 0.0
        %2523 = vmatpush1.xpose.msra.mxu0 0.0
        %2524 = vmatprep.subr.mxu0 0.0
        %2525 = vmatpush1.xpose.msra.mxu0 0.0
        %2526 = vmatprep.subr.mxu0 0.0
        %2527 = vmatpush1.xpose.msra.mxu0 0.0
        %2528 = vmatprep.subr.mxu0 0.0
        %2529 = vmatpush1.xpose.msra.mxu0 0.0
        %2530 = vmatprep.subr.mxu0 0.0
        %2531 = vmatpush1.xpose.msra.mxu0 0.0
        %2532 = vmatprep.subr.mxu0 0.0
        %2533 = vmatpush1.xpose.msra.mxu0 0.0
        %2534 = vmatprep.subr.mxu0 0.0
        %2535 = vmatpush1.xpose.msra.mxu0 0.0
        %2536 = vmatprep.subr.mxu0 0.0
        %2537 = vmatpush1.xpose.msra.mxu0 0.0
        %2538 = vmatprep.subr.mxu0 0.0
        %2539 = vmatpush1.xpose.msra.mxu0 0.0
        %2540 = vmatprep.subr.mxu0 0.0
        %2541 = vmatpush1.xpose.msra.mxu0 0.0
        %2542 = vmatprep.subr.mxu0 0.0
        %2543 = vmatpush1.xpose.msra.mxu0 0.0
        %2544 = vmatprep.subr.mxu0 0.0
        %2545 = vmatpush1.xpose.msra.mxu0 0.0
        %2546 = vmatprep.subr.mxu0 0.0
        %2547 = vmatpush1.xpose.msra.mxu0 0.0
        %2548 = vmatprep.subr.mxu0 0.0
        %2549 = vmatpush1.xpose.msra.mxu0 0.0
        %2550 = vmatprep.subr.mxu0 0.0
        %2551 = vmatpush1.xpose.msra.mxu0 0.0
        %2552 = vmatprep.subr.mxu0 0.0
        %2553 = vmatpush1.xpose.msra.mxu0 0.0
        %2554 = vmatprep.subr.mxu0 0.0
        %2555 = vmatpush1.xpose.msra.mxu0 0.0
        %2556 = vmatprep.subr.mxu0 0.0
        %2557 = vmatpush1.xpose.msra.mxu0 0.0
        %2558 = vmatprep.subr.mxu0 0.0
        %2559 = vmatpush1.xpose.msra.mxu0 0.0
        %2560 = vmatprep.subr.mxu0 0.0
        %2561 = vmatpush1.xpose.msra.mxu0 0.0
        %2562 = vmatprep.mubr.f32.mxu0 0.0
        %2563 = vmatmul.mubr.f32.gmra.mrb[0].mxu0 %v2490
        %v2564 = vpop.f32.mrb[0].mxu0
        %v2565 = vadd.f32 0.0, %v2564
        %v2566 = vpop.f32.mrb[0].mxu0
        %2567 = vdwg.mxu0
        %v2569 = vsel %vm1890, %v2306, 0
        %v2572 = vsel %vm1890, %v2391, 0
        %v2575 = vsel %vm1890, %v2396, 0
        %2577 = vmatprep.subr.mxu0 0.0
        %2578 = vmatpush1.xpose.msra.mxu0 %v2572
        %2579 = vmatprep.subr.mxu0 0.0
        %2580 = vmatpush1.xpose.msra.mxu0 %v2575
        %2581 = vmatprep.subr.mxu0 0.0
        %2582 = vmatpush1.xpose.msra.mxu0 0.0
        %2583 = vmatprep.subr.mxu0 0.0
        %2584 = vmatpush1.xpose.msra.mxu0 0.0
        %2585 = vmatprep.subr.mxu0 0.0
        %2586 = vmatpush1.xpose.msra.mxu0 0.0
        %2587 = vmatprep.subr.mxu0 0.0
        %2588 = vmatpush1.xpose.msra.mxu0 0.0
        %2589 = vmatprep.subr.mxu0 0.0
        %2590 = vmatpush1.xpose.msra.mxu0 0.0
        %2591 = vmatprep.subr.mxu0 0.0
        %2592 = vmatpush1.xpose.msra.mxu0 0.0
        %2593 = vmatprep.subr.mxu0 0.0
        %2594 = vmatpush1.xpose.msra.mxu0 0.0
        %2595 = vmatprep.subr.mxu0 0.0
        %2596 = vmatpush1.xpose.msra.mxu0 0.0
        %2597 = vmatprep.subr.mxu0 0.0
        %2598 = vmatpush1.xpose.msra.mxu0 0.0
        %2599 = vmatprep.subr.mxu0 0.0
        %2600 = vmatpush1.xpose.msra.mxu0 0.0
        %2601 = vmatprep.subr.mxu0 0.0
        %2602 = vmatpush1.xpose.msra.mxu0 0.0
        %2603 = vmatprep.subr.mxu0 0.0
        %2604 = vmatpush1.xpose.msra.mxu0 0.0
        %2605 = vmatprep.subr.mxu0 0.0
        %2606 = vmatpush1.xpose.msra.mxu0 0.0
        %2607 = vmatprep.subr.mxu0 0.0
        %2608 = vmatpush1.xpose.msra.mxu0 0.0
        %2609 = vmatprep.subr.mxu0 0.0
        %2610 = vmatpush1.xpose.msra.mxu0 0.0
        %2611 = vmatprep.subr.mxu0 0.0
        %2612 = vmatpush1.xpose.msra.mxu0 0.0
        %2613 = vmatprep.subr.mxu0 0.0
        %2614 = vmatpush1.xpose.msra.mxu0 0.0
        %2615 = vmatprep.subr.mxu0 0.0
        %2616 = vmatpush1.xpose.msra.mxu0 0.0
        %2617 = vmatprep.subr.mxu0 0.0
        %2618 = vmatpush1.xpose.msra.mxu0 0.0
        %2619 = vmatprep.subr.mxu0 0.0
        %2620 = vmatpush1.xpose.msra.mxu0 0.0
        %2621 = vmatprep.subr.mxu0 0.0
        %2622 = vmatpush1.xpose.msra.mxu0 0.0
        %2623 = vmatprep.subr.mxu0 0.0
        %2624 = vmatpush1.xpose.msra.mxu0 0.0
        %2625 = vmatprep.subr.mxu0 0.0
        %2626 = vmatpush1.xpose.msra.mxu0 0.0
        %2627 = vmatprep.subr.mxu0 0.0
        %2628 = vmatpush1.xpose.msra.mxu0 0.0
        %2629 = vmatprep.subr.mxu0 0.0
        %2630 = vmatpush1.xpose.msra.mxu0 0.0
        %2631 = vmatprep.subr.mxu0 0.0
        %2632 = vmatpush1.xpose.msra.mxu0 0.0
        %2633 = vmatprep.subr.mxu0 0.0
        %2634 = vmatpush1.xpose.msra.mxu0 0.0
        %2635 = vmatprep.subr.mxu0 0.0
        %2636 = vmatpush1.xpose.msra.mxu0 0.0
        %2637 = vmatprep.subr.mxu0 0.0
        %2638 = vmatpush1.xpose.msra.mxu0 0.0
        %2639 = vmatprep.subr.mxu0 0.0
        %2640 = vmatpush1.xpose.msra.mxu0 0.0
        %2641 = vmatprep.mubr.f32.mxu0 0.0
        %2642 = vmatmul.mubr.f32.gmra.mrb[0].mxu0 %v2569
        %v2643 = vpop.f32.mrb[0].mxu0
        %v2644 = vadd.f32 0.0, %v2643
        %v2645 = vpop.f32.mrb[0].mxu0
        %2646 = vdwg.mxu0
        %v2647 = vsel %vm2049, %v2565, -inf
        %2648 = vmax.xlane.f32.xlu0 %v2647
        %v2649 = vpop.xlane.xlu0 %2648
        %v2650 = vsel %vm2049, %v2644, -inf
        %2651 = vmax.xlane.f32.xlu0 %v2650
        %v2652 = vpop.xlane.xlu0 %2651
        %v2653 = vmax.f32 %v2649, 0.0
        %v2654 = vmax.f32 %v2652, 0.0
        %v2655 = vsub.f32 %v2565, %v2653
        %v2656 = vsub.f32 %v2644, %v2654
        %v2657 = vmul.f32 %v2655, 1.442695
        %v2658 = vpow.pop %v2657
        %v2659 = vmul.f32 %v2656, 1.442695
        %v2660 = vpow.pop %v2659
        %v2661 = vsub.f32 0.0, %v2653
        %v2662 = vsub.f32 0.0, %v2654
        %v2663 = vmul.f32 %v2661, 1.442695
        %v2664 = vpow.pop %v2663
        %v2665 = vmul.f32 %v2662, 1.442695
        %v2666 = vpow.pop %v2665
        %v2667 = vsel %vm2049, %v2658, 0.0
        %2668 = vadd.xlane.f32.xlu0 %v2667
        %v2669 = vpop.xlane.xlu0 %2668
        %v2670 = vsel %vm2049, %v2660, 0.0
        %2671 = vadd.xlane.f32.xlu0 %v2670
        %v2672 = vpop.xlane.xlu0 %2671
        %v2673 = vadd.f32 %v2664, %v2669
        %v2674 = vadd.f32 %v2666, %v2672
        %v2675 = vrcp.pop %v2673
        %v2676 = vmul.f32 %v2658, %v2675
        %v2677 = vrcp.pop %v2674
        %v2678 = vmul.f32 %v2660, %v2677
        %v2680 = vsel %vm2049, %v2676, 0
        %2682 = vmatprep.subr.mxu0 0.0
        %2683 = vmatpush1.msra.mxu0 %v2471
        %2684 = vmatprep.subr.mxu0 0.0
        %2685 = vmatpush1.msra.mxu0 %v2476
        %2686 = vmatprep.subr.mxu0 0.0
        %2687 = vmatpush1.msra.mxu0 0.0
        %2688 = vmatprep.subr.mxu0 0.0
        %2689 = vmatpush1.msra.mxu0 0.0
        %2690 = vmatprep.subr.mxu0 0.0
        %2691 = vmatpush1.msra.mxu0 0.0
        %2692 = vmatprep.subr.mxu0 0.0
        %2693 = vmatpush1.msra.mxu0 0.0
        %2694 = vmatprep.subr.mxu0 0.0
        %2695 = vmatpush1.msra.mxu0 0.0
        %2696 = vmatprep.subr.mxu0 0.0
        %2697 = vmatpush1.msra.mxu0 0.0
        %2698 = vmatprep.subr.mxu0 0.0
        %2699 = vmatpush1.msra.mxu0 0.0
        %2700 = vmatprep.subr.mxu0 0.0
        %2701 = vmatpush1.msra.mxu0 0.0
        %2702 = vmatprep.subr.mxu0 0.0
        %2703 = vmatpush1.msra.mxu0 0.0
        %2704 = vmatprep.subr.mxu0 0.0
        %2705 = vmatpush1.msra.mxu0 0.0
        %2706 = vmatprep.subr.mxu0 0.0
        %2707 = vmatpush1.msra.mxu0 0.0
        %2708 = vmatprep.subr.mxu0 0.0
        %2709 = vmatpush1.msra.mxu0 0.0
        %2710 = vmatprep.subr.mxu0 0.0
        %2711 = vmatpush1.msra.mxu0 0.0
        %2712 = vmatprep.subr.mxu0 0.0
        %2713 = vmatpush1.msra.mxu0 0.0
        %2714 = vmatprep.subr.mxu0 0.0
        %2715 = vmatpush1.msra.mxu0 0.0
        %2716 = vmatprep.subr.mxu0 0.0
        %2717 = vmatpush1.msra.mxu0 0.0
        %2718 = vmatprep.subr.mxu0 0.0
        %2719 = vmatpush1.msra.mxu0 0.0
        %2720 = vmatprep.subr.mxu0 0.0
        %2721 = vmatpush1.msra.mxu0 0.0
        %2722 = vmatprep.subr.mxu0 0.0
        %2723 = vmatpush1.msra.mxu0 0.0
        %2724 = vmatprep.subr.mxu0 0.0
        %2725 = vmatpush1.msra.mxu0 0.0
        %2726 = vmatprep.subr.mxu0 0.0
        %2727 = vmatpush1.msra.mxu0 0.0
        %2728 = vmatprep.subr.mxu0 0.0
        %2729 = vmatpush1.msra.mxu0 0.0
        %2730 = vmatprep.subr.mxu0 0.0
        %2731 = vmatpush1.msra.mxu0 0.0
        %2732 = vmatprep.subr.mxu0 0.0
        %2733 = vmatpush1.msra.mxu0 0.0
        %2734 = vmatprep.subr.mxu0 0.0
        %2735 = vmatpush1.msra.mxu0 0.0
        %2736 = vmatprep.subr.mxu0 0.0
        %2737 = vmatpush1.msra.mxu0 0.0
        %2738 = vmatprep.subr.mxu0 0.0
        %2739 = vmatpush1.msra.mxu0 0.0
        %2740 = vmatprep.subr.mxu0 0.0
        %2741 = vmatpush1.msra.mxu0 0.0
        %2742 = vmatprep.subr.mxu0 0.0
        %2743 = vmatpush1.msra.mxu0 0.0
        %2744 = vmatprep.subr.mxu0 0.0
        %2745 = vmatpush1.msra.mxu0 0.0
        %2746 = vmatprep.mubr.f32.mxu0 0.0
        %2747 = vmatmul.mubr.f32.gmra.mrb[0].mxu0 %v2680
        %v2748 = vpop.f32.mrb[0].mxu0
        %v2749 = vadd.f32 0.0, %v2748
        %v2750 = vpop.f32.mrb[0].mxu0
        %2751 = vdwg.mxu0
        %v2753 = vsel %vm2049, %v2678, 0
        %2755 = vmatprep.subr.mxu0 0.0
        %2756 = vmatpush1.msra.mxu0 %v2481
        %2757 = vmatprep.subr.mxu0 0.0
        %2758 = vmatpush1.msra.mxu0 %v2486
        %2759 = vmatprep.subr.mxu0 0.0
        %2760 = vmatpush1.msra.mxu0 0.0
        %2761 = vmatprep.subr.mxu0 0.0
        %2762 = vmatpush1.msra.mxu0 0.0
        %2763 = vmatprep.subr.mxu0 0.0
        %2764 = vmatpush1.msra.mxu0 0.0
        %2765 = vmatprep.subr.mxu0 0.0
        %2766 = vmatpush1.msra.mxu0 0.0
        %2767 = vmatprep.subr.mxu0 0.0
        %2768 = vmatpush1.msra.mxu0 0.0
        %2769 = vmatprep.subr.mxu0 0.0
        %2770 = vmatpush1.msra.mxu0 0.0
        %2771 = vmatprep.subr.mxu0 0.0
        %2772 = vmatpush1.msra.mxu0 0.0
        %2773 = vmatprep.subr.mxu0 0.0
        %2774 = vmatpush1.msra.mxu0 0.0
        %2775 = vmatprep.subr.mxu0 0.0
        %2776 = vmatpush1.msra.mxu0 0.0
        %2777 = vmatprep.subr.mxu0 0.0
        %2778 = vmatpush1.msra.mxu0 0.0
        %2779 = vmatprep.subr.mxu0 0.0
        %2780 = vmatpush1.msra.mxu0 0.0
        %2781 = vmatprep.subr.mxu0 0.0
        %2782 = vmatpush1.msra.mxu0 0.0
        %2783 = vmatprep.subr.mxu0 0.0
        %2784 = vmatpush1.msra.mxu0 0.0
        %2785 = vmatprep.subr.mxu0 0.0
        %2786 = vmatpush1.msra.mxu0 0.0
        %2787 = vmatprep.subr.mxu0 0.0
        %2788 = vmatpush1.msra.mxu0 0.0
        %2789 = vmatprep.subr.mxu0 0.0
        %2790 = vmatpush1.msra.mxu0 0.0
        %2791 = vmatprep.subr.mxu0 0.0
        %2792 = vmatpush1.msra.mxu0 0.0
        %2793 = vmatprep.subr.mxu0 0.0
        %2794 = vmatpush1.msra.mxu0 0.0
        %2795 = vmatprep.subr.mxu0 0.0
        %2796 = vmatpush1.msra.mxu0 0.0
        %2797 = vmatprep.subr.mxu0 0.0
        %2798 = vmatpush1.msra.mxu0 0.0
        %2799 = vmatprep.subr.mxu0 0.0
        %2800 = vmatpush1.msra.mxu0 0.0
        %2801 = vmatprep.subr.mxu0 0.0
        %2802 = vmatpush1.msra.mxu0 0.0
        %2803 = vmatprep.subr.mxu0 0.0
        %2804 = vmatpush1.msra.mxu0 0.0
        %2805 = vmatprep.subr.mxu0 0.0
        %2806 = vmatpush1.msra.mxu0 0.0
        %2807 = vmatprep.subr.mxu0 0.0
        %2808 = vmatpush1.msra.mxu0 0.0
        %2809 = vmatprep.subr.mxu0 0.0
        %2810 = vmatpush1.msra.mxu0 0.0
        %2811 = vmatprep.subr.mxu0 0.0
        %2812 = vmatpush1.msra.mxu0 0.0
        %2813 = vmatprep.subr.mxu0 0.0
        %2814 = vmatpush1.msra.mxu0 0.0
        %2815 = vmatprep.subr.mxu0 0.0
        %2816 = vmatpush1.msra.mxu0 0.0
        %2817 = vmatprep.subr.mxu0 0.0
        %2818 = vmatpush1.msra.mxu0 0.0
        %2819 = vmatprep.mubr.f32.mxu0 0.0
        %2820 = vmatmul.mubr.f32.gmra.mrb[0].mxu0 %v2753
        %v2821 = vpop.f32.mrb[0].mxu0
        %v2822 = vadd.f32 0.0, %v2821
        %v2823 = vpop.f32.mrb[0].mxu0
        %2824 = vdwg.mxu0
        %s2825 = scalar_lea.vmem %s1389, 8
        %v2826 = vld [vmem:[%s2825] sm:$0xff]
        %v2828 = vsel %vm1890, %v2749, 0
        %v2831 = vsel %vm1890, %v2822, 0
        %2833 = vmatprep.subr.mxu0 0.0
        %2834 = vmatpush1.msra.mxu0 %v2826
        %2835 = vmatprep.subr.mxu0 0.0
        %2836 = vmatpush1.msra.mxu0 0.0
        %2837 = vmatprep.subr.mxu0 0.0
        %2838 = vmatpush1.msra.mxu0 0.0
        %2839 = vmatprep.subr.mxu0 0.0
        %2840 = vmatpush1.msra.mxu0 0.0
        %2841 = vmatprep.subr.mxu0 0.0
        %2842 = vmatpush1.msra.mxu0 0.0
        %2843 = vmatprep.subr.mxu0 0.0
        %2844 = vmatpush1.msra.mxu0 0.0
        %2845 = vmatprep.subr.mxu0 0.0
        %2846 = vmatpush1.msra.mxu0 0.0
        %2847 = vmatprep.subr.mxu0 0.0
        %2848 = vmatpush1.msra.mxu0 0.0
        %2849 = vmatprep.subr.mxu0 0.0
        %2850 = vmatpush1.msra.mxu0 0.0
        %2851 = vmatprep.subr.mxu0 0.0
        %2852 = vmatpush1.msra.mxu0 0.0
        %2853 = vmatprep.subr.mxu0 0.0
        %2854 = vmatpush1.msra.mxu0 0.0
        %2855 = vmatprep.subr.mxu0 0.0
        %2856 = vmatpush1.msra.mxu0 0.0
        %2857 = vmatprep.subr.mxu0 0.0
        %2858 = vmatpush1.msra.mxu0 0.0
        %2859 = vmatprep.subr.mxu0 0.0
        %2860 = vmatpush1.msra.mxu0 0.0
        %2861 = vmatprep.subr.mxu0 0.0
        %2862 = vmatpush1.msra.mxu0 0.0
        %2863 = vmatprep.subr.mxu0 0.0
        %2864 = vmatpush1.msra.mxu0 0.0
        %2865 = vmatprep.subr.mxu0 0.0
        %2866 = vmatpush1.msra.mxu0 0.0
        %2867 = vmatprep.subr.mxu0 0.0
        %2868 = vmatpush1.msra.mxu0 0.0
        %2869 = vmatprep.subr.mxu0 0.0
        %2870 = vmatpush1.msra.mxu0 0.0
        %2871 = vmatprep.subr.mxu0 0.0
        %2872 = vmatpush1.msra.mxu0 0.0
        %2873 = vmatprep.subr.mxu0 0.0
        %2874 = vmatpush1.msra.mxu0 0.0
        %2875 = vmatprep.subr.mxu0 0.0
        %2876 = vmatpush1.msra.mxu0 0.0
        %2877 = vmatprep.subr.mxu0 0.0
        %2878 = vmatpush1.msra.mxu0 0.0
        %2879 = vmatprep.subr.mxu0 0.0
        %2880 = vmatpush1.msra.mxu0 0.0
        %2881 = vmatprep.subr.mxu0 0.0
        %2882 = vmatpush1.msra.mxu0 0.0
        %2883 = vmatprep.subr.mxu0 0.0
        %2884 = vmatpush1.msra.mxu0 0.0
        %2885 = vmatprep.subr.mxu0 0.0
        %2886 = vmatpush1.msra.mxu0 0.0
        %2887 = vmatprep.subr.mxu0 0.0
        %2888 = vmatpush1.msra.mxu0 0.0
        %2889 = vmatprep.subr.mxu0 0.0
        %2890 = vmatpush1.msra.mxu0 0.0
        %2891 = vmatprep.subr.mxu0 0.0
        %2892 = vmatpush1.msra.mxu0 0.0
        %2893 = vmatprep.subr.mxu0 0.0
        %2894 = vmatpush1.msra.mxu0 0.0
        %2895 = vmatprep.subr.mxu0 0.0
        %2896 = vmatpush1.msra.mxu0 0.0
        %2897 = vmatprep.mubr.f32.mxu0 0.0
        %2898 = vmatmul.mubr.f32.gmra.mrb[0].mxu0 %v2828
        %v2899 = vpop.f32.mrb[0].mxu0
        %v2900 = vadd.f32 0.0, %v2899
        %v2901 = vpop.f32.mrb[0].mxu0
        %2902 = vmatprep.mubr.f32.mxu0 0.0
        %2903 = vmatmul.mubr.f32.gmra.mrb[0].mxu0 %v2831
        %v2904 = vpop.f32.mrb[0].mxu0
        %v2905 = vadd.f32 0.0, %v2904
        %v2906 = vpop.f32.mrb[0].mxu0
        %2907 = vdwg.mxu0
        %v2909 = vsel %vm1890, %v2152, 0
        %v2912 = vsel %vm1890, %v2225, 0
        %2914 = vmatprep.subr.mxu0 0.0
        %2915 = vmatpush1.msra.mxu0 %v2228
        %2916 = vmatprep.subr.mxu0 0.0
        %2917 = vmatpush1.msra.mxu0 0.0
        %2918 = vmatprep.subr.mxu0 0.0
        %2919 = vmatpush1.msra.mxu0 0.0
        %2920 = vmatprep.subr.mxu0 0.0
        %2921 = vmatpush1.msra.mxu0 0.0
        %2922 = vmatprep.subr.mxu0 0.0
        %2923 = vmatpush1.msra.mxu0 0.0
        %2924 = vmatprep.subr.mxu0 0.0
        %2925 = vmatpush1.msra.mxu0 0.0
        %2926 = vmatprep.subr.mxu0 0.0
        %2927 = vmatpush1.msra.mxu0 0.0
        %2928 = vmatprep.subr.mxu0 0.0
        %2929 = vmatpush1.msra.mxu0 0.0
        %2930 = vmatprep.subr.mxu0 0.0
        %2931 = vmatpush1.msra.mxu0 0.0
        %2932 = vmatprep.subr.mxu0 0.0
        %2933 = vmatpush1.msra.mxu0 0.0
        %2934 = vmatprep.subr.mxu0 0.0
        %2935 = vmatpush1.msra.mxu0 0.0
        %2936 = vmatprep.subr.mxu0 0.0
        %2937 = vmatpush1.msra.mxu0 0.0
        %2938 = vmatprep.subr.mxu0 0.0
        %2939 = vmatpush1.msra.mxu0 0.0
        %2940 = vmatprep.subr.mxu0 0.0
        %2941 = vmatpush1.msra.mxu0 0.0
        %2942 = vmatprep.subr.mxu0 0.0
        %2943 = vmatpush1.msra.mxu0 0.0
        %2944 = vmatprep.subr.mxu0 0.0
        %2945 = vmatpush1.msra.mxu0 0.0
        %2946 = vmatprep.subr.mxu0 0.0
        %2947 = vmatpush1.msra.mxu0 0.0
        %2948 = vmatprep.subr.mxu0 0.0
        %2949 = vmatpush1.msra.mxu0 0.0
        %2950 = vmatprep.subr.mxu0 0.0
        %2951 = vmatpush1.msra.mxu0 0.0
        %2952 = vmatprep.subr.mxu0 0.0
        %2953 = vmatpush1.msra.mxu0 0.0
        %2954 = vmatprep.subr.mxu0 0.0
        %2955 = vmatpush1.msra.mxu0 0.0
        %2956 = vmatprep.subr.mxu0 0.0
        %2957 = vmatpush1.msra.mxu0 0.0
        %2958 = vmatprep.subr.mxu0 0.0
        %2959 = vmatpush1.msra.mxu0 0.0
        %2960 = vmatprep.subr.mxu0 0.0
        %2961 = vmatpush1.msra.mxu0 0.0
        %2962 = vmatprep.subr.mxu0 0.0
        %2963 = vmatpush1.msra.mxu0 0.0
        %2964 = vmatprep.subr.mxu0 0.0
        %2965 = vmatpush1.msra.mxu0 0.0
        %2966 = vmatprep.subr.mxu0 0.0
        %2967 = vmatpush1.msra.mxu0 0.0
        %2968 = vmatprep.subr.mxu0 0.0
        %2969 = vmatpush1.msra.mxu0 0.0
        %2970 = vmatprep.subr.mxu0 0.0
        %2971 = vmatpush1.msra.mxu0 0.0
        %2972 = vmatprep.subr.mxu0 0.0
        %2973 = vmatpush1.msra.mxu0 0.0
        %2974 = vmatprep.subr.mxu0 0.0
        %2975 = vmatpush1.msra.mxu0 0.0
        %2976 = vmatprep.subr.mxu0 0.0
        %2977 = vmatpush1.msra.mxu0 0.0
        %2978 = vmatprep.mubr.f32.mxu0 0.0
        %2979 = vmatmul.mubr.f32.gmra.mrb[0].mxu0 %v2909
        %v2980 = vpop.f32.mrb[0].mxu0
        %v2981 = vadd.f32 %v2900, %v2980
        %v2982 = vpop.f32.mrb[0].mxu0
        %2983 = vmatprep.mubr.f32.mxu0 0.0
        %2984 = vmatmul.mubr.f32.gmra.mrb[0].mxu0 %v2912
        %v2985 = vpop.f32.mrb[0].mxu0
        %v2986 = vadd.f32 %v2905, %v2985
        %v2987 = vpop.f32.mrb[0].mxu0
        %2988 = vdwg.mxu0
        %v2989 = vld [vmem:[%s1392] sm:$0x1]
        %v2991 = vlaneseq
        %v2992 = vshrl.u32 %v2991, 7
        %v2993 = vsub.s32 0, %v2992
        %v2994 = vrot.slane %v2989, %v2993
        %v2996 = vadd.f32 %v2981, %v2994
        %v2997 = vadd.f32 %v2986, %v2994
        %v2998 = vld [vmem:[%s1395] sm:$0x1]
        %v2999 = vld [vmem:[%s1398] sm:$0x1]
        %v3001 = vlaneseq
        %v3002 = vshrl.u32 %v3001, 7
        %v3003 = vsub.s32 0, %v3002
        %v3004 = vrot.slane %v2998, %v3003
        %v3006 = vmul.f32 %v1591, %v3004
        %v3007 = vmul.f32 %v1592, %v3004
        %v3008 = vmul.f32 %v1593, %v3004
        %v3009 = vmul.f32 %v1594, %v3004
        %v3011 = vlaneseq
        %v3012 = vshrl.u32 %v3011, 7
        %v3013 = vsub.s32 0, %v3012
        %v3014 = vrot.slane %v2999, %v3013
        %v3016 = vadd.f32 %v3006, %v3014
        %v3017 = vadd.f32 %v3007, %v3014
        %v3018 = vadd.f32 %v3008, %v3014
        %v3019 = vadd.f32 %v3009, %v3014
        %v3020 = vld [vmem:[%s1401] sm:$0x1]
        %v3021 = vld [vmem:[%s1404] sm:$0x1]
        %v3023 = vlaneseq
        %v3024 = vshrl.u32 %v3023, 7
        %v3025 = vsub.s32 0, %v3024
        %v3026 = vrot.slane %v3020, %v3025
        %v3028 = vmul.f32 %v1523, %v3026
        %v3029 = vmul.f32 %v1524, %v3026
        %v3031 = vlaneseq
        %v3032 = vshrl.u32 %v3031, 7
        %v3033 = vsub.s32 0, %v3032
        %v3034 = vrot.slane %v3021, %v3033
        %v3036 = vadd.f32 %v3028, %v3034
        %v3037 = vadd.f32 %v3029, %v3034
        %v3038 = vld [vmem:[%s1409] sm:$0xff]
        %v3039 = vld [vmem:[%s1409 + $0x8] sm:$0xff]
        %v3040 = vld [vmem:[%s1409 + $0x10] sm:$0xff]
        %v3041 = vld [vmem:[%s1409 + $0x18] sm:$0xff]
        %v3043 = vsel %vm1497, %v3016, 0
        %v3046 = vsel %vm1497, %v3017, 0
        %v3049 = vsel %vm1497, %v3018, 0
        %v3052 = vsel %vm1497, %v3019, 0
        %3054 = vmatprep.subr.mxu0 0.0
        %3055 = vmatpush1.msra.mxu0 %v3038
        %3056 = vmatprep.subr.mxu0 0.0
        %3057 = vmatpush1.msra.mxu0 %v3039
        %3058 = vmatprep.subr.mxu0 0.0
        %3059 = vmatpush1.msra.mxu0 %v3040
        %3060 = vmatprep.subr.mxu0 0.0
        %3061 = vmatpush1.msra.mxu0 %v3041
        %3062 = vmatprep.subr.mxu0 0.0
        %3063 = vmatpush1.msra.mxu0 0.0
        %3064 = vmatprep.subr.mxu0 0.0
        %3065 = vmatpush1.msra.mxu0 0.0
        %3066 = vmatprep.subr.mxu0 0.0
        %3067 = vmatpush1.msra.mxu0 0.0
        %3068 = vmatprep.subr.mxu0 0.0
        %3069 = vmatpush1.msra.mxu0 0.0
        %3070 = vmatprep.subr.mxu0 0.0
        %3071 = vmatpush1.msra.mxu0 0.0
        %3072 = vmatprep.subr.mxu0 0.0
        %3073 = vmatpush1.msra.mxu0 0.0
        %3074 = vmatprep.subr.mxu0 0.0
        %3075 = vmatpush1.msra.mxu0 0.0
        %3076 = vmatprep.subr.mxu0 0.0
        %3077 = vmatpush1.msra.mxu0 0.0
        %3078 = vmatprep.subr.mxu0 0.0
        %3079 = vmatpush1.msra.mxu0 0.0
        %3080 = vmatprep.subr.mxu0 0.0
        %3081 = vmatpush1.msra.mxu0 0.0
        %3082 = vmatprep.subr.mxu0 0.0
        %3083 = vmatpush1.msra.mxu0 0.0
        %3084 = vmatprep.subr.mxu0 0.0
        %3085 = vmatpush1.msra.mxu0 0.0
        %3086 = vmatprep.subr.mxu0 0.0
        %3087 = vmatpush1.msra.mxu0 0.0
        %3088 = vmatprep.subr.mxu0 0.0
        %3089 = vmatpush1.msra.mxu0 0.0
        %3090 = vmatprep.subr.mxu0 0.0
        %3091 = vmatpush1.msra.mxu0 0.0
        %3092 = vmatprep.subr.mxu0 0.0
        %3093 = vmatpush1.msra.mxu0 0.0
        %3094 = vmatprep.subr.mxu0 0.0
        %3095 = vmatpush1.msra.mxu0 0.0
        %3096 = vmatprep.subr.mxu0 0.0
        %3097 = vmatpush1.msra.mxu0 0.0
        %3098 = vmatprep.subr.mxu0 0.0
        %3099 = vmatpush1.msra.mxu0 0.0
        %3100 = vmatprep.subr.mxu0 0.0
        %3101 = vmatpush1.msra.mxu0 0.0
        %3102 = vmatprep.subr.mxu0 0.0
        %3103 = vmatpush1.msra.mxu0 0.0
        %3104 = vmatprep.subr.mxu0 0.0
        %3105 = vmatpush1.msra.mxu0 0.0
        %3106 = vmatprep.subr.mxu0 0.0
        %3107 = vmatpush1.msra.mxu0 0.0
        %3108 = vmatprep.subr.mxu0 0.0
        %3109 = vmatpush1.msra.mxu0 0.0
        %3110 = vmatprep.subr.mxu0 0.0
        %3111 = vmatpush1.msra.mxu0 0.0
        %3112 = vmatprep.subr.mxu0 0.0
        %3113 = vmatpush1.msra.mxu0 0.0
        %3114 = vmatprep.subr.mxu0 0.0
        %3115 = vmatpush1.msra.mxu0 0.0
        %3116 = vmatprep.subr.mxu0 0.0
        %3117 = vmatpush1.msra.mxu0 0.0
        %3118 = vmatprep.mubr.f32.mxu0 0.0
        %3119 = vmatmul.mubr.f32.gmra.mrb[0].mxu0 %v3043
        %v3120 = vpop.f32.mrb[0].mxu0
        %v3121 = vadd.f32 0.0, %v3120
        %v3122 = vpop.f32.mrb[0].mxu0
        %3123 = vmatprep.mubr.f32.mxu0 0.0
        %3124 = vmatmul.mubr.f32.gmra.mrb[0].mxu0 %v3046
        %v3125 = vpop.f32.mrb[0].mxu0
        %v3126 = vadd.f32 0.0, %v3125
        %v3127 = vpop.f32.mrb[0].mxu0
        %3128 = vmatprep.mubr.f32.mxu0 0.0
        %3129 = vmatmul.mubr.f32.gmra.mrb[0].mxu0 %v3049
        %v3130 = vpop.f32.mrb[0].mxu0
        %v3131 = vadd.f32 0.0, %v3130
        %v3132 = vpop.f32.mrb[0].mxu0
        %3133 = vmatprep.mubr.f32.mxu0 0.0
        %3134 = vmatmul.mubr.f32.gmra.mrb[0].mxu0 %v3052
        %v3135 = vpop.f32.mrb[0].mxu0
        %v3136 = vadd.f32 0.0, %v3135
        %v3137 = vpop.f32.mrb[0].mxu0
        %3138 = vdwg.mxu0
        %v3139 = vld [vmem:[%s1414] sm:$0xff]
        %v3140 = vld [vmem:[%s1414 + $0x8] sm:$0xff]
        %v3141 = vld [vmem:[%s1414 + $0x10] sm:$0xff]
        %v3142 = vld [vmem:[%s1414 + $0x18] sm:$0xff]
        %v3144 = vsel %vm1497, %v3036, 0
        %v3147 = vsel %vm1497, %v3037, 0
        %3149 = vmatprep.subr.mxu0 0.0
        %3150 = vmatpush1.msra.mxu0 %v3139
        %3151 = vmatprep.subr.mxu0 0.0
        %3152 = vmatpush1.msra.mxu0 %v3140
        %3153 = vmatprep.subr.mxu0 0.0
        %3154 = vmatpush1.msra.mxu0 %v3141
        %3155 = vmatprep.subr.mxu0 0.0
        %3156 = vmatpush1.msra.mxu0 %v3142
        %3157 = vmatprep.subr.mxu0 0.0
        %3158 = vmatpush1.msra.mxu0 0.0
        %3159 = vmatprep.subr.mxu0 0.0
        %3160 = vmatpush1.msra.mxu0 0.0
        %3161 = vmatprep.subr.mxu0 0.0
        %3162 = vmatpush1.msra.mxu0 0.0
        %3163 = vmatprep.subr.mxu0 0.0
        %3164 = vmatpush1.msra.mxu0 0.0
        %3165 = vmatprep.subr.mxu0 0.0
        %3166 = vmatpush1.msra.mxu0 0.0
        %3167 = vmatprep.subr.mxu0 0.0
        %3168 = vmatpush1.msra.mxu0 0.0
        %3169 = vmatprep.subr.mxu0 0.0
        %3170 = vmatpush1.msra.mxu0 0.0
        %3171 = vmatprep.subr.mxu0 0.0
        %3172 = vmatpush1.msra.mxu0 0.0
        %3173 = vmatprep.subr.mxu0 0.0
        %3174 = vmatpush1.msra.mxu0 0.0
        %3175 = vmatprep.subr.mxu0 0.0
        %3176 = vmatpush1.msra.mxu0 0.0
        %3177 = vmatprep.subr.mxu0 0.0
        %3178 = vmatpush1.msra.mxu0 0.0
        %3179 = vmatprep.subr.mxu0 0.0
        %3180 = vmatpush1.msra.mxu0 0.0
        %3181 = vmatprep.subr.mxu0 0.0
        %3182 = vmatpush1.msra.mxu0 0.0
        %3183 = vmatprep.subr.mxu0 0.0
        %3184 = vmatpush1.msra.mxu0 0.0
        %3185 = vmatprep.subr.mxu0 0.0
        %3186 = vmatpush1.msra.mxu0 0.0
        %3187 = vmatprep.subr.mxu0 0.0
        %3188 = vmatpush1.msra.mxu0 0.0
        %3189 = vmatprep.subr.mxu0 0.0
        %3190 = vmatpush1.msra.mxu0 0.0
        %3191 = vmatprep.subr.mxu0 0.0
        %3192 = vmatpush1.msra.mxu0 0.0
        %3193 = vmatprep.subr.mxu0 0.0
        %3194 = vmatpush1.msra.mxu0 0.0
        %3195 = vmatprep.subr.mxu0 0.0
        %3196 = vmatpush1.msra.mxu0 0.0
        %3197 = vmatprep.subr.mxu0 0.0
        %3198 = vmatpush1.msra.mxu0 0.0
        %3199 = vmatprep.subr.mxu0 0.0
        %3200 = vmatpush1.msra.mxu0 0.0
        %3201 = vmatprep.subr.mxu0 0.0
        %3202 = vmatpush1.msra.mxu0 0.0
        %3203 = vmatprep.subr.mxu0 0.0
        %3204 = vmatpush1.msra.mxu0 0.0
        %3205 = vmatprep.subr.mxu0 0.0
        %3206 = vmatpush1.msra.mxu0 0.0
        %3207 = vmatprep.subr.mxu0 0.0
        %3208 = vmatpush1.msra.mxu0 0.0
        %3209 = vmatprep.subr.mxu0 0.0
        %3210 = vmatpush1.msra.mxu0 0.0
        %3211 = vmatprep.subr.mxu0 0.0
        %3212 = vmatpush1.msra.mxu0 0.0
        %3213 = vmatprep.mubr.f32.mxu0 0.0
        %3214 = vmatmul.mubr.f32.gmra.mrb[0].mxu0 %v3144
        %v3215 = vpop.f32.mrb[0].mxu0
        %v3216 = vadd.f32 0.0, %v3215
        %v3217 = vpop.f32.mrb[0].mxu0
        %3218 = vmatprep.mubr.f32.mxu0 0.0
        %3219 = vmatmul.mubr.f32.gmra.mrb[0].mxu0 %v3147
        %v3220 = vpop.f32.mrb[0].mxu0
        %v3221 = vadd.f32 0.0, %v3220
        %v3222 = vpop.f32.mrb[0].mxu0
        %3223 = vdwg.mxu0
        %v3224 = vld [vmem:[%s1419] sm:$0xff]
        %v3225 = vld [vmem:[%s1419 + $0x8] sm:$0xff]
        %v3226 = vld [vmem:[%s1419 + $0x10] sm:$0xff]
        %v3227 = vld [vmem:[%s1419 + $0x18] sm:$0xff]
        %3228 = vmatprep.subr.mxu0 0.0
        %3229 = vmatpush1.msra.mxu0 %v3224
        %3230 = vmatprep.subr.mxu0 0.0
        %3231 = vmatpush1.msra.mxu0 %v3225
        %3232 = vmatprep.subr.mxu0 0.0
        %3233 = vmatpush1.msra.mxu0 %v3226
        %3234 = vmatprep.subr.mxu0 0.0
        %3235 = vmatpush1.msra.mxu0 %v3227
        %3236 = vmatprep.subr.mxu0 0.0
        %3237 = vmatpush1.msra.mxu0 0.0
        %3238 = vmatprep.subr.mxu0 0.0
        %3239 = vmatpush1.msra.mxu0 0.0
        %3240 = vmatprep.subr.mxu0 0.0
        %3241 = vmatpush1.msra.mxu0 0.0
        %3242 = vmatprep.subr.mxu0 0.0
        %3243 = vmatpush1.msra.mxu0 0.0
        %3244 = vmatprep.subr.mxu0 0.0
        %3245 = vmatpush1.msra.mxu0 0.0
        %3246 = vmatprep.subr.mxu0 0.0
        %3247 = vmatpush1.msra.mxu0 0.0
        %3248 = vmatprep.subr.mxu0 0.0
        %3249 = vmatpush1.msra.mxu0 0.0
        %3250 = vmatprep.subr.mxu0 0.0
        %3251 = vmatpush1.msra.mxu0 0.0
        %3252 = vmatprep.subr.mxu0 0.0
        %3253 = vmatpush1.msra.mxu0 0.0
        %3254 = vmatprep.subr.mxu0 0.0
        %3255 = vmatpush1.msra.mxu0 0.0
        %3256 = vmatprep.subr.mxu0 0.0
        %3257 = vmatpush1.msra.mxu0 0.0
        %3258 = vmatprep.subr.mxu0 0.0
        %3259 = vmatpush1.msra.mxu0 0.0
        %3260 = vmatprep.subr.mxu0 0.0
        %3261 = vmatpush1.msra.mxu0 0.0
        %3262 = vmatprep.subr.mxu0 0.0
        %3263 = vmatpush1.msra.mxu0 0.0
        %3264 = vmatprep.subr.mxu0 0.0
        %3265 = vmatpush1.msra.mxu0 0.0
        %3266 = vmatprep.subr.mxu0 0.0
        %3267 = vmatpush1.msra.mxu0 0.0
        %3268 = vmatprep.subr.mxu0 0.0
        %3269 = vmatpush1.msra.mxu0 0.0
        %3270 = vmatprep.subr.mxu0 0.0
        %3271 = vmatpush1.msra.mxu0 0.0
        %3272 = vmatprep.subr.mxu0 0.0
        %3273 = vmatpush1.msra.mxu0 0.0
        %3274 = vmatprep.subr.mxu0 0.0
        %3275 = vmatpush1.msra.mxu0 0.0
        %3276 = vmatprep.subr.mxu0 0.0
        %3277 = vmatpush1.msra.mxu0 0.0
        %3278 = vmatprep.subr.mxu0 0.0
        %3279 = vmatpush1.msra.mxu0 0.0
        %3280 = vmatprep.subr.mxu0 0.0
        %3281 = vmatpush1.msra.mxu0 0.0
        %3282 = vmatprep.subr.mxu0 0.0
        %3283 = vmatpush1.msra.mxu0 0.0
        %3284 = vmatprep.subr.mxu0 0.0
        %3285 = vmatpush1.msra.mxu0 0.0
        %3286 = vmatprep.subr.mxu0 0.0
        %3287 = vmatpush1.msra.mxu0 0.0
        %3288 = vmatprep.subr.mxu0 0.0
        %3289 = vmatpush1.msra.mxu0 0.0
        %3290 = vmatprep.subr.mxu0 0.0
        %3291 = vmatpush1.msra.mxu0 0.0
        %3292 = vmatprep.mubr.f32.mxu0 0.0
        %3293 = vmatmul.mubr.f32.gmra.mrb[0].mxu0 %v3144
        %v3294 = vpop.f32.mrb[0].mxu0
        %v3295 = vadd.f32 0.0, %v3294
        %v3296 = vpop.f32.mrb[0].mxu0
        %3297 = vmatprep.mubr.f32.mxu0 0.0
        %3298 = vmatmul.mubr.f32.gmra.mrb[0].mxu0 %v3147
        %v3299 = vpop.f32.mrb[0].mxu0
        %v3300 = vadd.f32 0.0, %v3299
        %v3301 = vpop.f32.mrb[0].mxu0
        %3302 = vdwg.mxu0
        %v3304 = vsel %vm1890, %v3121, 0
        %v3307 = vsel %vm1890, %v3126, 0
        %v3310 = vsel %vm1890, %v3216, 0
        %3312 = vmatprep.subr.mxu0 0.0
        %3313 = vmatpush1.xpose.msra.mxu0 %v3310
        %3314 = vmatprep.subr.mxu0 0.0
        %3315 = vmatpush1.xpose.msra.mxu0 0.0
        %3316 = vmatprep.subr.mxu0 0.0
        %3317 = vmatpush1.xpose.msra.mxu0 0.0
        %3318 = vmatprep.subr.mxu0 0.0
        %3319 = vmatpush1.xpose.msra.mxu0 0.0
        %3320 = vmatprep.subr.mxu0 0.0
        %3321 = vmatpush1.xpose.msra.mxu0 0.0
        %3322 = vmatprep.subr.mxu0 0.0
        %3323 = vmatpush1.xpose.msra.mxu0 0.0
        %3324 = vmatprep.subr.mxu0 0.0
        %3325 = vmatpush1.xpose.msra.mxu0 0.0
        %3326 = vmatprep.subr.mxu0 0.0
        %3327 = vmatpush1.xpose.msra.mxu0 0.0
        %3328 = vmatprep.subr.mxu0 0.0
        %3329 = vmatpush1.xpose.msra.mxu0 0.0
        %3330 = vmatprep.subr.mxu0 0.0
        %3331 = vmatpush1.xpose.msra.mxu0 0.0
        %3332 = vmatprep.subr.mxu0 0.0
        %3333 = vmatpush1.xpose.msra.mxu0 0.0
        %3334 = vmatprep.subr.mxu0 0.0
        %3335 = vmatpush1.xpose.msra.mxu0 0.0
        %3336 = vmatprep.subr.mxu0 0.0
        %3337 = vmatpush1.xpose.msra.mxu0 0.0
        %3338 = vmatprep.subr.mxu0 0.0
        %3339 = vmatpush1.xpose.msra.mxu0 0.0
        %3340 = vmatprep.subr.mxu0 0.0
        %3341 = vmatpush1.xpose.msra.mxu0 0.0
        %3342 = vmatprep.subr.mxu0 0.0
        %3343 = vmatpush1.xpose.msra.mxu0 0.0
        %3344 = vmatprep.subr.mxu0 0.0
        %3345 = vmatpush1.xpose.msra.mxu0 0.0
        %3346 = vmatprep.subr.mxu0 0.0
        %3347 = vmatpush1.xpose.msra.mxu0 0.0
        %3348 = vmatprep.subr.mxu0 0.0
        %3349 = vmatpush1.xpose.msra.mxu0 0.0
        %3350 = vmatprep.subr.mxu0 0.0
        %3351 = vmatpush1.xpose.msra.mxu0 0.0
        %3352 = vmatprep.subr.mxu0 0.0
        %3353 = vmatpush1.xpose.msra.mxu0 0.0
        %3354 = vmatprep.subr.mxu0 0.0
        %3355 = vmatpush1.xpose.msra.mxu0 0.0
        %3356 = vmatprep.subr.mxu0 0.0
        %3357 = vmatpush1.xpose.msra.mxu0 0.0
        %3358 = vmatprep.subr.mxu0 0.0
        %3359 = vmatpush1.xpose.msra.mxu0 0.0
        %3360 = vmatprep.subr.mxu0 0.0
        %3361 = vmatpush1.xpose.msra.mxu0 0.0
        %3362 = vmatprep.subr.mxu0 0.0
        %3363 = vmatpush1.xpose.msra.mxu0 0.0
        %3364 = vmatprep.subr.mxu0 0.0
        %3365 = vmatpush1.xpose.msra.mxu0 0.0
        %3366 = vmatprep.subr.mxu0 0.0
        %3367 = vmatpush1.xpose.msra.mxu0 0.0
        %3368 = vmatprep.subr.mxu0 0.0
        %3369 = vmatpush1.xpose.msra.mxu0 0.0
        %3370 = vmatprep.subr.mxu0 0.0
        %3371 = vmatpush1.xpose.msra.mxu0 0.0
        %3372 = vmatprep.subr.mxu0 0.0
        %3373 = vmatpush1.xpose.msra.mxu0 0.0
        %3374 = vmatprep.subr.mxu0 0.0
        %3375 = vmatpush1.xpose.msra.mxu0 0.0
        %3376 = vmatprep.mubr.f32.mxu0 0.0
        %3377 = vmatmul.mubr.f32.gmra.mrb[0].mxu0 %v3304
        %v3378 = vpop.f32.mrb[0].mxu0
        %v3379 = vadd.f32 0.0, %v3378
        %v3380 = vpop.f32.mrb[0].mxu0
        %3381 = vmatprep.mubr.f32.mxu0 0.0
        %3382 = vmatmul.mubr.f32.gmra.mrb[0].mxu0 %v3307
        %v3383 = vpop.f32.mrb[0].mxu0
        %v3384 = vadd.f32 0.0, %v3383
        %v3385 = vpop.f32.mrb[0].mxu0
        %3386 = vdwg.mxu0
        %v3388 = vsel %vm1890, %v3131, 0
        %v3391 = vsel %vm1890, %v3136, 0
        %v3394 = vsel %vm1890, %v3221, 0
        %3396 = vmatprep.subr.mxu0 0.0
        %3397 = vmatpush1.xpose.msra.mxu0 %v3394
        %3398 = vmatprep.subr.mxu0 0.0
        %3399 = vmatpush1.xpose.msra.mxu0 0.0
        %3400 = vmatprep.subr.mxu0 0.0
        %3401 = vmatpush1.xpose.msra.mxu0 0.0
        %3402 = vmatprep.subr.mxu0 0.0
        %3403 = vmatpush1.xpose.msra.mxu0 0.0
        %3404 = vmatprep.subr.mxu0 0.0
        %3405 = vmatpush1.xpose.msra.mxu0 0.0
        %3406 = vmatprep.subr.mxu0 0.0
        %3407 = vmatpush1.xpose.msra.mxu0 0.0
        %3408 = vmatprep.subr.mxu0 0.0
        %3409 = vmatpush1.xpose.msra.mxu0 0.0
        %3410 = vmatprep.subr.mxu0 0.0
        %3411 = vmatpush1.xpose.msra.mxu0 0.0
        %3412 = vmatprep.subr.mxu0 0.0
        %3413 = vmatpush1.xpose.msra.mxu0 0.0
        %3414 = vmatprep.subr.mxu0 0.0
        %3415 = vmatpush1.xpose.msra.mxu0 0.0
        %3416 = vmatprep.subr.mxu0 0.0
        %3417 = vmatpush1.xpose.msra.mxu0 0.0
        %3418 = vmatprep.subr.mxu0 0.0
        %3419 = vmatpush1.xpose.msra.mxu0 0.0
        %3420 = vmatprep.subr.mxu0 0.0
        %3421 = vmatpush1.xpose.msra.mxu0 0.0
        %3422 = vmatprep.subr.mxu0 0.0
        %3423 = vmatpush1.xpose.msra.mxu0 0.0
        %3424 = vmatprep.subr.mxu0 0.0
        %3425 = vmatpush1.xpose.msra.mxu0 0.0
        %3426 = vmatprep.subr.mxu0 0.0
        %3427 = vmatpush1.xpose.msra.mxu0 0.0
        %3428 = vmatprep.subr.mxu0 0.0
        %3429 = vmatpush1.xpose.msra.mxu0 0.0
        %3430 = vmatprep.subr.mxu0 0.0
        %3431 = vmatpush1.xpose.msra.mxu0 0.0
        %3432 = vmatprep.subr.mxu0 0.0
        %3433 = vmatpush1.xpose.msra.mxu0 0.0
        %3434 = vmatprep.subr.mxu0 0.0
        %3435 = vmatpush1.xpose.msra.mxu0 0.0
        %3436 = vmatprep.subr.mxu0 0.0
        %3437 = vmatpush1.xpose.msra.mxu0 0.0
        %3438 = vmatprep.subr.mxu0 0.0
        %3439 = vmatpush1.xpose.msra.mxu0 0.0
        %3440 = vmatprep.subr.mxu0 0.0
        %3441 = vmatpush1.xpose.msra.mxu0 0.0
        %3442 = vmatprep.subr.mxu0 0.0
        %3443 = vmatpush1.xpose.msra.mxu0 0.0
        %3444 = vmatprep.subr.mxu0 0.0
        %3445 = vmatpush1.xpose.msra.mxu0 0.0
        %3446 = vmatprep.subr.mxu0 0.0
        %3447 = vmatpush1.xpose.msra.mxu0 0.0
        %3448 = vmatprep.subr.mxu0 0.0
        %3449 = vmatpush1.xpose.msra.mxu0 0.0
        %3450 = vmatprep.subr.mxu0 0.0
        %3451 = vmatpush1.xpose.msra.mxu0 0.0
        %3452 = vmatprep.subr.mxu0 0.0
        %3453 = vmatpush1.xpose.msra.mxu0 0.0
        %3454 = vmatprep.subr.mxu0 0.0
        %3455 = vmatpush1.xpose.msra.mxu0 0.0
        %3456 = vmatprep.subr.mxu0 0.0
        %3457 = vmatpush1.xpose.msra.mxu0 0.0
        %3458 = vmatprep.subr.mxu0 0.0
        %3459 = vmatpush1.xpose.msra.mxu0 0.0
        %3460 = vmatprep.mubr.f32.mxu0 0.0
        %3461 = vmatmul.mubr.f32.gmra.mrb[0].mxu0 %v3388
        %v3462 = vpop.f32.mrb[0].mxu0
        %v3463 = vadd.f32 0.0, %v3462
        %v3464 = vpop.f32.mrb[0].mxu0
        %3465 = vmatprep.mubr.f32.mxu0 0.0
        %3466 = vmatmul.mubr.f32.gmra.mrb[0].mxu0 %v3391
        %v3467 = vpop.f32.mrb[0].mxu0
        %v3468 = vadd.f32 0.0, %v3467
        %v3469 = vpop.f32.mrb[0].mxu0
        %3470 = vdwg.mxu0
        %v3471 = vsel %vm1890, %v3379, -inf
        %3472 = vmax.xlane.f32.xlu0 %v3471
        %v3473 = vpop.xlane.xlu0 %3472
        %v3474 = vsel %vm1890, %v3384, -inf
        %3475 = vmax.xlane.f32.xlu0 %v3474
        %v3476 = vpop.xlane.xlu0 %3475
        %v3477 = vsel %vm1890, %v3463, -inf
        %3478 = vmax.xlane.f32.xlu0 %v3477
        %v3479 = vpop.xlane.xlu0 %3478
        %v3480 = vsel %vm1890, %v3468, -inf
        %3481 = vmax.xlane.f32.xlu0 %v3480
        %v3482 = vpop.xlane.xlu0 %3481
        %v3483 = vmax.f32 %v3473, 0.0
        %v3484 = vmax.f32 %v3476, 0.0
        %v3485 = vmax.f32 %v3479, 0.0
        %v3486 = vmax.f32 %v3482, 0.0
        %v3487 = vsub.f32 %v3379, %v3483
        %v3488 = vsub.f32 %v3384, %v3484
        %v3489 = vsub.f32 %v3463, %v3485
        %v3490 = vsub.f32 %v3468, %v3486
        %v3491 = vmul.f32 %v3487, 1.442695
        %v3492 = vpow.pop %v3491
        %v3493 = vmul.f32 %v3488, 1.442695
        %v3494 = vpow.pop %v3493
        %v3495 = vmul.f32 %v3489, 1.442695
        %v3496 = vpow.pop %v3495
        %v3497 = vmul.f32 %v3490, 1.442695
        %v3498 = vpow.pop %v3497
        %v3499 = vsub.f32 0.0, %v3483
        %v3500 = vsub.f32 0.0, %v3484
        %v3501 = vsub.f32 0.0, %v3485
        %v3502 = vsub.f32 0.0, %v3486
        %v3503 = vmul.f32 %v3499, 1.442695
        %v3504 = vpow.pop %v3503
        %v3505 = vmul.f32 %v3500, 1.442695
        %v3506 = vpow.pop %v3505
        %v3507 = vmul.f32 %v3501, 1.442695
        %v3508 = vpow.pop %v3507
        %v3509 = vmul.f32 %v3502, 1.442695
        %v3510 = vpow.pop %v3509
        %v3511 = vsel %vm1890, %v3492, 0.0
        %3512 = vadd.xlane.f32.xlu0 %v3511
        %v3513 = vpop.xlane.xlu0 %3512
        %v3514 = vsel %vm1890, %v3494, 0.0
        %3515 = vadd.xlane.f32.xlu0 %v3514
        %v3516 = vpop.xlane.xlu0 %3515
        %v3517 = vsel %vm1890, %v3496, 0.0
        %3518 = vadd.xlane.f32.xlu0 %v3517
        %v3519 = vpop.xlane.xlu0 %3518
        %v3520 = vsel %vm1890, %v3498, 0.0
        %3521 = vadd.xlane.f32.xlu0 %v3520
        %v3522 = vpop.xlane.xlu0 %3521
        %v3523 = vadd.f32 %v3504, %v3513
        %v3524 = vadd.f32 %v3506, %v3516
        %v3525 = vadd.f32 %v3508, %v3519
        %v3526 = vadd.f32 %v3510, %v3522
        %v3527 = vrcp.pop %v3523
        %v3528 = vmul.f32 %v3492, %v3527
        %v3529 = vrcp.pop %v3524
        %v3530 = vmul.f32 %v3494, %v3529
        %v3531 = vrcp.pop %v3525
        %v3532 = vmul.f32 %v3496, %v3531
        %v3533 = vrcp.pop %v3526
        %v3534 = vmul.f32 %v3498, %v3533
        %v3536 = vsel %vm1890, %v3528, 0
        %v3539 = vsel %vm1890, %v3530, 0
        %3541 = vmatprep.subr.mxu0 0.0
        %3542 = vmatpush1.msra.mxu0 %v3295
        %3543 = vmatprep.subr.mxu0 0.0
        %3544 = vmatpush1.msra.mxu0 0.0
        %3545 = vmatprep.subr.mxu0 0.0
        %3546 = vmatpush1.msra.mxu0 0.0
        %3547 = vmatprep.subr.mxu0 0.0
        %3548 = vmatpush1.msra.mxu0 0.0
        %3549 = vmatprep.subr.mxu0 0.0
        %3550 = vmatpush1.msra.mxu0 0.0
        %3551 = vmatprep.subr.mxu0 0.0
        %3552 = vmatpush1.msra.mxu0 0.0
        %3553 = vmatprep.subr.mxu0 0.0
        %3554 = vmatpush1.msra.mxu0 0.0
        %3555 = vmatprep.subr.mxu0 0.0
        %3556 = vmatpush1.msra.mxu0 0.0
        %3557 = vmatprep.subr.mxu0 0.0
        %3558 = vmatpush1.msra.mxu0 0.0
        %3559 = vmatprep.subr.mxu0 0.0
        %3560 = vmatpush1.msra.mxu0 0.0
        %3561 = vmatprep.subr.mxu0 0.0
        %3562 = vmatpush1.msra.mxu0 0.0
        %3563 = vmatprep.subr.mxu0 0.0
        %3564 = vmatpush1.msra.mxu0 0.0
        %3565 = vmatprep.subr.mxu0 0.0
        %3566 = vmatpush1.msra.mxu0 0.0
        %3567 = vmatprep.subr.mxu0 0.0
        %3568 = vmatpush1.msra.mxu0 0.0
        %3569 = vmatprep.subr.mxu0 0.0
        %3570 = vmatpush1.msra.mxu0 0.0
        %3571 = vmatprep.subr.mxu0 0.0
        %3572 = vmatpush1.msra.mxu0 0.0
        %3573 = vmatprep.subr.mxu0 0.0
        %3574 = vmatpush1.msra.mxu0 0.0
        %3575 = vmatprep.subr.mxu0 0.0
        %3576 = vmatpush1.msra.mxu0 0.0
        %3577 = vmatprep.subr.mxu0 0.0
        %3578 = vmatpush1.msra.mxu0 0.0
        %3579 = vmatprep.subr.mxu0 0.0
        %3580 = vmatpush1.msra.mxu0 0.0
        %3581 = vmatprep.subr.mxu0 0.0
        %3582 = vmatpush1.msra.mxu0 0.0
        %3583 = vmatprep.subr.mxu0 0.0
        %3584 = vmatpush1.msra.mxu0 0.0
        %3585 = vmatprep.subr.mxu0 0.0
        %3586 = vmatpush1.msra.mxu0 0.0
        %3587 = vmatprep.subr.mxu0 0.0
        %3588 = vmatpush1.msra.mxu0 0.0
        %3589 = vmatprep.subr.mxu0 0.0
        %3590 = vmatpush1.msra.mxu0 0.0
        %3591 = vmatprep.subr.mxu0 0.0
        %3592 = vmatpush1.msra.mxu0 0.0
        %3593 = vmatprep.subr.mxu0 0.0
        %3594 = vmatpush1.msra.mxu0 0.0
        %3595 = vmatprep.subr.mxu0 0.0
        %3596 = vmatpush1.msra.mxu0 0.0
        %3597 = vmatprep.subr.mxu0 0.0
        %3598 = vmatpush1.msra.mxu0 0.0
        %3599 = vmatprep.subr.mxu0 0.0
        %3600 = vmatpush1.msra.mxu0 0.0
        %3601 = vmatprep.subr.mxu0 0.0
        %3602 = vmatpush1.msra.mxu0 0.0
        %3603 = vmatprep.subr.mxu0 0.0
        %3604 = vmatpush1.msra.mxu0 0.0
        %3605 = vmatprep.mubr.f32.mxu0 0.0
        %3606 = vmatmul.mubr.f32.gmra.mrb[0].mxu0 %v3536
        %v3607 = vpop.f32.mrb[0].mxu0
        %v3608 = vadd.f32 0.0, %v3607
        %v3609 = vpop.f32.mrb[0].mxu0
        %3610 = vmatprep.mubr.f32.mxu0 0.0
        %3611 = vmatmul.mubr.f32.gmra.mrb[0].mxu0 %v3539
        %v3612 = vpop.f32.mrb[0].mxu0
        %v3613 = vadd.f32 0.0, %v3612
        %v3614 = vpop.f32.mrb[0].mxu0
        %3615 = vdwg.mxu0
        %v3617 = vsel %vm1890, %v3532, 0
        %v3620 = vsel %vm1890, %v3534, 0
        %3622 = vmatprep.subr.mxu0 0.0
        %3623 = vmatpush1.msra.mxu0 %v3300
        %3624 = vmatprep.subr.mxu0 0.0
        %3625 = vmatpush1.msra.mxu0 0.0
        %3626 = vmatprep.subr.mxu0 0.0
        %3627 = vmatpush1.msra.mxu0 0.0
        %3628 = vmatprep.subr.mxu0 0.0
        %3629 = vmatpush1.msra.mxu0 0.0
        %3630 = vmatprep.subr.mxu0 0.0
        %3631 = vmatpush1.msra.mxu0 0.0
        %3632 = vmatprep.subr.mxu0 0.0
        %3633 = vmatpush1.msra.mxu0 0.0
        %3634 = vmatprep.subr.mxu0 0.0
        %3635 = vmatpush1.msra.mxu0 0.0
        %3636 = vmatprep.subr.mxu0 0.0
        %3637 = vmatpush1.msra.mxu0 0.0
        %3638 = vmatprep.subr.mxu0 0.0
        %3639 = vmatpush1.msra.mxu0 0.0
        %3640 = vmatprep.subr.mxu0 0.0
        %3641 = vmatpush1.msra.mxu0 0.0
        %3642 = vmatprep.subr.mxu0 0.0
        %3643 = vmatpush1.msra.mxu0 0.0
        %3644 = vmatprep.subr.mxu0 0.0
        %3645 = vmatpush1.msra.mxu0 0.0
        %3646 = vmatprep.subr.mxu0 0.0
        %3647 = vmatpush1.msra.mxu0 0.0
        %3648 = vmatprep.subr.mxu0 0.0
        %3649 = vmatpush1.msra.mxu0 0.0
        %3650 = vmatprep.subr.mxu0 0.0
        %3651 = vmatpush1.msra.mxu0 0.0
        %3652 = vmatprep.subr.mxu0 0.0
        %3653 = vmatpush1.msra.mxu0 0.0
        %3654 = vmatprep.subr.mxu0 0.0
        %3655 = vmatpush1.msra.mxu0 0.0
        %3656 = vmatprep.subr.mxu0 0.0
        %3657 = vmatpush1.msra.mxu0 0.0
        %3658 = vmatprep.subr.mxu0 0.0
        %3659 = vmatpush1.msra.mxu0 0.0
        %3660 = vmatprep.subr.mxu0 0.0
        %3661 = vmatpush1.msra.mxu0 0.0
        %3662 = vmatprep.subr.mxu0 0.0
        %3663 = vmatpush1.msra.mxu0 0.0
        %3664 = vmatprep.subr.mxu0 0.0
        %3665 = vmatpush1.msra.mxu0 0.0
        %3666 = vmatprep.subr.mxu0 0.0
        %3667 = vmatpush1.msra.mxu0 0.0
        %3668 = vmatprep.subr.mxu0 0.0
        %3669 = vmatpush1.msra.mxu0 0.0
        %3670 = vmatprep.subr.mxu0 0.0
        %3671 = vmatpush1.msra.mxu0 0.0
        %3672 = vmatprep.subr.mxu0 0.0
        %3673 = vmatpush1.msra.mxu0 0.0
        %3674 = vmatprep.subr.mxu0 0.0
        %3675 = vmatpush1.msra.mxu0 0.0
        %3676 = vmatprep.subr.mxu0 0.0
        %3677 = vmatpush1.msra.mxu0 0.0
        %3678 = vmatprep.subr.mxu0 0.0
        %3679 = vmatpush1.msra.mxu0 0.0
        %3680 = vmatprep.subr.mxu0 0.0
        %3681 = vmatpush1.msra.mxu0 0.0
        %3682 = vmatprep.subr.mxu0 0.0
        %3683 = vmatpush1.msra.mxu0 0.0
        %3684 = vmatprep.subr.mxu0 0.0
        %3685 = vmatpush1.msra.mxu0 0.0
        %3686 = vmatprep.mubr.f32.mxu0 0.0
        %3687 = vmatmul.mubr.f32.gmra.mrb[0].mxu0 %v3617
        %v3688 = vpop.f32.mrb[0].mxu0
        %v3689 = vadd.f32 0.0, %v3688
        %v3690 = vpop.f32.mrb[0].mxu0
        %3691 = vmatprep.mubr.f32.mxu0 0.0
        %3692 = vmatmul.mubr.f32.gmra.mrb[0].mxu0 %v3620
        %v3693 = vpop.f32.mrb[0].mxu0
        %v3694 = vadd.f32 0.0, %v3693
        %v3695 = vpop.f32.mrb[0].mxu0
        %3696 = vdwg.mxu0
        %v3697 = vld [vmem:[%s1424] sm:$0xff]
        %s3698 = scalar_lea.vmem %s1409, 32
        %v3699 = vld [vmem:[%s3698] sm:$0xff]
        %v3700 = vld [vmem:[%s3698 + $0x8] sm:$0xff]
        %v3701 = vld [vmem:[%s3698 + $0x10] sm:$0xff]
        %v3702 = vld [vmem:[%s3698 + $0x18] sm:$0xff]
        %3703 = vmatprep.subr.mxu0 0.0
        %3704 = vmatpush1.msra.mxu0 %v3699
        %3705 = vmatprep.subr.mxu0 0.0
        %3706 = vmatpush1.msra.mxu0 %v3700
        %3707 = vmatprep.subr.mxu0 0.0
        %3708 = vmatpush1.msra.mxu0 %v3701
        %3709 = vmatprep.subr.mxu0 0.0
        %3710 = vmatpush1.msra.mxu0 %v3702
        %3711 = vmatprep.subr.mxu0 0.0
        %3712 = vmatpush1.msra.mxu0 0.0
        %3713 = vmatprep.subr.mxu0 0.0
        %3714 = vmatpush1.msra.mxu0 0.0
        %3715 = vmatprep.subr.mxu0 0.0
        %3716 = vmatpush1.msra.mxu0 0.0
        %3717 = vmatprep.subr.mxu0 0.0
        %3718 = vmatpush1.msra.mxu0 0.0
        %3719 = vmatprep.subr.mxu0 0.0
        %3720 = vmatpush1.msra.mxu0 0.0
        %3721 = vmatprep.subr.mxu0 0.0
        %3722 = vmatpush1.msra.mxu0 0.0
        %3723 = vmatprep.subr.mxu0 0.0
        %3724 = vmatpush1.msra.mxu0 0.0
        %3725 = vmatprep.subr.mxu0 0.0
        %3726 = vmatpush1.msra.mxu0 0.0
        %3727 = vmatprep.subr.mxu0 0.0
        %3728 = vmatpush1.msra.mxu0 0.0
        %3729 = vmatprep.subr.mxu0 0.0
        %3730 = vmatpush1.msra.mxu0 0.0
        %3731 = vmatprep.subr.mxu0 0.0
        %3732 = vmatpush1.msra.mxu0 0.0
        %3733 = vmatprep.subr.mxu0 0.0
        %3734 = vmatpush1.msra.mxu0 0.0
        %3735 = vmatprep.subr.mxu0 0.0
        %3736 = vmatpush1.msra.mxu0 0.0
        %3737 = vmatprep.subr.mxu0 0.0
        %3738 = vmatpush1.msra.mxu0 0.0
        %3739 = vmatprep.subr.mxu0 0.0
        %3740 = vmatpush1.msra.mxu0 0.0
        %3741 = vmatprep.subr.mxu0 0.0
        %3742 = vmatpush1.msra.mxu0 0.0
        %3743 = vmatprep.subr.mxu0 0.0
        %3744 = vmatpush1.msra.mxu0 0.0
        %3745 = vmatprep.subr.mxu0 0.0
        %3746 = vmatpush1.msra.mxu0 0.0
        %3747 = vmatprep.subr.mxu0 0.0
        %3748 = vmatpush1.msra.mxu0 0.0
        %3749 = vmatprep.subr.mxu0 0.0
        %3750 = vmatpush1.msra.mxu0 0.0
        %3751 = vmatprep.subr.mxu0 0.0
        %3752 = vmatpush1.msra.mxu0 0.0
        %3753 = vmatprep.subr.mxu0 0.0
        %3754 = vmatpush1.msra.mxu0 0.0
        %3755 = vmatprep.subr.mxu0 0.0
        %3756 = vmatpush1.msra.mxu0 0.0
        %3757 = vmatprep.subr.mxu0 0.0
        %3758 = vmatpush1.msra.mxu0 0.0
        %3759 = vmatprep.subr.mxu0 0.0
        %3760 = vmatpush1.msra.mxu0 0.0
        %3761 = vmatprep.subr.mxu0 0.0
        %3762 = vmatpush1.msra.mxu0 0.0
        %3763 = vmatprep.subr.mxu0 0.0
        %3764 = vmatpush1.msra.mxu0 0.0
        %3765 = vmatprep.subr.mxu0 0.0
        %3766 = vmatpush1.msra.mxu0 0.0
        %3767 = vmatprep.mubr.f32.mxu0 0.0
        %3768 = vmatmul.mubr.f32.gmra.mrb[0].mxu0 %v3043
        %v3769 = vpop.f32.mrb[0].mxu0
        %v3770 = vadd.f32 0.0, %v3769
        %v3771 = vpop.f32.mrb[0].mxu0
        %3772 = vmatprep.mubr.f32.mxu0 0.0
        %3773 = vmatmul.mubr.f32.gmra.mrb[0].mxu0 %v3046
        %v3774 = vpop.f32.mrb[0].mxu0
        %v3775 = vadd.f32 0.0, %v3774
        %v3776 = vpop.f32.mrb[0].mxu0
        %3777 = vmatprep.mubr.f32.mxu0 0.0
        %3778 = vmatmul.mubr.f32.gmra.mrb[0].mxu0 %v3049
        %v3779 = vpop.f32.mrb[0].mxu0
        %v3780 = vadd.f32 0.0, %v3779
        %v3781 = vpop.f32.mrb[0].mxu0
        %3782 = vmatprep.mubr.f32.mxu0 0.0
        %3783 = vmatmul.mubr.f32.gmra.mrb[0].mxu0 %v3052
        %v3784 = vpop.f32.mrb[0].mxu0
        %v3785 = vadd.f32 0.0, %v3784
        %v3786 = vpop.f32.mrb[0].mxu0
        %3787 = vdwg.mxu0
        %s3788 = scalar_lea.vmem %s1414, 32
        %v3789 = vld [vmem:[%s3788] sm:$0xff]
        %v3790 = vld [vmem:[%s3788 + $0x8] sm:$0xff]
        %v3791 = vld [vmem:[%s3788 + $0x10] sm:$0xff]
        %v3792 = vld [vmem:[%s3788 + $0x18] sm:$0xff]
        %3793 = vmatprep.subr.mxu0 0.0
        %3794 = vmatpush1.msra.mxu0 %v3789
        %3795 = vmatprep.subr.mxu0 0.0
        %3796 = vmatpush1.msra.mxu0 %v3790
        %3797 = vmatprep.subr.mxu0 0.0
        %3798 = vmatpush1.msra.mxu0 %v3791
        %3799 = vmatprep.subr.mxu0 0.0
        %3800 = vmatpush1.msra.mxu0 %v3792
        %3801 = vmatprep.subr.mxu0 0.0
        %3802 = vmatpush1.msra.mxu0 0.0
        %3803 = vmatprep.subr.mxu0 0.0
        %3804 = vmatpush1.msra.mxu0 0.0
        %3805 = vmatprep.subr.mxu0 0.0
        %3806 = vmatpush1.msra.mxu0 0.0
        %3807 = vmatprep.subr.mxu0 0.0
        %3808 = vmatpush1.msra.mxu0 0.0
        %3809 = vmatprep.subr.mxu0 0.0
        %3810 = vmatpush1.msra.mxu0 0.0
        %3811 = vmatprep.subr.mxu0 0.0
        %3812 = vmatpush1.msra.mxu0 0.0
        %3813 = vmatprep.subr.mxu0 0.0
        %3814 = vmatpush1.msra.mxu0 0.0
        %3815 = vmatprep.subr.mxu0 0.0
        %3816 = vmatpush1.msra.mxu0 0.0
        %3817 = vmatprep.subr.mxu0 0.0
        %3818 = vmatpush1.msra.mxu0 0.0
        %3819 = vmatprep.subr.mxu0 0.0
        %3820 = vmatpush1.msra.mxu0 0.0
        %3821 = vmatprep.subr.mxu0 0.0
        %3822 = vmatpush1.msra.mxu0 0.0
        %3823 = vmatprep.subr.mxu0 0.0
        %3824 = vmatpush1.msra.mxu0 0.0
        %3825 = vmatprep.subr.mxu0 0.0
        %3826 = vmatpush1.msra.mxu0 0.0
        %3827 = vmatprep.subr.mxu0 0.0
        %3828 = vmatpush1.msra.mxu0 0.0
        %3829 = vmatprep.subr.mxu0 0.0
        %3830 = vmatpush1.msra.mxu0 0.0
        %3831 = vmatprep.subr.mxu0 0.0
        %3832 = vmatpush1.msra.mxu0 0.0
        %3833 = vmatprep.subr.mxu0 0.0
        %3834 = vmatpush1.msra.mxu0 0.0
        %3835 = vmatprep.subr.mxu0 0.0
        %3836 = vmatpush1.msra.mxu0 0.0
        %3837 = vmatprep.subr.mxu0 0.0
        %3838 = vmatpush1.msra.mxu0 0.0
        %3839 = vmatprep.subr.mxu0 0.0
        %3840 = vmatpush1.msra.mxu0 0.0
        %3841 = vmatprep.subr.mxu0 0.0
        %3842 = vmatpush1.msra.mxu0 0.0
        %3843 = vmatprep.subr.mxu0 0.0
        %3844 = vmatpush1.msra.mxu0 0.0
        %3845 = vmatprep.subr.mxu0 0.0
        %3846 = vmatpush1.msra.mxu0 0.0
        %3847 = vmatprep.subr.mxu0 0.0
        %3848 = vmatpush1.msra.mxu0 0.0
        %3849 = vmatprep.subr.mxu0 0.0
        %3850 = vmatpush1.msra.mxu0 0.0
        %3851 = vmatprep.subr.mxu0 0.0
        %3852 = vmatpush1.msra.mxu0 0.0
        %3853 = vmatprep.subr.mxu0 0.0
        %3854 = vmatpush1.msra.mxu0 0.0
        %3855 = vmatprep.subr.mxu0 0.0
        %3856 = vmatpush1.msra.mxu0 0.0
        %3857 = vmatprep.mubr.f32.mxu0 0.0
        %3858 = vmatmul.mubr.f32.gmra.mrb[0].mxu0 %v3144
        %v3859 = vpop.f32.mrb[0].mxu0
        %v3860 = vadd.f32 0.0, %v3859
        %v3861 = vpop.f32.mrb[0].mxu0
        %3862 = vmatprep.mubr.f32.mxu0 0.0
        %3863 = vmatmul.mubr.f32.gmra.mrb[0].mxu0 %v3147
        %v3864 = vpop.f32.mrb[0].mxu0
        %v3865 = vadd.f32 0.0, %v3864
        %v3866 = vpop.f32.mrb[0].mxu0
        %3867 = vdwg.mxu0
        %s3868 = scalar_lea.vmem %s1419, 32
        %v3869 = vld [vmem:[%s3868] sm:$0xff]
        %v3870 = vld [vmem:[%s3868 + $0x8] sm:$0xff]
        %v3871 = vld [vmem:[%s3868 + $0x10] sm:$0xff]
        %v3872 = vld [vmem:[%s3868 + $0x18] sm:$0xff]
        %3873 = vmatprep.subr.mxu0 0.0
        %3874 = vmatpush1.msra.mxu0 %v3869
        %3875 = vmatprep.subr.mxu0 0.0
        %3876 = vmatpush1.msra.mxu0 %v3870
        %3877 = vmatprep.subr.mxu0 0.0
        %3878 = vmatpush1.msra.mxu0 %v3871
        %3879 = vmatprep.subr.mxu0 0.0
        %3880 = vmatpush1.msra.mxu0 %v3872
        %3881 = vmatprep.subr.mxu0 0.0
        %3882 = vmatpush1.msra.mxu0 0.0
        %3883 = vmatprep.subr.mxu0 0.0
        %3884 = vmatpush1.msra.mxu0 0.0
        %3885 = vmatprep.subr.mxu0 0.0
        %3886 = vmatpush1.msra.mxu0 0.0
        %3887 = vmatprep.subr.mxu0 0.0
        %3888 = vmatpush1.msra.mxu0 0.0
        %3889 = vmatprep.subr.mxu0 0.0
        %3890 = vmatpush1.msra.mxu0 0.0
        %3891 = vmatprep.subr.mxu0 0.0
        %3892 = vmatpush1.msra.mxu0 0.0
        %3893 = vmatprep.subr.mxu0 0.0
        %3894 = vmatpush1.msra.mxu0 0.0
        %3895 = vmatprep.subr.mxu0 0.0
        %3896 = vmatpush1.msra.mxu0 0.0
        %3897 = vmatprep.subr.mxu0 0.0
        %3898 = vmatpush1.msra.mxu0 0.0
        %3899 = vmatprep.subr.mxu0 0.0
        %3900 = vmatpush1.msra.mxu0 0.0
        %3901 = vmatprep.subr.mxu0 0.0
        %3902 = vmatpush1.msra.mxu0 0.0
        %3903 = vmatprep.subr.mxu0 0.0
        %3904 = vmatpush1.msra.mxu0 0.0
        %3905 = vmatprep.subr.mxu0 0.0
        %3906 = vmatpush1.msra.mxu0 0.0
        %3907 = vmatprep.subr.mxu0 0.0
        %3908 = vmatpush1.msra.mxu0 0.0
        %3909 = vmatprep.subr.mxu0 0.0
        %3910 = vmatpush1.msra.mxu0 0.0
        %3911 = vmatprep.subr.mxu0 0.0
        %3912 = vmatpush1.msra.mxu0 0.0
        %3913 = vmatprep.subr.mxu0 0.0
        %3914 = vmatpush1.msra.mxu0 0.0
        %3915 = vmatprep.subr.mxu0 0.0
        %3916 = vmatpush1.msra.mxu0 0.0
        %3917 = vmatprep.subr.mxu0 0.0
        %3918 = vmatpush1.msra.mxu0 0.0
        %3919 = vmatprep.subr.mxu0 0.0
        %3920 = vmatpush1.msra.mxu0 0.0
        %3921 = vmatprep.subr.mxu0 0.0
        %3922 = vmatpush1.msra.mxu0 0.0
        %3923 = vmatprep.subr.mxu0 0.0
        %3924 = vmatpush1.msra.mxu0 0.0
        %3925 = vmatprep.subr.mxu0 0.0
        %3926 = vmatpush1.msra.mxu0 0.0
        %3927 = vmatprep.subr.mxu0 0.0
        %3928 = vmatpush1.msra.mxu0 0.0
        %3929 = vmatprep.subr.mxu0 0.0
        %3930 = vmatpush1.msra.mxu0 0.0
        %3931 = vmatprep.subr.mxu0 0.0
        %3932 = vmatpush1.msra.mxu0 0.0
        %3933 = vmatprep.subr.mxu0 0.0
        %3934 = vmatpush1.msra.mxu0 0.0
        %3935 = vmatprep.subr.mxu0 0.0
        %3936 = vmatpush1.msra.mxu0 0.0
        %3937 = vmatprep.mubr.f32.mxu0 0.0
        %3938 = vmatmul.mubr.f32.gmra.mrb[0].mxu0 %v3144
        %v3939 = vpop.f32.mrb[0].mxu0
        %v3940 = vadd.f32 0.0, %v3939
        %v3941 = vpop.f32.mrb[0].mxu0
        %3942 = vmatprep.mubr.f32.mxu0 0.0
        %3943 = vmatmul.mubr.f32.gmra.mrb[0].mxu0 %v3147
        %v3944 = vpop.f32.mrb[0].mxu0
        %v3945 = vadd.f32 0.0, %v3944
        %v3946 = vpop.f32.mrb[0].mxu0
        %3947 = vdwg.mxu0
        %v3949 = vsel %vm1890, %v3770, 0
        %v3952 = vsel %vm1890, %v3775, 0
        %v3955 = vsel %vm1890, %v3860, 0
        %3957 = vmatprep.subr.mxu0 0.0
        %3958 = vmatpush1.xpose.msra.mxu0 %v3955
        %3959 = vmatprep.subr.mxu0 0.0
        %3960 = vmatpush1.xpose.msra.mxu0 0.0
        %3961 = vmatprep.subr.mxu0 0.0
        %3962 = vmatpush1.xpose.msra.mxu0 0.0
        %3963 = vmatprep.subr.mxu0 0.0
        %3964 = vmatpush1.xpose.msra.mxu0 0.0
        %3965 = vmatprep.subr.mxu0 0.0
        %3966 = vmatpush1.xpose.msra.mxu0 0.0
        %3967 = vmatprep.subr.mxu0 0.0
        %3968 = vmatpush1.xpose.msra.mxu0 0.0
        %3969 = vmatprep.subr.mxu0 0.0
        %3970 = vmatpush1.xpose.msra.mxu0 0.0
        %3971 = vmatprep.subr.mxu0 0.0
        %3972 = vmatpush1.xpose.msra.mxu0 0.0
        %3973 = vmatprep.subr.mxu0 0.0
        %3974 = vmatpush1.xpose.msra.mxu0 0.0
        %3975 = vmatprep.subr.mxu0 0.0
        %3976 = vmatpush1.xpose.msra.mxu0 0.0
        %3977 = vmatprep.subr.mxu0 0.0
        %3978 = vmatpush1.xpose.msra.mxu0 0.0
        %3979 = vmatprep.subr.mxu0 0.0
        %3980 = vmatpush1.xpose.msra.mxu0 0.0
        %3981 = vmatprep.subr.mxu0 0.0
        %3982 = vmatpush1.xpose.msra.mxu0 0.0
        %3983 = vmatprep.subr.mxu0 0.0
        %3984 = vmatpush1.xpose.msra.mxu0 0.0
        %3985 = vmatprep.subr.mxu0 0.0
        %3986 = vmatpush1.xpose.msra.mxu0 0.0
        %3987 = vmatprep.subr.mxu0 0.0
        %3988 = vmatpush1.xpose.msra.mxu0 0.0
        %3989 = vmatprep.subr.mxu0 0.0
        %3990 = vmatpush1.xpose.msra.mxu0 0.0
        %3991 = vmatprep.subr.mxu0 0.0
        %3992 = vmatpush1.xpose.msra.mxu0 0.0
        %3993 = vmatprep.subr.mxu0 0.0
        %3994 = vmatpush1.xpose.msra.mxu0 0.0
        %3995 = vmatprep.subr.mxu0 0.0
        %3996 = vmatpush1.xpose.msra.mxu0 0.0
        %3997 = vmatprep.subr.mxu0 0.0
        %3998 = vmatpush1.xpose.msra.mxu0 0.0
        %3999 = vmatprep.subr.mxu0 0.0
        %4000 = vmatpush1.xpose.msra.mxu0 0.0
        %4001 = vmatprep.subr.mxu0 0.0
        %4002 = vmatpush1.xpose.msra.mxu0 0.0
        %4003 = vmatprep.subr.mxu0 0.0
        %4004 = vmatpush1.xpose.msra.mxu0 0.0
        %4005 = vmatprep.subr.mxu0 0.0
        %4006 = vmatpush1.xpose.msra.mxu0 0.0
        %4007 = vmatprep.subr.mxu0 0.0
        %4008 = vmatpush1.xpose.msra.mxu0 0.0
        %4009 = vmatprep.subr.mxu0 0.0
        %4010 = vmatpush1.xpose.msra.mxu0 0.0
        %4011 = vmatprep.subr.mxu0 0.0
        %4012 = vmatpush1.xpose.msra.mxu0 0.0
        %4013 = vmatprep.subr.mxu0 0.0
        %4014 = vmatpush1.xpose.msra.mxu0 0.0
        %4015 = vmatprep.subr.mxu0 0.0
        %4016 = vmatpush1.xpose.msra.mxu0 0.0
        %4017 = vmatprep.subr.mxu0 0.0
        %4018 = vmatpush1.xpose.msra.mxu0 0.0
        %4019 = vmatprep.subr.mxu0 0.0
        %4020 = vmatpush1.xpose.msra.mxu0 0.0
        %4021 = vmatprep.mubr.f32.mxu0 0.0
        %4022 = vmatmul.mubr.f32.gmra.mrb[0].mxu0 %v3949
        %v4023 = vpop.f32.mrb[0].mxu0
        %v4024 = vadd.f32 0.0, %v4023
        %v4025 = vpop.f32.mrb[0].mxu0
        %4026 = vmatprep.mubr.f32.mxu0 0.0
        %4027 = vmatmul.mubr.f32.gmra.mrb[0].mxu0 %v3952
        %v4028 = vpop.f32.mrb[0].mxu0
        %v4029 = vadd.f32 0.0, %v4028
        %v4030 = vpop.f32.mrb[0].mxu0
        %4031 = vdwg.mxu0
        %v4033 = vsel %vm1890, %v3780, 0
        %v4036 = vsel %vm1890, %v3785, 0
        %v4039 = vsel %vm1890, %v3865, 0
        %4041 = vmatprep.subr.mxu0 0.0
        %4042 = vmatpush1.xpose.msra.mxu0 %v4039
        %4043 = vmatprep.subr.mxu0 0.0
        %4044 = vmatpush1.xpose.msra.mxu0 0.0
        %4045 = vmatprep.subr.mxu0 0.0
        %4046 = vmatpush1.xpose.msra.mxu0 0.0
        %4047 = vmatprep.subr.mxu0 0.0
        %4048 = vmatpush1.xpose.msra.mxu0 0.0
        %4049 = vmatprep.subr.mxu0 0.0
        %4050 = vmatpush1.xpose.msra.mxu0 0.0
        %4051 = vmatprep.subr.mxu0 0.0
        %4052 = vmatpush1.xpose.msra.mxu0 0.0
        %4053 = vmatprep.subr.mxu0 0.0
        %4054 = vmatpush1.xpose.msra.mxu0 0.0
        %4055 = vmatprep.subr.mxu0 0.0
        %4056 = vmatpush1.xpose.msra.mxu0 0.0
        %4057 = vmatprep.subr.mxu0 0.0
        %4058 = vmatpush1.xpose.msra.mxu0 0.0
        %4059 = vmatprep.subr.mxu0 0.0
        %4060 = vmatpush1.xpose.msra.mxu0 0.0
        %4061 = vmatprep.subr.mxu0 0.0
        %4062 = vmatpush1.xpose.msra.mxu0 0.0
        %4063 = vmatprep.subr.mxu0 0.0
        %4064 = vmatpush1.xpose.msra.mxu0 0.0
        %4065 = vmatprep.subr.mxu0 0.0
        %4066 = vmatpush1.xpose.msra.mxu0 0.0
        %4067 = vmatprep.subr.mxu0 0.0
        %4068 = vmatpush1.xpose.msra.mxu0 0.0
        %4069 = vmatprep.subr.mxu0 0.0
        %4070 = vmatpush1.xpose.msra.mxu0 0.0
        %4071 = vmatprep.subr.mxu0 0.0
        %4072 = vmatpush1.xpose.msra.mxu0 0.0
        %4073 = vmatprep.subr.mxu0 0.0
        %4074 = vmatpush1.xpose.msra.mxu0 0.0
        %4075 = vmatprep.subr.mxu0 0.0
        %4076 = vmatpush1.xpose.msra.mxu0 0.0
        %4077 = vmatprep.subr.mxu0 0.0
        %4078 = vmatpush1.xpose.msra.mxu0 0.0
        %4079 = vmatprep.subr.mxu0 0.0
        %4080 = vmatpush1.xpose.msra.mxu0 0.0
        %4081 = vmatprep.subr.mxu0 0.0
        %4082 = vmatpush1.xpose.msra.mxu0 0.0
        %4083 = vmatprep.subr.mxu0 0.0
        %4084 = vmatpush1.xpose.msra.mxu0 0.0
        %4085 = vmatprep.subr.mxu0 0.0
        %4086 = vmatpush1.xpose.msra.mxu0 0.0
        %4087 = vmatprep.subr.mxu0 0.0
        %4088 = vmatpush1.xpose.msra.mxu0 0.0
        %4089 = vmatprep.subr.mxu0 0.0
        %4090 = vmatpush1.xpose.msra.mxu0 0.0
        %4091 = vmatprep.subr.mxu0 0.0
        %4092 = vmatpush1.xpose.msra.mxu0 0.0
        %4093 = vmatprep.subr.mxu0 0.0
        %4094 = vmatpush1.xpose.msra.mxu0 0.0
        %4095 = vmatprep.subr.mxu0 0.0
        %4096 = vmatpush1.xpose.msra.mxu0 0.0
        %4097 = vmatprep.subr.mxu0 0.0
        %4098 = vmatpush1.xpose.msra.mxu0 0.0
        %4099 = vmatprep.subr.mxu0 0.0
        %4100 = vmatpush1.xpose.msra.mxu0 0.0
        %4101 = vmatprep.subr.mxu0 0.0
        %4102 = vmatpush1.xpose.msra.mxu0 0.0
        %4103 = vmatprep.subr.mxu0 0.0
        %4104 = vmatpush1.xpose.msra.mxu0 0.0
        %4105 = vmatprep.mubr.f32.mxu0 0.0
        %4106 = vmatmul.mubr.f32.gmra.mrb[0].mxu0 %v4033
        %v4107 = vpop.f32.mrb[0].mxu0
        %v4108 = vadd.f32 0.0, %v4107
        %v4109 = vpop.f32.mrb[0].mxu0
        %4110 = vmatprep.mubr.f32.mxu0 0.0
        %4111 = vmatmul.mubr.f32.gmra.mrb[0].mxu0 %v4036
        %v4112 = vpop.f32.mrb[0].mxu0
        %v4113 = vadd.f32 0.0, %v4112
        %v4114 = vpop.f32.mrb[0].mxu0
        %4115 = vdwg.mxu0
        %v4116 = vsel %vm1890, %v4024, -inf
        %4117 = vmax.xlane.f32.xlu0 %v4116
        %v4118 = vpop.xlane.xlu0 %4117
        %v4119 = vsel %vm1890, %v4029, -inf
        %4120 = vmax.xlane.f32.xlu0 %v4119
        %v4121 = vpop.xlane.xlu0 %4120
        %v4122 = vsel %vm1890, %v4108, -inf
        %4123 = vmax.xlane.f32.xlu0 %v4122
        %v4124 = vpop.xlane.xlu0 %4123
        %v4125 = vsel %vm1890, %v4113, -inf
        %4126 = vmax.xlane.f32.xlu0 %v4125
        %v4127 = vpop.xlane.xlu0 %4126
        %v4128 = vmax.f32 %v4118, 0.0
        %v4129 = vmax.f32 %v4121, 0.0
        %v4130 = vmax.f32 %v4124, 0.0
        %v4131 = vmax.f32 %v4127, 0.0
        %v4132 = vsub.f32 %v4024, %v4128
        %v4133 = vsub.f32 %v4029, %v4129
        %v4134 = vsub.f32 %v4108, %v4130
        %v4135 = vsub.f32 %v4113, %v4131
        %v4136 = vmul.f32 %v4132, 1.442695
        %v4137 = vpow.pop %v4136
        %v4138 = vmul.f32 %v4133, 1.442695
        %v4139 = vpow.pop %v4138
        %v4140 = vmul.f32 %v4134, 1.442695
        %v4141 = vpow.pop %v4140
        %v4142 = vmul.f32 %v4135, 1.442695
        %v4143 = vpow.pop %v4142
        %v4144 = vsub.f32 0.0, %v4128
        %v4145 = vsub.f32 0.0, %v4129
        %v4146 = vsub.f32 0.0, %v4130
        %v4147 = vsub.f32 0.0, %v4131
        %v4148 = vmul.f32 %v4144, 1.442695
        %v4149 = vpow.pop %v4148
        %v4150 = vmul.f32 %v4145, 1.442695
        %v4151 = vpow.pop %v4150
        %v4152 = vmul.f32 %v4146, 1.442695
        %v4153 = vpow.pop %v4152
        %v4154 = vmul.f32 %v4147, 1.442695
        %v4155 = vpow.pop %v4154
        %v4156 = vsel %vm1890, %v4137, 0.0
        %4157 = vadd.xlane.f32.xlu0 %v4156
        %v4158 = vpop.xlane.xlu0 %4157
        %v4159 = vsel %vm1890, %v4139, 0.0
        %4160 = vadd.xlane.f32.xlu0 %v4159
        %v4161 = vpop.xlane.xlu0 %4160
        %v4162 = vsel %vm1890, %v4141, 0.0
        %4163 = vadd.xlane.f32.xlu0 %v4162
        %v4164 = vpop.xlane.xlu0 %4163
        %v4165 = vsel %vm1890, %v4143, 0.0
        %4166 = vadd.xlane.f32.xlu0 %v4165
        %v4167 = vpop.xlane.xlu0 %4166
        %v4168 = vadd.f32 %v4149, %v4158
        %v4169 = vadd.f32 %v4151, %v4161
        %v4170 = vadd.f32 %v4153, %v4164
        %v4171 = vadd.f32 %v4155, %v4167
        %v4172 = vrcp.pop %v4168
        %v4173 = vmul.f32 %v4137, %v4172
        %v4174 = vrcp.pop %v4169
        %v4175 = vmul.f32 %v4139, %v4174
        %v4176 = vrcp.pop %v4170
        %v4177 = vmul.f32 %v4141, %v4176
        %v4178 = vrcp.pop %v4171
        %v4179 = vmul.f32 %v4143, %v4178
        %v4181 = vsel %vm1890, %v4173, 0
        %v4184 = vsel %vm1890, %v4175, 0
        %4186 = vmatprep.subr.mxu0 0.0
        %4187 = vmatpush1.msra.mxu0 %v3940
        %4188 = vmatprep.subr.mxu0 0.0
        %4189 = vmatpush1.msra.mxu0 0.0
        %4190 = vmatprep.subr.mxu0 0.0
        %4191 = vmatpush1.msra.mxu0 0.0
        %4192 = vmatprep.subr.mxu0 0.0
        %4193 = vmatpush1.msra.mxu0 0.0
        %4194 = vmatprep.subr.mxu0 0.0
        %4195 = vmatpush1.msra.mxu0 0.0
        %4196 = vmatprep.subr.mxu0 0.0
        %4197 = vmatpush1.msra.mxu0 0.0
        %4198 = vmatprep.subr.mxu0 0.0
        %4199 = vmatpush1.msra.mxu0 0.0
        %4200 = vmatprep.subr.mxu0 0.0
        %4201 = vmatpush1.msra.mxu0 0.0
        %4202 = vmatprep.subr.mxu0 0.0
        %4203 = vmatpush1.msra.mxu0 0.0
        %4204 = vmatprep.subr.mxu0 0.0
        %4205 = vmatpush1.msra.mxu0 0.0
        %4206 = vmatprep.subr.mxu0 0.0
        %4207 = vmatpush1.msra.mxu0 0.0
        %4208 = vmatprep.subr.mxu0 0.0
        %4209 = vmatpush1.msra.mxu0 0.0
        %4210 = vmatprep.subr.mxu0 0.0
        %4211 = vmatpush1.msra.mxu0 0.0
        %4212 = vmatprep.subr.mxu0 0.0
        %4213 = vmatpush1.msra.mxu0 0.0
        %4214 = vmatprep.subr.mxu0 0.0
        %4215 = vmatpush1.msra.mxu0 0.0
        %4216 = vmatprep.subr.mxu0 0.0
        %4217 = vmatpush1.msra.mxu0 0.0
        %4218 = vmatprep.subr.mxu0 0.0
        %4219 = vmatpush1.msra.mxu0 0.0
        %4220 = vmatprep.subr.mxu0 0.0
        %4221 = vmatpush1.msra.mxu0 0.0
        %4222 = vmatprep.subr.mxu0 0.0
        %4223 = vmatpush1.msra.mxu0 0.0
        %4224 = vmatprep.subr.mxu0 0.0
        %4225 = vmatpush1.msra.mxu0 0.0
        %4226 = vmatprep.subr.mxu0 0.0
        %4227 = vmatpush1.msra.mxu0 0.0
        %4228 = vmatprep.subr.mxu0 0.0
        %4229 = vmatpush1.msra.mxu0 0.0
        %4230 = vmatprep.subr.mxu0 0.0
        %4231 = vmatpush1.msra.mxu0 0.0
        %4232 = vmatprep.subr.mxu0 0.0
        %4233 = vmatpush1.msra.mxu0 0.0
        %4234 = vmatprep.subr.mxu0 0.0
        %4235 = vmatpush1.msra.mxu0 0.0
        %4236 = vmatprep.subr.mxu0 0.0
        %4237 = vmatpush1.msra.mxu0 0.0
        %4238 = vmatprep.subr.mxu0 0.0
        %4239 = vmatpush1.msra.mxu0 0.0
        %4240 = vmatprep.subr.mxu0 0.0
        %4241 = vmatpush1.msra.mxu0 0.0
        %4242 = vmatprep.subr.mxu0 0.0
        %4243 = vmatpush1.msra.mxu0 0.0
        %4244 = vmatprep.subr.mxu0 0.0
        %4245 = vmatpush1.msra.mxu0 0.0
        %4246 = vmatprep.subr.mxu0 0.0
        %4247 = vmatpush1.msra.mxu0 0.0
        %4248 = vmatprep.subr.mxu0 0.0
        %4249 = vmatpush1.msra.mxu0 0.0
        %4250 = vmatprep.mubr.f32.mxu0 0.0
        %4251 = vmatmul.mubr.f32.gmra.mrb[0].mxu0 %v4181
        %v4252 = vpop.f32.mrb[0].mxu0
        %v4253 = vadd.f32 0.0, %v4252
        %v4254 = vpop.f32.mrb[0].mxu0
        %4255 = vmatprep.mubr.f32.mxu0 0.0
        %4256 = vmatmul.mubr.f32.gmra.mrb[0].mxu0 %v4184
        %v4257 = vpop.f32.mrb[0].mxu0
        %v4258 = vadd.f32 0.0, %v4257
        %v4259 = vpop.f32.mrb[0].mxu0
        %4260 = vdwg.mxu0
        %v4262 = vsel %vm1890, %v4177, 0
        %v4265 = vsel %vm1890, %v4179, 0
        %4267 = vmatprep.subr.mxu0 0.0
        %4268 = vmatpush1.msra.mxu0 %v3945
        %4269 = vmatprep.subr.mxu0 0.0
        %4270 = vmatpush1.msra.mxu0 0.0
        %4271 = vmatprep.subr.mxu0 0.0
        %4272 = vmatpush1.msra.mxu0 0.0
        %4273 = vmatprep.subr.mxu0 0.0
        %4274 = vmatpush1.msra.mxu0 0.0
        %4275 = vmatprep.subr.mxu0 0.0
        %4276 = vmatpush1.msra.mxu0 0.0
        %4277 = vmatprep.subr.mxu0 0.0
        %4278 = vmatpush1.msra.mxu0 0.0
        %4279 = vmatprep.subr.mxu0 0.0
        %4280 = vmatpush1.msra.mxu0 0.0
        %4281 = vmatprep.subr.mxu0 0.0
        %4282 = vmatpush1.msra.mxu0 0.0
        %4283 = vmatprep.subr.mxu0 0.0
        %4284 = vmatpush1.msra.mxu0 0.0
        %4285 = vmatprep.subr.mxu0 0.0
        %4286 = vmatpush1.msra.mxu0 0.0
        %4287 = vmatprep.subr.mxu0 0.0
        %4288 = vmatpush1.msra.mxu0 0.0
        %4289 = vmatprep.subr.mxu0 0.0
        %4290 = vmatpush1.msra.mxu0 0.0
        %4291 = vmatprep.subr.mxu0 0.0
        %4292 = vmatpush1.msra.mxu0 0.0
        %4293 = vmatprep.subr.mxu0 0.0
        %4294 = vmatpush1.msra.mxu0 0.0
        %4295 = vmatprep.subr.mxu0 0.0
        %4296 = vmatpush1.msra.mxu0 0.0
        %4297 = vmatprep.subr.mxu0 0.0
        %4298 = vmatpush1.msra.mxu0 0.0
        %4299 = vmatprep.subr.mxu0 0.0
        %4300 = vmatpush1.msra.mxu0 0.0
        %4301 = vmatprep.subr.mxu0 0.0
        %4302 = vmatpush1.msra.mxu0 0.0
        %4303 = vmatprep.subr.mxu0 0.0
        %4304 = vmatpush1.msra.mxu0 0.0
        %4305 = vmatprep.subr.mxu0 0.0
        %4306 = vmatpush1.msra.mxu0 0.0
        %4307 = vmatprep.subr.mxu0 0.0
        %4308 = vmatpush1.msra.mxu0 0.0
        %4309 = vmatprep.subr.mxu0 0.0
        %4310 = vmatpush1.msra.mxu0 0.0
        %4311 = vmatprep.subr.mxu0 0.0
        %4312 = vmatpush1.msra.mxu0 0.0
        %4313 = vmatprep.subr.mxu0 0.0
        %4314 = vmatpush1.msra.mxu0 0.0
        %4315 = vmatprep.subr.mxu0 0.0
        %4316 = vmatpush1.msra.mxu0 0.0
        %4317 = vmatprep.subr.mxu0 0.0
        %4318 = vmatpush1.msra.mxu0 0.0
        %4319 = vmatprep.subr.mxu0 0.0
        %4320 = vmatpush1.msra.mxu0 0.0
        %4321 = vmatprep.subr.mxu0 0.0
        %4322 = vmatpush1.msra.mxu0 0.0
        %4323 = vmatprep.subr.mxu0 0.0
        %4324 = vmatpush1.msra.mxu0 0.0
        %4325 = vmatprep.subr.mxu0 0.0
        %4326 = vmatpush1.msra.mxu0 0.0
        %4327 = vmatprep.subr.mxu0 0.0
        %4328 = vmatpush1.msra.mxu0 0.0
        %4329 = vmatprep.subr.mxu0 0.0
        %4330 = vmatpush1.msra.mxu0 0.0
        %4331 = vmatprep.mubr.f32.mxu0 0.0
        %4332 = vmatmul.mubr.f32.gmra.mrb[0].mxu0 %v4262
        %v4333 = vpop.f32.mrb[0].mxu0
        %v4334 = vadd.f32 0.0, %v4333
        %v4335 = vpop.f32.mrb[0].mxu0
        %4336 = vmatprep.mubr.f32.mxu0 0.0
        %4337 = vmatmul.mubr.f32.gmra.mrb[0].mxu0 %v4265
        %v4338 = vpop.f32.mrb[0].mxu0
        %v4339 = vadd.f32 0.0, %v4338
        %v4340 = vpop.f32.mrb[0].mxu0
        %4341 = vdwg.mxu0
        %s4342 = scalar_lea.vmem %s1424, 8
        %v4343 = vld [vmem:[%s4342] sm:$0xff]
        %v4345 = vsel %vm1890, %v4253, 0
        %v4348 = vsel %vm1890, %v4258, 0
        %v4351 = vsel %vm1890, %v4334, 0
        %v4354 = vsel %vm1890, %v4339, 0
        %4356 = vmatprep.subr.mxu0 0.0
        %4357 = vmatpush1.msra.mxu0 %v4343
        %4358 = vmatprep.subr.mxu0 0.0
        %4359 = vmatpush1.msra.mxu0 0.0
        %4360 = vmatprep.subr.mxu0 0.0
        %4361 = vmatpush1.msra.mxu0 0.0
        %4362 = vmatprep.subr.mxu0 0.0
        %4363 = vmatpush1.msra.mxu0 0.0
        %4364 = vmatprep.subr.mxu0 0.0
        %4365 = vmatpush1.msra.mxu0 0.0
        %4366 = vmatprep.subr.mxu0 0.0
        %4367 = vmatpush1.msra.mxu0 0.0
        %4368 = vmatprep.subr.mxu0 0.0
        %4369 = vmatpush1.msra.mxu0 0.0
        %4370 = vmatprep.subr.mxu0 0.0
        %4371 = vmatpush1.msra.mxu0 0.0
        %4372 = vmatprep.subr.mxu0 0.0
        %4373 = vmatpush1.msra.mxu0 0.0
        %4374 = vmatprep.subr.mxu0 0.0
        %4375 = vmatpush1.msra.mxu0 0.0
        %4376 = vmatprep.subr.mxu0 0.0
        %4377 = vmatpush1.msra.mxu0 0.0
        %4378 = vmatprep.subr.mxu0 0.0
        %4379 = vmatpush1.msra.mxu0 0.0
        %4380 = vmatprep.subr.mxu0 0.0
        %4381 = vmatpush1.msra.mxu0 0.0
        %4382 = vmatprep.subr.mxu0 0.0
        %4383 = vmatpush1.msra.mxu0 0.0
        %4384 = vmatprep.subr.mxu0 0.0
        %4385 = vmatpush1.msra.mxu0 0.0
        %4386 = vmatprep.subr.mxu0 0.0
        %4387 = vmatpush1.msra.mxu0 0.0
        %4388 = vmatprep.subr.mxu0 0.0
        %4389 = vmatpush1.msra.mxu0 0.0
        %4390 = vmatprep.subr.mxu0 0.0
        %4391 = vmatpush1.msra.mxu0 0.0
        %4392 = vmatprep.subr.mxu0 0.0
        %4393 = vmatpush1.msra.mxu0 0.0
        %4394 = vmatprep.subr.mxu0 0.0
        %4395 = vmatpush1.msra.mxu0 0.0
        %4396 = vmatprep.subr.mxu0 0.0
        %4397 = vmatpush1.msra.mxu0 0.0
        %4398 = vmatprep.subr.mxu0 0.0
        %4399 = vmatpush1.msra.mxu0 0.0
        %4400 = vmatprep.subr.mxu0 0.0
        %4401 = vmatpush1.msra.mxu0 0.0
        %4402 = vmatprep.subr.mxu0 0.0
        %4403 = vmatpush1.msra.mxu0 0.0
        %4404 = vmatprep.subr.mxu0 0.0
        %4405 = vmatpush1.msra.mxu0 0.0
        %4406 = vmatprep.subr.mxu0 0.0
        %4407 = vmatpush1.msra.mxu0 0.0
        %4408 = vmatprep.subr.mxu0 0.0
        %4409 = vmatpush1.msra.mxu0 0.0
        %4410 = vmatprep.subr.mxu0 0.0
        %4411 = vmatpush1.msra.mxu0 0.0
        %4412 = vmatprep.subr.mxu0 0.0
        %4413 = vmatpush1.msra.mxu0 0.0
        %4414 = vmatprep.subr.mxu0 0.0
        %4415 = vmatpush1.msra.mxu0 0.0
        %4416 = vmatprep.subr.mxu0 0.0
        %4417 = vmatpush1.msra.mxu0 0.0
        %4418 = vmatprep.subr.mxu0 0.0
        %4419 = vmatpush1.msra.mxu0 0.0
        %4420 = vmatprep.mubr.f32.mxu0 0.0
        %4421 = vmatmul.mubr.f32.gmra.mrb[0].mxu0 %v4345
        %v4422 = vpop.f32.mrb[0].mxu0
        %v4423 = vadd.f32 0.0, %v4422
        %v4424 = vpop.f32.mrb[0].mxu0
        %4425 = vmatprep.mubr.f32.mxu0 0.0
        %4426 = vmatmul.mubr.f32.gmra.mrb[0].mxu0 %v4348
        %v4427 = vpop.f32.mrb[0].mxu0
        %v4428 = vadd.f32 0.0, %v4427
        %v4429 = vpop.f32.mrb[0].mxu0
        %4430 = vmatprep.mubr.f32.mxu0 0.0
        %4431 = vmatmul.mubr.f32.gmra.mrb[0].mxu0 %v4351
        %v4432 = vpop.f32.mrb[0].mxu0
        %v4433 = vadd.f32 0.0, %v4432
        %v4434 = vpop.f32.mrb[0].mxu0
        %4435 = vmatprep.mubr.f32.mxu0 0.0
        %4436 = vmatmul.mubr.f32.gmra.mrb[0].mxu0 %v4354
        %v4437 = vpop.f32.mrb[0].mxu0
        %v4438 = vadd.f32 0.0, %v4437
        %v4439 = vpop.f32.mrb[0].mxu0
        %4440 = vdwg.mxu0
        %v4442 = vsel %vm1890, %v3608, 0
        %v4445 = vsel %vm1890, %v3613, 0
        %v4448 = vsel %vm1890, %v3689, 0
        %v4451 = vsel %vm1890, %v3694, 0
        %4453 = vmatprep.subr.mxu0 0.0
        %4454 = vmatpush1.msra.mxu0 %v3697
        %4455 = vmatprep.subr.mxu0 0.0
        %4456 = vmatpush1.msra.mxu0 0.0
        %4457 = vmatprep.subr.mxu0 0.0
        %4458 = vmatpush1.msra.mxu0 0.0
        %4459 = vmatprep.subr.mxu0 0.0
        %4460 = vmatpush1.msra.mxu0 0.0
        %4461 = vmatprep.subr.mxu0 0.0
        %4462 = vmatpush1.msra.mxu0 0.0
        %4463 = vmatprep.subr.mxu0 0.0
        %4464 = vmatpush1.msra.mxu0 0.0
        %4465 = vmatprep.subr.mxu0 0.0
        %4466 = vmatpush1.msra.mxu0 0.0
        %4467 = vmatprep.subr.mxu0 0.0
        %4468 = vmatpush1.msra.mxu0 0.0
        %4469 = vmatprep.subr.mxu0 0.0
        %4470 = vmatpush1.msra.mxu0 0.0
        %4471 = vmatprep.subr.mxu0 0.0
        %4472 = vmatpush1.msra.mxu0 0.0
        %4473 = vmatprep.subr.mxu0 0.0
        %4474 = vmatpush1.msra.mxu0 0.0
        %4475 = vmatprep.subr.mxu0 0.0
        %4476 = vmatpush1.msra.mxu0 0.0
        %4477 = vmatprep.subr.mxu0 0.0
        %4478 = vmatpush1.msra.mxu0 0.0
        %4479 = vmatprep.subr.mxu0 0.0
        %4480 = vmatpush1.msra.mxu0 0.0
        %4481 = vmatprep.subr.mxu0 0.0
        %4482 = vmatpush1.msra.mxu0 0.0
        %4483 = vmatprep.subr.mxu0 0.0
        %4484 = vmatpush1.msra.mxu0 0.0
        %4485 = vmatprep.subr.mxu0 0.0
        %4486 = vmatpush1.msra.mxu0 0.0
        %4487 = vmatprep.subr.mxu0 0.0
        %4488 = vmatpush1.msra.mxu0 0.0
        %4489 = vmatprep.subr.mxu0 0.0
        %4490 = vmatpush1.msra.mxu0 0.0
        %4491 = vmatprep.subr.mxu0 0.0
        %4492 = vmatpush1.msra.mxu0 0.0
        %4493 = vmatprep.subr.mxu0 0.0
        %4494 = vmatpush1.msra.mxu0 0.0
        %4495 = vmatprep.subr.mxu0 0.0
        %4496 = vmatpush1.msra.mxu0 0.0
        %4497 = vmatprep.subr.mxu0 0.0
        %4498 = vmatpush1.msra.mxu0 0.0
        %4499 = vmatprep.subr.mxu0 0.0
        %4500 = vmatpush1.msra.mxu0 0.0
        %4501 = vmatprep.subr.mxu0 0.0
        %4502 = vmatpush1.msra.mxu0 0.0
        %4503 = vmatprep.subr.mxu0 0.0
        %4504 = vmatpush1.msra.mxu0 0.0
        %4505 = vmatprep.subr.mxu0 0.0
        %4506 = vmatpush1.msra.mxu0 0.0
        %4507 = vmatprep.subr.mxu0 0.0
        %4508 = vmatpush1.msra.mxu0 0.0
        %4509 = vmatprep.subr.mxu0 0.0
        %4510 = vmatpush1.msra.mxu0 0.0
        %4511 = vmatprep.subr.mxu0 0.0
        %4512 = vmatpush1.msra.mxu0 0.0
        %4513 = vmatprep.subr.mxu0 0.0
        %4514 = vmatpush1.msra.mxu0 0.0
        %4515 = vmatprep.subr.mxu0 0.0
        %4516 = vmatpush1.msra.mxu0 0.0
        %4517 = vmatprep.mubr.f32.mxu0 0.0
        %4518 = vmatmul.mubr.f32.gmra.mrb[0].mxu0 %v4442
        %v4519 = vpop.f32.mrb[0].mxu0
        %v4520 = vadd.f32 %v4423, %v4519
        %v4521 = vpop.f32.mrb[0].mxu0
        %4522 = vmatprep.mubr.f32.mxu0 0.0
        %4523 = vmatmul.mubr.f32.gmra.mrb[0].mxu0 %v4445
        %v4524 = vpop.f32.mrb[0].mxu0
        %v4525 = vadd.f32 %v4428, %v4524
        %v4526 = vpop.f32.mrb[0].mxu0
        %4527 = vmatprep.mubr.f32.mxu0 0.0
        %4528 = vmatmul.mubr.f32.gmra.mrb[0].mxu0 %v4448
        %v4529 = vpop.f32.mrb[0].mxu0
        %v4530 = vadd.f32 %v4433, %v4529
        %v4531 = vpop.f32.mrb[0].mxu0
        %4532 = vmatprep.mubr.f32.mxu0 0.0
        %4533 = vmatmul.mubr.f32.gmra.mrb[0].mxu0 %v4451
        %v4534 = vpop.f32.mrb[0].mxu0
        %v4535 = vadd.f32 %v4438, %v4534
        %v4536 = vpop.f32.mrb[0].mxu0
        %4537 = vdwg.mxu0
        %v4538 = vld [vmem:[%s1427] sm:$0x1]
        %v4540 = vlaneseq
        %v4541 = vshrl.u32 %v4540, 7
        %v4542 = vsub.s32 0, %v4541
        %v4543 = vrot.slane %v4538, %v4542
        %v4545 = vadd.f32 %v4520, %v4543
        %v4546 = vadd.f32 %v4525, %v4543
        %v4547 = vadd.f32 %v4530, %v4543
        %v4548 = vadd.f32 %v4535, %v4543
        %v4549 = vadd.f32 %v1489, %v2996
        %v4550 = vadd.f32 %v1490, %v2997
        %v4551 = vadd.f32 %v1491, %v4545
        %v4552 = vadd.f32 %v1492, %v4546
        %v4553 = vadd.f32 %v1493, %v4547
        %v4554 = vadd.f32 %v1494, %v4548
        %v4555 = vld [vmem:[%s1430] sm:$0x1]
        %v4556 = vld [vmem:[%s1433] sm:$0x1]
        %v4557 = vsel %vm1497, %v4549, 0.0
        %4558 = vadd.xlane.f32.xlu0 %v4557
        %v4559 = vpop.xlane.xlu0 %4558
        %v4560 = vsel %vm1497, %v4550, 0.0
        %4561 = vadd.xlane.f32.xlu0 %v4560
        %v4562 = vpop.xlane.xlu0 %4561
        %v4563 = vmul.f32 %v4559, %v1504
        %v4564 = vmul.f32 %v4562, %v1504
        %v4565 = vsub.f32 %v4549, %v4563
        %v4566 = vsub.f32 %v4550, %v4564
        %v4567 = vmul.f32 %v4565, %v4565
        %v4568 = vmul.f32 %v4566, %v4566
        %v4569 = vsel %vm1497, %v4567, 0.0
        %4570 = vadd.xlane.f32.xlu0 %v4569
        %v4571 = vpop.xlane.xlu0 %4570
        %v4572 = vsel %vm1497, %v4568, 0.0
        %4573 = vadd.xlane.f32.xlu0 %v4572
        %v4574 = vpop.xlane.xlu0 %4573
        %v4575 = vmul.f32 %v4571, %v1504
        %v4576 = vmul.f32 %v4574, %v1504
        %v4577 = vadd.f32 %v4575, 1e-05
        %v4578 = vadd.f32 %v4576, 1e-05
        %v4579 = vrsqrt.pop %v4577
        %v4580 = vrsqrt.pop %v4578
        %v4581 = vmul.f32 %v4565, %v4579
        %v4582 = vmul.f32 %v4566, %v4580
        %v4584 = vlaneseq
        %v4585 = vshrl.u32 %v4584, 7
        %v4586 = vsub.s32 0, %v4585
        %v4587 = vrot.slane %v4555, %v4586
        %v4589 = vmul.f32 %v4581, %v4587
        %v4590 = vmul.f32 %v4582, %v4587
        %v4592 = vlaneseq
        %v4593 = vshrl.u32 %v4592, 7
        %v4594 = vsub.s32 0, %v4593
        %v4595 = vrot.slane %v4556, %v4594
        %v4597 = vadd.f32 %v4589, %v4595
        %v4598 = vadd.f32 %v4590, %v4595
        %v4599 = vld [vmem:[%s1438] sm:$0xff]
        %v4600 = vld [vmem:[%s1438 + $0x8] sm:$0xff]
        %v4601 = vld [vmem:[%s1438 + $0x10] sm:$0xff]
        %v4602 = vld [vmem:[%s1438 + $0x18] sm:$0xff]
        %v4603 = vld [vmem:[%s1441] sm:$0x1]
        %v4605 = vlaneseq
        %v4606 = vshrl.u32 %v4605, 7
        %v4607 = vsub.s32 0, %v4606
        %v4608 = vrot.slane %v4603, %v4607
        %v4611 = vsel %vm1497, %v4597, 0
        %v4614 = vsel %vm1497, %v4598, 0
        %4616 = vmatprep.subr.mxu0 0.0
        %4617 = vmatpush1.msra.mxu0 %v4599
        %4618 = vmatprep.subr.mxu0 0.0
        %4619 = vmatpush1.msra.mxu0 %v4600
        %4620 = vmatprep.subr.mxu0 0.0
        %4621 = vmatpush1.msra.mxu0 %v4601
        %4622 = vmatprep.subr.mxu0 0.0
        %4623 = vmatpush1.msra.mxu0 %v4602
        %4624 = vmatprep.subr.mxu0 0.0
        %4625 = vmatpush1.msra.mxu0 0.0
        %4626 = vmatprep.subr.mxu0 0.0
        %4627 = vmatpush1.msra.mxu0 0.0
        %4628 = vmatprep.subr.mxu0 0.0
        %4629 = vmatpush1.msra.mxu0 0.0
        %4630 = vmatprep.subr.mxu0 0.0
        %4631 = vmatpush1.msra.mxu0 0.0
        %4632 = vmatprep.subr.mxu0 0.0
        %4633 = vmatpush1.msra.mxu0 0.0
        %4634 = vmatprep.subr.mxu0 0.0
        %4635 = vmatpush1.msra.mxu0 0.0
        %4636 = vmatprep.subr.mxu0 0.0
        %4637 = vmatpush1.msra.mxu0 0.0
        %4638 = vmatprep.subr.mxu0 0.0
        %4639 = vmatpush1.msra.mxu0 0.0
        %4640 = vmatprep.subr.mxu0 0.0
        %4641 = vmatpush1.msra.mxu0 0.0
        %4642 = vmatprep.subr.mxu0 0.0
        %4643 = vmatpush1.msra.mxu0 0.0
        %4644 = vmatprep.subr.mxu0 0.0
        %4645 = vmatpush1.msra.mxu0 0.0
        %4646 = vmatprep.subr.mxu0 0.0
        %4647 = vmatpush1.msra.mxu0 0.0
        %4648 = vmatprep.subr.mxu0 0.0
        %4649 = vmatpush1.msra.mxu0 0.0
        %4650 = vmatprep.subr.mxu0 0.0
        %4651 = vmatpush1.msra.mxu0 0.0
        %4652 = vmatprep.subr.mxu0 0.0
        %4653 = vmatpush1.msra.mxu0 0.0
        %4654 = vmatprep.subr.mxu0 0.0
        %4655 = vmatpush1.msra.mxu0 0.0
        %4656 = vmatprep.subr.mxu0 0.0
        %4657 = vmatpush1.msra.mxu0 0.0
        %4658 = vmatprep.subr.mxu0 0.0
        %4659 = vmatpush1.msra.mxu0 0.0
        %4660 = vmatprep.subr.mxu0 0.0
        %4661 = vmatpush1.msra.mxu0 0.0
        %4662 = vmatprep.subr.mxu0 0.0
        %4663 = vmatpush1.msra.mxu0 0.0
        %4664 = vmatprep.subr.mxu0 0.0
        %4665 = vmatpush1.msra.mxu0 0.0
        %4666 = vmatprep.subr.mxu0 0.0
        %4667 = vmatpush1.msra.mxu0 0.0
        %4668 = vmatprep.subr.mxu0 0.0
        %4669 = vmatpush1.msra.mxu0 0.0
        %4670 = vmatprep.subr.mxu0 0.0
        %4671 = vmatpush1.msra.mxu0 0.0
        %4672 = vmatprep.subr.mxu0 0.0
        %4673 = vmatpush1.msra.mxu0 0.0
        %4674 = vmatprep.subr.mxu0 0.0
        %4675 = vmatpush1.msra.mxu0 0.0
        %4676 = vmatprep.subr.mxu0 0.0
        %4677 = vmatpush1.msra.mxu0 0.0
        %4678 = vmatprep.subr.mxu0 0.0
        %4679 = vmatpush1.msra.mxu0 0.0
        %4680 = vmatprep.mubr.f32.mxu0 0.0
        %4681 = vmatmul.mubr.f32.gmra.mrb[0].mxu0 %v4611
        %v4682 = vpop.f32.mrb[0].mxu0
        %v4683 = vadd.f32 %v4608, %v4682
        %v4684 = vpop.f32.mrb[0].mxu0
        %4685 = vmatprep.mubr.f32.mxu0 0.0
        %4686 = vmatmul.mubr.f32.gmra.mrb[0].mxu0 %v4614
        %v4687 = vpop.f32.mrb[0].mxu0
        %v4688 = vadd.f32 %v4608, %v4687
        %v4689 = vpop.f32.mrb[0].mxu0
        %4690 = vdwg.mxu0
        %v4691 = vmax.f32 %v4683, 0.0
        %v4692 = vmax.f32 %v4688, 0.0
        %v4693 = vld [vmem:[%s1446] sm:$0xff]
        %v4694 = vld [vmem:[%s1446 + $0x8] sm:$0xff]
        %v4695 = vld [vmem:[%s1446 + $0x10] sm:$0xff]
        %v4696 = vld [vmem:[%s1446 + $0x18] sm:$0xff]
        %v4697 = vld [vmem:[%s1446 + $0x20] sm:$0xff]
        %v4698 = vld [vmem:[%s1446 + $0x28] sm:$0xff]
        %v4699 = vld [vmem:[%s1446 + $0x30] sm:$0xff]
        %v4700 = vld [vmem:[%s1446 + $0x38] sm:$0xff]
        %v4701 = vld [vmem:[%s1449] sm:$0x1]
        %v4703 = vlaneseq
        %v4704 = vshrl.u32 %v4703, 7
        %v4705 = vsub.s32 0, %v4704
        %v4706 = vrot.slane %v4701, %v4705
        %vm4708 = vcmask 523264
        %v4710 = vsel %vm4708, %v4691, 0
        %v4713 = vsel %vm4708, %v4692, 0
        %4715 = vmatprep.subr.mxu0 0.0
        %4716 = vmatpush1.msra.mxu0 %v4693
        %4717 = vmatprep.subr.mxu0 0.0
        %4718 = vmatpush1.msra.mxu0 %v4694
        %4719 = vmatprep.subr.mxu0 0.0
        %4720 = vmatpush1.msra.mxu0 %v4695
        %4721 = vmatprep.subr.mxu0 0.0
        %4722 = vmatpush1.msra.mxu0 %v4696
        %4723 = vmatprep.subr.mxu0 0.0
        %4724 = vmatpush1.msra.mxu0 %v4697
        %4725 = vmatprep.subr.mxu0 0.0
        %4726 = vmatpush1.msra.mxu0 %v4698
        %4727 = vmatprep.subr.mxu0 0.0
        %4728 = vmatpush1.msra.mxu0 %v4699
        %4729 = vmatprep.subr.mxu0 0.0
        %4730 = vmatpush1.msra.mxu0 %v4700
        %4731 = vmatprep.subr.mxu0 0.0
        %4732 = vmatpush1.msra.mxu0 0.0
        %4733 = vmatprep.subr.mxu0 0.0
        %4734 = vmatpush1.msra.mxu0 0.0
        %4735 = vmatprep.subr.mxu0 0.0
        %4736 = vmatpush1.msra.mxu0 0.0
        %4737 = vmatprep.subr.mxu0 0.0
        %4738 = vmatpush1.msra.mxu0 0.0
        %4739 = vmatprep.subr.mxu0 0.0
        %4740 = vmatpush1.msra.mxu0 0.0
        %4741 = vmatprep.subr.mxu0 0.0
        %4742 = vmatpush1.msra.mxu0 0.0
        %4743 = vmatprep.subr.mxu0 0.0
        %4744 = vmatpush1.msra.mxu0 0.0
        %4745 = vmatprep.subr.mxu0 0.0
        %4746 = vmatpush1.msra.mxu0 0.0
        %4747 = vmatprep.subr.mxu0 0.0
        %4748 = vmatpush1.msra.mxu0 0.0
        %4749 = vmatprep.subr.mxu0 0.0
        %4750 = vmatpush1.msra.mxu0 0.0
        %4751 = vmatprep.subr.mxu0 0.0
        %4752 = vmatpush1.msra.mxu0 0.0
        %4753 = vmatprep.subr.mxu0 0.0
        %4754 = vmatpush1.msra.mxu0 0.0
        %4755 = vmatprep.subr.mxu0 0.0
        %4756 = vmatpush1.msra.mxu0 0.0
        %4757 = vmatprep.subr.mxu0 0.0
        %4758 = vmatpush1.msra.mxu0 0.0
        %4759 = vmatprep.subr.mxu0 0.0
        %4760 = vmatpush1.msra.mxu0 0.0
        %4761 = vmatprep.subr.mxu0 0.0
        %4762 = vmatpush1.msra.mxu0 0.0
        %4763 = vmatprep.subr.mxu0 0.0
        %4764 = vmatpush1.msra.mxu0 0.0
        %4765 = vmatprep.subr.mxu0 0.0
        %4766 = vmatpush1.msra.mxu0 0.0
        %4767 = vmatprep.subr.mxu0 0.0
        %4768 = vmatpush1.msra.mxu0 0.0
        %4769 = vmatprep.subr.mxu0 0.0
        %4770 = vmatpush1.msra.mxu0 0.0
        %4771 = vmatprep.subr.mxu0 0.0
        %4772 = vmatpush1.msra.mxu0 0.0
        %4773 = vmatprep.subr.mxu0 0.0
        %4774 = vmatpush1.msra.mxu0 0.0
        %4775 = vmatprep.subr.mxu0 0.0
        %4776 = vmatpush1.msra.mxu0 0.0
        %4777 = vmatprep.subr.mxu0 0.0
        %4778 = vmatpush1.msra.mxu0 0.0
        %4779 = vmatprep.mubr.f32.mxu0 0.0
        %4780 = vmatmul.mubr.f32.gmra.mrb[0].mxu0 %v4710
        %v4781 = vpop.f32.mrb[0].mxu0
        %v4782 = vadd.f32 %v4706, %v4781
        %v4783 = vpop.f32.mrb[0].mxu0
        %4784 = vmatprep.mubr.f32.mxu0 0.0
        %4785 = vmatmul.mubr.f32.gmra.mrb[0].mxu0 %v4713
        %v4786 = vpop.f32.mrb[0].mxu0
        %v4787 = vadd.f32 %v4706, %v4786
        %v4788 = vpop.f32.mrb[0].mxu0
        %4789 = vdwg.mxu0
        %v4790 = vadd.f32 %v4549, %v4782
        %v4791 = vadd.f32 %v4550, %v4787
        %v4792 = vld [vmem:[%s1452] sm:$0x1]
        %v4793 = vld [vmem:[%s1455] sm:$0x1]
        %v4794 = vsel %vm1497, %v4551, 0.0
        %4795 = vadd.xlane.f32.xlu0 %v4794
        %v4796 = vpop.xlane.xlu0 %4795
        %v4797 = vsel %vm1497, %v4552, 0.0
        %4798 = vadd.xlane.f32.xlu0 %v4797
        %v4799 = vpop.xlane.xlu0 %4798
        %v4800 = vsel %vm1497, %v4553, 0.0
        %4801 = vadd.xlane.f32.xlu0 %v4800
        %v4802 = vpop.xlane.xlu0 %4801
        %v4803 = vsel %vm1497, %v4554, 0.0
        %4804 = vadd.xlane.f32.xlu0 %v4803
        %v4805 = vpop.xlane.xlu0 %4804
        %v4806 = vmul.f32 %v4796, %v1504
        %v4807 = vmul.f32 %v4799, %v1504
        %v4808 = vmul.f32 %v4802, %v1504
        %v4809 = vmul.f32 %v4805, %v1504
        %v4810 = vsub.f32 %v4551, %v4806
        %v4811 = vsub.f32 %v4552, %v4807
        %v4812 = vsub.f32 %v4553, %v4808
        %v4813 = vsub.f32 %v4554, %v4809
        %v4814 = vmul.f32 %v4810, %v4810
        %v4815 = vmul.f32 %v4811, %v4811
        %v4816 = vmul.f32 %v4812, %v4812
        %v4817 = vmul.f32 %v4813, %v4813
        %v4818 = vsel %vm1497, %v4814, 0.0
        %4819 = vadd.xlane.f32.xlu0 %v4818
        %v4820 = vpop.xlane.xlu0 %4819
        %v4821 = vsel %vm1497, %v4815, 0.0
        %4822 = vadd.xlane.f32.xlu0 %v4821
        %v4823 = vpop.xlane.xlu0 %4822
        %v4824 = vsel %vm1497, %v4816, 0.0
        %4825 = vadd.xlane.f32.xlu0 %v4824
        %v4826 = vpop.xlane.xlu0 %4825
        %v4827 = vsel %vm1497, %v4817, 0.0
        %4828 = vadd.xlane.f32.xlu0 %v4827
        %v4829 = vpop.xlane.xlu0 %4828
        %v4830 = vmul.f32 %v4820, %v1504
        %v4831 = vmul.f32 %v4823, %v1504
        %v4832 = vmul.f32 %v4826, %v1504
        %v4833 = vmul.f32 %v4829, %v1504
        %v4834 = vadd.f32 %v4830, 1e-05
        %v4835 = vadd.f32 %v4831, 1e-05
        %v4836 = vadd.f32 %v4832, 1e-05
        %v4837 = vadd.f32 %v4833, 1e-05
        %v4838 = vrsqrt.pop %v4834
        %v4839 = vrsqrt.pop %v4835
        %v4840 = vrsqrt.pop %v4836
        %v4841 = vrsqrt.pop %v4837
        %v4842 = vmul.f32 %v4810, %v4838
        %v4843 = vmul.f32 %v4811, %v4839
        %v4844 = vmul.f32 %v4812, %v4840
        %v4845 = vmul.f32 %v4813, %v4841
        %v4847 = vlaneseq
        %v4848 = vshrl.u32 %v4847, 7
        %v4849 = vsub.s32 0, %v4848
        %v4850 = vrot.slane %v4792, %v4849
        %v4852 = vmul.f32 %v4842, %v4850
        %v4853 = vmul.f32 %v4843, %v4850
        %v4854 = vmul.f32 %v4844, %v4850
        %v4855 = vmul.f32 %v4845, %v4850
        %v4857 = vlaneseq
        %v4858 = vshrl.u32 %v4857, 7
        %v4859 = vsub.s32 0, %v4858
        %v4860 = vrot.slane %v4793, %v4859
        %v4862 = vadd.f32 %v4852, %v4860
        %v4863 = vadd.f32 %v4853, %v4860
        %v4864 = vadd.f32 %v4854, %v4860
        %v4865 = vadd.f32 %v4855, %v4860
        %v4866 = vld [vmem:[%s1460] sm:$0xff]
        %v4867 = vld [vmem:[%s1460 + $0x8] sm:$0xff]
        %v4868 = vld [vmem:[%s1460 + $0x10] sm:$0xff]
        %v4869 = vld [vmem:[%s1460 + $0x18] sm:$0xff]
        %v4870 = vld [vmem:[%s1463] sm:$0x1]
        %v4872 = vlaneseq
        %v4873 = vshrl.u32 %v4872, 7
        %v4874 = vsub.s32 0, %v4873
        %v4875 = vrot.slane %v4870, %v4874
        %v4878 = vsel %vm1497, %v4862, 0
        %v4881 = vsel %vm1497, %v4863, 0
        %v4884 = vsel %vm1497, %v4864, 0
        %v4887 = vsel %vm1497, %v4865, 0
        %4889 = vmatprep.subr.mxu0 0.0
        %4890 = vmatpush1.msra.mxu0 %v4866
        %4891 = vmatprep.subr.mxu0 0.0
        %4892 = vmatpush1.msra.mxu0 %v4867
        %4893 = vmatprep.subr.mxu0 0.0
        %4894 = vmatpush1.msra.mxu0 %v4868
        %4895 = vmatprep.subr.mxu0 0.0
        %4896 = vmatpush1.msra.mxu0 %v4869
        %4897 = vmatprep.subr.mxu0 0.0
        %4898 = vmatpush1.msra.mxu0 0.0
        %4899 = vmatprep.subr.mxu0 0.0
        %4900 = vmatpush1.msra.mxu0 0.0
        %4901 = vmatprep.subr.mxu0 0.0
        %4902 = vmatpush1.msra.mxu0 0.0
        %4903 = vmatprep.subr.mxu0 0.0
        %4904 = vmatpush1.msra.mxu0 0.0
        %4905 = vmatprep.subr.mxu0 0.0
        %4906 = vmatpush1.msra.mxu0 0.0
        %4907 = vmatprep.subr.mxu0 0.0
        %4908 = vmatpush1.msra.mxu0 0.0
        %4909 = vmatprep.subr.mxu0 0.0
        %4910 = vmatpush1.msra.mxu0 0.0
        %4911 = vmatprep.subr.mxu0 0.0
        %4912 = vmatpush1.msra.mxu0 0.0
        %4913 = vmatprep.subr.mxu0 0.0
        %4914 = vmatpush1.msra.mxu0 0.0
        %4915 = vmatprep.subr.mxu0 0.0
        %4916 = vmatpush1.msra.mxu0 0.0
        %4917 = vmatprep.subr.mxu0 0.0
        %4918 = vmatpush1.msra.mxu0 0.0
        %4919 = vmatprep.subr.mxu0 0.0
        %4920 = vmatpush1.msra.mxu0 0.0
        %4921 = vmatprep.subr.mxu0 0.0
        %4922 = vmatpush1.msra.mxu0 0.0
        %4923 = vmatprep.subr.mxu0 0.0
        %4924 = vmatpush1.msra.mxu0 0.0
        %4925 = vmatprep.subr.mxu0 0.0
        %4926 = vmatpush1.msra.mxu0 0.0
        %4927 = vmatprep.subr.mxu0 0.0
        %4928 = vmatpush1.msra.mxu0 0.0
        %4929 = vmatprep.subr.mxu0 0.0
        %4930 = vmatpush1.msra.mxu0 0.0
        %4931 = vmatprep.subr.mxu0 0.0
        %4932 = vmatpush1.msra.mxu0 0.0
        %4933 = vmatprep.subr.mxu0 0.0
        %4934 = vmatpush1.msra.mxu0 0.0
        %4935 = vmatprep.subr.mxu0 0.0
        %4936 = vmatpush1.msra.mxu0 0.0
        %4937 = vmatprep.subr.mxu0 0.0
        %4938 = vmatpush1.msra.mxu0 0.0
        %4939 = vmatprep.subr.mxu0 0.0
        %4940 = vmatpush1.msra.mxu0 0.0
        %4941 = vmatprep.subr.mxu0 0.0
        %4942 = vmatpush1.msra.mxu0 0.0
        %4943 = vmatprep.subr.mxu0 0.0
        %4944 = vmatpush1.msra.mxu0 0.0
        %4945 = vmatprep.subr.mxu0 0.0
        %4946 = vmatpush1.msra.mxu0 0.0
        %4947 = vmatprep.subr.mxu0 0.0
        %4948 = vmatpush1.msra.mxu0 0.0
        %4949 = vmatprep.subr.mxu0 0.0
        %4950 = vmatpush1.msra.mxu0 0.0
        %4951 = vmatprep.subr.mxu0 0.0
        %4952 = vmatpush1.msra.mxu0 0.0
        %4953 = vmatprep.mubr.f32.mxu0 0.0
        %4954 = vmatmul.mubr.f32.gmra.mrb[0].mxu0 %v4878
        %v4955 = vpop.f32.mrb[0].mxu0
        %v4956 = vadd.f32 %v4875, %v4955
        %v4957 = vpop.f32.mrb[0].mxu0
        %4958 = vmatprep.mubr.f32.mxu0 0.0
        %4959 = vmatmul.mubr.f32.gmra.mrb[0].mxu0 %v4881
        %v4960 = vpop.f32.mrb[0].mxu0
        %v4961 = vadd.f32 %v4875, %v4960
        %v4962 = vpop.f32.mrb[0].mxu0
        %4963 = vmatprep.mubr.f32.mxu0 0.0
        %4964 = vmatmul.mubr.f32.gmra.mrb[0].mxu0 %v4884
        %v4965 = vpop.f32.mrb[0].mxu0
        %v4966 = vadd.f32 %v4875, %v4965
        %v4967 = vpop.f32.mrb[0].mxu0
        %4968 = vmatprep.mubr.f32.mxu0 0.0
        %4969 = vmatmul.mubr.f32.gmra.mrb[0].mxu0 %v4887
        %v4970 = vpop.f32.mrb[0].mxu0
        %v4971 = vadd.f32 %v4875, %v4970
        %v4972 = vpop.f32.mrb[0].mxu0
        %4973 = vdwg.mxu0
        %v4974 = vmax.f32 %v4956, 0.0
        %v4975 = vmax.f32 %v4961, 0.0
        %v4976 = vmax.f32 %v4966, 0.0
        %v4977 = vmax.f32 %v4971, 0.0
        %v4978 = vld [vmem:[%s1468] sm:$0xff]
        %v4979 = vld [vmem:[%s1468 + $0x8] sm:$0xff]
        %v4980 = vld [vmem:[%s1468 + $0x10] sm:$0xff]
        %v4981 = vld [vmem:[%s1468 + $0x18] sm:$0xff]
        %v4982 = vld [vmem:[%s1468 + $0x20] sm:$0xff]
        %v4983 = vld [vmem:[%s1468 + $0x28] sm:$0xff]
        %v4984 = vld [vmem:[%s1468 + $0x30] sm:$0xff]
        %v4985 = vld [vmem:[%s1468 + $0x38] sm:$0xff]
        %v4986 = vld [vmem:[%s1471] sm:$0x1]
        %v4988 = vlaneseq
        %v4989 = vshrl.u32 %v4988, 7
        %v4990 = vsub.s32 0, %v4989
        %v4991 = vrot.slane %v4986, %v4990
        %v4994 = vsel %vm4708, %v4974, 0
        %v4997 = vsel %vm4708, %v4975, 0
        %v5000 = vsel %vm4708, %v4976, 0
        %v5003 = vsel %vm4708, %v4977, 0
        %5005 = vmatprep.subr.mxu0 0.0
        %5006 = vmatpush1.msra.mxu0 %v4978
        %5007 = vmatprep.subr.mxu0 0.0
        %5008 = vmatpush1.msra.mxu0 %v4979
        %5009 = vmatprep.subr.mxu0 0.0
        %5010 = vmatpush1.msra.mxu0 %v4980
        %5011 = vmatprep.subr.mxu0 0.0
        %5012 = vmatpush1.msra.mxu0 %v4981
        %5013 = vmatprep.subr.mxu0 0.0
        %5014 = vmatpush1.msra.mxu0 %v4982
        %5015 = vmatprep.subr.mxu0 0.0
        %5016 = vmatpush1.msra.mxu0 %v4983
        %5017 = vmatprep.subr.mxu0 0.0
        %5018 = vmatpush1.msra.mxu0 %v4984
        %5019 = vmatprep.subr.mxu0 0.0
        %5020 = vmatpush1.msra.mxu0 %v4985
        %5021 = vmatprep.subr.mxu0 0.0
        %5022 = vmatpush1.msra.mxu0 0.0
        %5023 = vmatprep.subr.mxu0 0.0
        %5024 = vmatpush1.msra.mxu0 0.0
        %5025 = vmatprep.subr.mxu0 0.0
        %5026 = vmatpush1.msra.mxu0 0.0
        %5027 = vmatprep.subr.mxu0 0.0
        %5028 = vmatpush1.msra.mxu0 0.0
        %5029 = vmatprep.subr.mxu0 0.0
        %5030 = vmatpush1.msra.mxu0 0.0
        %5031 = vmatprep.subr.mxu0 0.0
        %5032 = vmatpush1.msra.mxu0 0.0
        %5033 = vmatprep.subr.mxu0 0.0
        %5034 = vmatpush1.msra.mxu0 0.0
        %5035 = vmatprep.subr.mxu0 0.0
        %5036 = vmatpush1.msra.mxu0 0.0
        %5037 = vmatprep.subr.mxu0 0.0
        %5038 = vmatpush1.msra.mxu0 0.0
        %5039 = vmatprep.subr.mxu0 0.0
        %5040 = vmatpush1.msra.mxu0 0.0
        %5041 = vmatprep.subr.mxu0 0.0
        %5042 = vmatpush1.msra.mxu0 0.0
        %5043 = vmatprep.subr.mxu0 0.0
        %5044 = vmatpush1.msra.mxu0 0.0
        %5045 = vmatprep.subr.mxu0 0.0
        %5046 = vmatpush1.msra.mxu0 0.0
        %5047 = vmatprep.subr.mxu0 0.0
        %5048 = vmatpush1.msra.mxu0 0.0
        %5049 = vmatprep.subr.mxu0 0.0
        %5050 = vmatpush1.msra.mxu0 0.0
        %5051 = vmatprep.subr.mxu0 0.0
        %5052 = vmatpush1.msra.mxu0 0.0
        %5053 = vmatprep.subr.mxu0 0.0
        %5054 = vmatpush1.msra.mxu0 0.0
        %5055 = vmatprep.subr.mxu0 0.0
        %5056 = vmatpush1.msra.mxu0 0.0
        %5057 = vmatprep.subr.mxu0 0.0
        %5058 = vmatpush1.msra.mxu0 0.0
        %5059 = vmatprep.subr.mxu0 0.0
        %5060 = vmatpush1.msra.mxu0 0.0
        %5061 = vmatprep.subr.mxu0 0.0
        %5062 = vmatpush1.msra.mxu0 0.0
        %5063 = vmatprep.subr.mxu0 0.0
        %5064 = vmatpush1.msra.mxu0 0.0
        %5065 = vmatprep.subr.mxu0 0.0
        %5066 = vmatpush1.msra.mxu0 0.0
        %5067 = vmatprep.subr.mxu0 0.0
        %5068 = vmatpush1.msra.mxu0 0.0
        %5069 = vmatprep.mubr.f32.mxu0 0.0
        %5070 = vmatmul.mubr.f32.gmra.mrb[0].mxu0 %v4994
        %v5071 = vpop.f32.mrb[0].mxu0
        %v5072 = vadd.f32 %v4991, %v5071
        %v5073 = vpop.f32.mrb[0].mxu0
        %5074 = vmatprep.mubr.f32.mxu0 0.0
        %5075 = vmatmul.mubr.f32.gmra.mrb[0].mxu0 %v4997
        %v5076 = vpop.f32.mrb[0].mxu0
        %v5077 = vadd.f32 %v4991, %v5076
        %v5078 = vpop.f32.mrb[0].mxu0
        %5079 = vmatprep.mubr.f32.mxu0 0.0
        %5080 = vmatmul.mubr.f32.gmra.mrb[0].mxu0 %v5000
        %v5081 = vpop.f32.mrb[0].mxu0
        %v5082 = vadd.f32 %v4991, %v5081
        %v5083 = vpop.f32.mrb[0].mxu0
        %5084 = vmatprep.mubr.f32.mxu0 0.0
        %5085 = vmatmul.mubr.f32.gmra.mrb[0].mxu0 %v5003
        %v5086 = vpop.f32.mrb[0].mxu0
        %v5087 = vadd.f32 %v4991, %v5086
        %v5088 = vpop.f32.mrb[0].mxu0
        %5089 = vdwg.mxu0
        %v5090 = vadd.f32 %v4551, %v5072
        %v5091 = vadd.f32 %v4552, %v5077
        %v5092 = vadd.f32 %v4553, %v5082
        %v5093 = vadd.f32 %v4554, %v5087
        %5094 = vst.msk [vmem:[#allocation2] sm:$0xff] %vm1497, %v4790
        %5095 = vst.msk [vmem:[#allocation2 + $0x8] sm:$0xff] %vm1497, %v4791
        %5096 = vst.msk [vmem:[#allocation3] sm:$0xff] %vm1497, %v5090
        %5097 = vst.msk [vmem:[#allocation3 + $0x8] sm:$0xff] %vm1497, %v5091
        %5098 = vst.msk [vmem:[#allocation3 + $0x10] sm:$0xff] %vm1497, %v5092
        %5099 = vst.msk [vmem:[#allocation3 + $0x18] sm:$0xff] %vm1497, %v5093
        %p5100 = scmp.eq.s32.totalorder %s81, 1
        // Predicated region
        $region153: #{tpu_custom_call.1} parent=147 // pred_check
          %p5101 = pneg %p5100
        $region154: #{tpu_custom_call.1} parent=147 // pred_check_branch
          %5103 = sbr.rel (%p5101) target = $region156
        $region155: #{tpu_custom_call.1} parent=147 // pred_region
          %5104 = vst.msk [vmem:[#allocation4] sm:$0xff] %vm1497, %v4790
          %5105 = vst.msk [vmem:[#allocation4 + $0x8] sm:$0xff] %vm1497, %v4791
          %5106 = vst.msk [vmem:[#allocation6] sm:$0xff] %vm1497, %v5090
          %5107 = vst.msk [vmem:[#allocation6 + $0x8] sm:$0xff] %vm1497, %v5091
          %5108 = vst.msk [vmem:[#allocation6 + $0x10] sm:$0xff] %vm1497, %v5092
          %5109 = vst.msk [vmem:[#allocation6 + $0x18] sm:$0xff] %vm1497, %v5093
        $region156: #{tpu_custom_call.1} parent=147 // pred_fallthru
          _
        // Predicated region
        $region157: #{tpu_custom_call.1} parent=147 // pred_check
          %p5110 = pneg %p916
        $region158: #{tpu_custom_call.1} parent=147 // pred_check_branch
          %5112 = sbr.rel (%p5110) target = $region160
        $region159: #{tpu_custom_call.1} parent=147 // pred_region
          %s5114 = ssub.s32 256, 256
          %5115 = vsyncadd [#allocation5], %s5114
          %s5116 = sshll.u32 [#allocation4], 4
          %s5117 = int_to_ptr.vmem [resolvable:$true] %s5116
          %5122 = dma.vmem_to_hbm [thread:$0]  %s5117, 256, %s65, [#allocation5], 128, 128, 8
        $region160: #{tpu_custom_call.1} parent=147 // pred_fallthru
          _
        // Predicated region
        $region161: #{tpu_custom_call.1} parent=147 // pred_check
          %p5123 = pneg %p937
        $region162: #{tpu_custom_call.1} parent=147 // pred_check_branch
          %5125 = sbr.rel (%p5123) target = $region164
        $region163: #{tpu_custom_call.1} parent=147 // pred_region
          %s5127 = ssub.s32 512, 512
          %5128 = vsyncadd [#allocation7], %s5127
          %s5129 = sshll.u32 [#allocation6], 4
          %s5130 = int_to_ptr.vmem [resolvable:$true] %s5129
          %5135 = dma.vmem_to_hbm [thread:$0]  %s5130, 512, %s67, [#allocation7], 128, 128, 8
        $region164: #{tpu_custom_call.1} parent=147 // pred_fallthru
          _
        // Predicated region
        $region165: #{tpu_custom_call.1} parent=147 // pred_check
          %p5136 = pneg %p916
        $region166: #{tpu_custom_call.1} parent=147 // pred_check_branch
          %5138 = sbr.rel (%p5136) target = $region168
        $region167: #{tpu_custom_call.1} parent=147 // pred_region
          %5139 = dma.done [#allocation5], 256
        $region168: #{tpu_custom_call.1} parent=147 // pred_fallthru
          _
        // Predicated region
        $region169: #{tpu_custom_call.1} parent=147 // pred_check
          %p5140 = pneg %p937
        $region170: #{tpu_custom_call.1} parent=147 // pred_check_branch
          %5142 = sbr.rel (%p5140) target = $region172
        $region171: #{tpu_custom_call.1} parent=147 // pred_region
          %5143 = dma.done [#allocation7], 512
        $region172: #{tpu_custom_call.1} parent=147 // pred_fallthru
          _
      $region148: #{tpu_custom_call.1} parent=5 // pred_fallthru
        _
      %p5144 = scmp.le.s32.totalorder 2, %s76
      // Predicated region
      $region173: #{tpu_custom_call.1} parent=5 // pred_check
        %p5145 = pneg %p5144
      $region174: #{tpu_custom_call.1} parent=5 // pred_check_branch
        %5147 = sbr.rel (%p5145) target = $region176
      $region175: #{tpu_custom_call.1} parent=5 // pred_region
        %s5148 = ssub.s32 %s76, 2
      $region176: #{tpu_custom_call.1} parent=5 // pred_fallthru
        _
    $region6: #{tpu_custom_call.1} parent=1 // loop_footer
      %s80 = sadd.s32 1, %s76
    $region7: #{tpu_custom_call.1} parent=1 // loop_footer_branch
      %75 = sbr.rel target = $region3
    $region8: #{tpu_custom_call.1} parent=1 // loop_exit
      _
    %5149 = vsyncpa [#allocation5], 1
    %s5150 = scalar_lea.sflag [#allocation5], 1
    %5151 = vsyncpa %s5150, 1
    %5152 = vsyncpa [#allocation7], 1

</llo_original>
